<compile_context>
chip_gen: v7x
topology: tpu7x:2x2x1
jax: 0.10.0
libtpu: 0.0.40
codegen_flags: <defaults>
</compile_context>

<pallas_src>
import functools

import jax
import jax.numpy as jnp
from jax import lax
from jax.experimental import pallas as pl
from jax.experimental.pallas import tpu as pltpu

KSIZE = 7
PAD = 3


def spatial_attention_kernel(w_ref, x_ref, o_ref,
                             sum_ref, max_ref, avgp_ref, maxp_ref,
                             *, inv_c, fold, H, W, unroll):
    # w_ref   : (2*7*7,) f32 conv weight, scalar-prefetched into SMEM
    # x_ref   : (1, TC, Hf, Wf) lane-dense folded input block (VMEM)
    # o_ref   : (1, 1, Hf, Wf) folded output block
    # sum_ref : (Hf, Wf) f32 running channel sum   (scratch, persists over C)
    # max_ref : (Hf, Wf) f32 running channel max   (scratch, persists over C)
    # avgp_ref: (H+6, W+6) f32 zero-padded avg map (scratch, finalize only)
    # maxp_ref: (H+6, W+6) f32 zero-padded max map (scratch, finalize only)
    c_idx = pl.program_id(1)
    n_c = pl.num_programs(1)
    tc = x_ref.shape[1]

    # ---- streaming channel reduction over this C tile (lane-dense) ---------
    @pl.when(c_idx == 0)
    def _():
        sum_ref[...] = jnp.zeros(sum_ref.shape, sum_ref.dtype)
        max_ref[...] = jnp.full(max_ref.shape, -jnp.inf, max_ref.dtype)

    def body(i, carry):
        s, m = carry
        xi = x_ref[0, i].astype(jnp.float32)          # one (Hf, Wf) plane
        return s + xi, jnp.maximum(m, xi)

    s, m = lax.fori_loop(0, tc, body, (sum_ref[...], max_ref[...]),
                         unroll=unroll)
    sum_ref[...] = s
    max_ref[...] = m

    # ---- finalize on the last C step: unfold, pad, 7x7 conv, sigmoid -------
    @pl.when(c_idx == n_c - 1)
    def _():
        # Zero-pad only the tiny 2-plane (avg, max) maps; padding value 0
        # matches the reference conv's zero padding for both channels.
        avgp_ref[...] = jnp.zeros(avgp_ref.shape, avgp_ref.dtype)
        maxp_ref[...] = jnp.zeros(maxp_ref.shape, maxp_ref.dtype)

        if fold == 1:
            avgp_ref[PAD:PAD + H, PAD:PAD + W] = s * inv_c
            maxp_ref[PAD:PAD + H, PAD:PAD + W] = m
        else:
            # Unfold the folded (Hf, f*W) maps row by row (static slices only).
            for i in range(H):
                r, j = divmod(i, fold)
                avgp_ref[PAD + i:PAD + i + 1, PAD:PAD + W] = (
                    s[r:r + 1, j * W:(j + 1) * W] * inv_c)
                maxp_ref[PAD + i:PAD + i + 1, PAD:PAD + W] = (
                    m[r:r + 1, j * W:(j + 1) * W])

        avg_p = avgp_ref[...]                          # (H+6, W+6)
        max_p = maxp_ref[...]

        acc = jnp.zeros((H, W), jnp.float32)
        for kj in range(KSIZE):
            # One lane (column) shift per kj per plane: 14 relayouts total.
            a_col = avg_p[:, kj:kj + W]                # (H+6, W)
            m_col = max_p[:, kj:kj + W]
            for ki in range(KSIZE):
                w_a = w_ref[ki * KSIZE + kj]                   # avg channel
                w_m = w_ref[KSIZE * KSIZE + ki * KSIZE + kj]   # max channel
                acc = acc + w_a * a_col[ki:ki + H, :] \
                          + w_m * m_col[ki:ki + H, :]

        y = jax.nn.sigmoid(acc).astype(o_ref.dtype)    # (H, W)
        if fold == 1:
            o_ref[0, 0] = y
        else:
            # Re-fold the output rows into the lane-dense output block.
            for i in range(H):
                r, j = divmod(i, fold)
                o_ref[0, 0, r:r + 1, j * W:(j + 1) * W] = y[i:i + 1, :]


def _round_up(a, b):
    return (a + b - 1) // b * b


def _pick_fold(H, W):
    """Largest divisor of H with f*W <= 128 (lane-dense folding factor)."""
    if W >= 128:
        return 1
    fmax = min(128 // W, H)
    f = 1
    for d in range(1, fmax + 1):
        if H % d == 0:
            f = d
    return f


def _pick_c_tile(C, plane_bytes, budget_bytes):
    """Largest divisor of C whose (TC, Hf, Wf) padded block fits the budget."""
    tc = 1
    for d in range(1, C + 1):
        if C % d == 0 and d * plane_bytes <= budget_bytes:
            tc = d
    return tc


@jax.jit
def spatial_attention(x, weight):
    """x: (B, C, H, W); weight: (1, 2, 7, 7) -> (B, 1, H, W)."""
    B, C, H, W = x.shape
    itemsize = jnp.dtype(x.dtype).itemsize
    Hp, Wp = H + 2 * PAD, W + 2 * PAD

    # Lane-dense folded spatial layout (free reshape, row-major preserving).
    f = _pick_fold(H, W)
    Hf, Wf = H // f, W * f

    # VMEM footprint of one (Hf, Wf) plane after (8, 128) tile padding.
    plane_bytes = _round_up(Hf, 8) * _round_up(Wf, 128) * itemsize
    TC = _pick_c_tile(C, plane_bytes, budget_bytes=12 * 1024 * 1024)
    NC = C // TC
    unroll = True if TC <= 8 else 8

    x_f = x.reshape(B, C, Hf, Wf)                      # contiguous fold
    w_flat = weight.reshape(-1).astype(jnp.float32)    # (2*7*7,) -> SMEM

    # Size scoped VMEM for the double-buffered x block + resident output +
    # scratch, clamped to [32 MiB, 48 MiB]: never below the v6e default,
    # headroom under v7x's 64 MiB physical VMEM, explicit (> default) on v5e.
    x_block = TC * plane_bytes
    out_block = plane_bytes
    scratch = (2 * _round_up(Hf, 8) * _round_up(Wf, 128)
               + 2 * _round_up(Hp, 8) * _round_up(Wp, 128)) * 4
    need = 2 * x_block + 2 * out_block + scratch + (2 << 20)
    vmem_limit = int(min(max(need, 32 << 20), 48 << 20))

    kernel = functools.partial(spatial_attention_kernel,
                               inv_c=1.0 / C, fold=f, H=H, W=W, unroll=unroll)

    grid_spec = pltpu.PrefetchScalarGridSpec(
        num_scalar_prefetch=1,                         # conv weight, loaded once
        grid=(B, NC),
        in_specs=[
            pl.BlockSpec((1, TC, Hf, Wf), lambda b, c, w: (b, c, 0, 0)),
        ],
        out_specs=pl.BlockSpec((1, 1, Hf, Wf), lambda b, c, w: (b, 0, 0, 0)),
        scratch_shapes=[
            pltpu.VMEM((Hf, Wf), jnp.float32),         # running channel sum
            pltpu.VMEM((Hf, Wf), jnp.float32),         # running channel max
            pltpu.VMEM((Hp, Wp), jnp.float32),         # zero-padded avg map
            pltpu.VMEM((Hp, Wp), jnp.float32),         # zero-padded max map
        ],
    )

    out_f = pl.pallas_call(
        kernel,
        out_shape=jax.ShapeDtypeStruct((B, 1, Hf, Wf), x.dtype),
        grid_spec=grid_spec,
        compiler_params=pltpu.CompilerParams(
            dimension_semantics=("parallel", "arbitrary"),
            vmem_limit_bytes=vmem_limit),
    )(w_flat, x_f)

    return out_f.reshape(B, 1, H, W)                   # metadata-only unfold


def reference(x, weight):
    avg = jnp.mean(x, axis=1, keepdims=True)
    mx = jnp.max(x, axis=1, keepdims=True)
    cat = jnp.concatenate([avg, mx], axis=1)           # (B,2,H,W)
    y = lax.conv_general_dilated(
        cat, weight, window_strides=(1, 1),
        padding=((PAD, PAD), (PAD, PAD)),
        dimension_numbers=("NCHW", "OIHW", "NCHW"))
    return jax.nn.sigmoid(y)


if __name__ == "__main__":
    key = jax.random.PRNGKey(0)
    kx, kw = jax.random.split(key)

    B, C, H, W = 2, 4, 16, 16
    x = jax.random.normal(kx, (B, C, H, W), dtype=jnp.float32)

    # Deterministic weight init matching nn.Conv2d default scale:
    # kaiming_uniform(a=sqrt(5)) -> U(-1/sqrt(fan_in), 1/sqrt(fan_in)), fan_in=2*7*7
    fan_in = 2 * KSIZE * KSIZE
    bound = 1.0 / float(fan_in) ** 0.5
    weight = jax.random.uniform(kw, (1, 2, KSIZE, KSIZE),
                                minval=-bound, maxval=bound, dtype=jnp.float32)

    out = spatial_attention(x, weight)
    out = jax.block_until_ready(out)

    ref = reference(x, weight)
    assert out.shape == (B, 1, H, W)
    assert jnp.allclose(out, ref, atol=1e-5, rtol=1e-5), "mismatch vs reference"

    print("KERNEL_OK")
</pallas_src>

<mosaic_0001>
module attributes {stable_mosaic.version = 11 : i64} {
  func.func @spatial_attention_kernel(%arg0: i32, %arg1: i32, %arg2: memref<98xf32, #tpu.memory_space<smem>>, %arg3: memref<1x4x2x128xf32, #tpu.memory_space<vmem>>, %arg4: memref<1x1x2x128xf32, #tpu.memory_space<vmem>>, %arg5: memref<2x128xf32, #tpu.memory_space<vmem>>, %arg6: memref<2x128xf32, #tpu.memory_space<vmem>>, %arg7: memref<22x22xf32, #tpu.memory_space<vmem>>, %arg8: memref<22x22xf32, #tpu.memory_space<vmem>>) attributes {dimension_semantics = [#tpu.dimension_semantics<parallel>, #tpu.dimension_semantics<arbitrary>], iteration_bounds = array<i64: 2, 1>, scalar_prefetch = 1 : i64, scratch_operands = 4 : i64, tpu.core_type = #tpu.core_type<tc>, window_params = [{transform_indices = @transform_0, window_bounds = array<i64: 1, 4, 2, 128>}, {transform_indices = @transform_1, window_bounds = array<i64: 1, 1, 2, 128>}]} {
    %c0_i32 = arith.constant 0 : i32
    %0 = arith.cmpi eq, %arg1, %c0_i32 : i32
    %1 = arith.extui %0 : i1 to i32
    %c0_i32_0 = arith.constant 0 : i32
    %2 = arith.cmpi ne, %1, %c0_i32_0 : i32
    scf.if %2 {
      %cst = arith.constant 0.000000e+00 : f32
      %30 = vector.broadcast %cst : f32 to vector<2x128xf32>
      %c0_23 = arith.constant 0 : index
      %c0_24 = arith.constant 0 : index
      %31 = vector.load %arg5[%c0_23, %c0_24] : memref<2x128xf32, #tpu.memory_space<vmem>>, vector<2x128xf32>
      tpu.vector_store %arg5[%c0_23, %c0_24], %30 {strides = array<i32>} : memref<2x128xf32, #tpu.memory_space<vmem>>, vector<2x128xf32>,
      %cst_25 = arith.constant 0xFF800000 : f32
      %32 = vector.broadcast %cst_25 : f32 to vector<2x128xf32>
      %c0_26 = arith.constant 0 : index
      %c0_27 = arith.constant 0 : index
      %33 = vector.load %arg6[%c0_26, %c0_27] : memref<2x128xf32, #tpu.memory_space<vmem>>, vector<2x128xf32>
      tpu.vector_store %arg6[%c0_26, %c0_27], %32 {strides = array<i32>} : memref<2x128xf32, #tpu.memory_space<vmem>>, vector<2x128xf32>,
    } else {
    }
    %c0 = arith.constant 0 : index
    %c0_1 = arith.constant 0 : index
    %3 = vector.load %arg5[%c0, %c0_1] : memref<2x128xf32, #tpu.memory_space<vmem>>, vector<2x128xf32>
    %c0_2 = arith.constant 0 : index
    %c0_3 = arith.constant 0 : index
    %4 = vector.load %arg6[%c0_2, %c0_3] : memref<2x128xf32, #tpu.memory_space<vmem>>, vector<2x128xf32>
    %c0_i32_4 = arith.constant 0 : i32
    %c0_5 = arith.constant 0 : index
    %5 = arith.index_cast %c0_i32_4 : i32 to index
    %c0_6 = arith.constant 0 : index
    %c0_7 = arith.constant 0 : index
    %6 = vector.load %arg3[%c0_5, %5, %c0_6, %c0_7] : memref<1x4x2x128xf32, #tpu.memory_space<vmem>>, vector<1x1x2x128xf32>
    %7 = vector.shape_cast %6 : vector<1x1x2x128xf32> to vector<2x128xf32>
    %8 = arith.addf %3, %7 : vector<2x128xf32>
    %9 = arith.maximumf %4, %7 : vector<2x128xf32>
    %c1_i32 = arith.constant 1 : i32
    %c0_8 = arith.constant 0 : index
    %10 = arith.index_cast %c1_i32 : i32 to index
    %c0_9 = arith.constant 0 : index
    %c0_10 = arith.constant 0 : index
    %11 = vector.load %arg3[%c0_8, %10, %c0_9, %c0_10] : memref<1x4x2x128xf32, #tpu.memory_space<vmem>>, vector<1x1x2x128xf32>
    %12 = vector.shape_cast %11 : vector<1x1x2x128xf32> to vector<2x128xf32>
    %13 = arith.addf %8, %12 : vector<2x128xf32>
    %14 = arith.maximumf %9, %12 : vector<2x128xf32>
    %c2_i32 = arith.constant 2 : i32
    %c0_11 = arith.constant 0 : index
    %15 = arith.index_cast %c2_i32 : i32 to index
    %c0_12 = arith.constant 0 : index
    %c0_13 = arith.constant 0 : index
    %16 = vector.load %arg3[%c0_11, %15, %c0_12, %c0_13] : memref<1x4x2x128xf32, #tpu.memory_space<vmem>>, vector<1x1x2x128xf32>
    %17 = vector.shape_cast %16 : vector<1x1x2x128xf32> to vector<2x128xf32>
    %18 = arith.addf %13, %17 : vector<2x128xf32>
    %19 = arith.maximumf %14, %17 : vector<2x128xf32>
    %c3_i32 = arith.constant 3 : i32
    %c0_14 = arith.constant 0 : index
    %20 = arith.index_cast %c3_i32 : i32 to index
    %c0_15 = arith.constant 0 : index
    %c0_16 = arith.constant 0 : index
    %21 = vector.load %arg3[%c0_14, %20, %c0_15, %c0_16] : memref<1x4x2x128xf32, #tpu.memory_space<vmem>>, vector<1x1x2x128xf32>
    %22 = vector.shape_cast %21 : vector<1x1x2x128xf32> to vector<2x128xf32>
    %23 = arith.addf %18, %22 : vector<2x128xf32>
    %24 = arith.maximumf %19, %22 : vector<2x128xf32>
    %c4_i32 = arith.constant 4 : i32
    %c0_17 = arith.constant 0 : index
    %c0_18 = arith.constant 0 : index
    %25 = vector.load %arg5[%c0_17, %c0_18] : memref<2x128xf32, #tpu.memory_space<vmem>>, vector<2x128xf32>
    tpu.vector_store %arg5[%c0_17, %c0_18], %23 {strides = array<i32>} : memref<2x128xf32, #tpu.memory_space<vmem>>, vector<2x128xf32>,
    %c0_19 = arith.constant 0 : index
    %c0_20 = arith.constant 0 : index
    %26 = vector.load %arg6[%c0_19, %c0_20] : memref<2x128xf32, #tpu.memory_space<vmem>>, vector<2x128xf32>
    tpu.vector_store %arg6[%c0_19, %c0_20], %24 {strides = array<i32>} : memref<2x128xf32, #tpu.memory_space<vmem>>, vector<2x128xf32>,
    %c0_i32_21 = arith.constant 0 : i32
    %27 = arith.cmpi eq, %arg1, %c0_i32_21 : i32
    %28 = arith.extui %27 : i1 to i32
    %c0_i32_22 = arith.constant 0 : i32
    %29 = arith.cmpi ne, %28, %c0_i32_22 : i32
    scf.if %29 {
      %cst = arith.constant 0.000000e+00 : f32
      %30 = vector.broadcast %cst : f32 to vector<22x22xf32>
      %c0_23 = arith.constant 0 : index
      %c0_24 = arith.constant 0 : index
      %31 = vector.load %arg7[%c0_23, %c0_24] : memref<22x22xf32, #tpu.memory_space<vmem>>, vector<22x22xf32>
      tpu.vector_store %arg7[%c0_23, %c0_24], %30 {strides = array<i32>} : memref<22x22xf32, #tpu.memory_space<vmem>>, vector<22x22xf32>,
      %cst_25 = arith.constant 0.000000e+00 : f32
      %32 = vector.broadcast %cst_25 : f32 to vector<22x22xf32>
      %c0_26 = arith.constant 0 : index
      %c0_27 = arith.constant 0 : index
      %33 = vector.load %arg8[%c0_26, %c0_27] : memref<22x22xf32, #tpu.memory_space<vmem>>, vector<22x22xf32>
      tpu.vector_store %arg8[%c0_26, %c0_27], %32 {strides = array<i32>} : memref<22x22xf32, #tpu.memory_space<vmem>>, vector<22x22xf32>,
      %34 = vector.extract_strided_slice %23 {offsets = [0, 0], sizes = [1, 16], strides = [1, 1]} : vector<2x128xf32> to vector<1x16xf32>
      %cst_28 = arith.constant 2.500000e-01 : f32
      %35 = vector.broadcast %cst_28 : f32 to vector<1x16xf32>
      %36 = arith.mulf %34, %35 : vector<1x16xf32>
      %c3 = arith.constant 3 : index
      %c3_29 = arith.constant 3 : index
      %37 = vector.load %arg7[%c3, %c3_29] : memref<22x22xf32, #tpu.memory_space<vmem>>, vector<1x16xf32>
      tpu.vector_store %arg7[%c3, %c3_29], %36 {strides = array<i32>} : memref<22x22xf32, #tpu.memory_space<vmem>>, vector<1x16xf32>,
      %38 = vector.extract_strided_slice %24 {offsets = [0, 0], sizes = [1, 16], strides = [1, 1]} : vector<2x128xf32> to vector<1x16xf32>
      %c3_30 = arith.constant 3 : index
      %c3_31 = arith.constant 3 : index
      %39 = vector.load %arg8[%c3_30, %c3_31] : memref<22x22xf32, #tpu.memory_space<vmem>>, vector<1x16xf32>
      tpu.vector_store %arg8[%c3_30, %c3_31], %38 {strides = array<i32>} : memref<22x22xf32, #tpu.memory_space<vmem>>, vector<1x16xf32>,
      %40 = vector.extract_strided_slice %23 {offsets = [0, 16], sizes = [1, 16], strides = [1, 1]} : vector<2x128xf32> to vector<1x16xf32>
      %cst_32 = arith.constant 2.500000e-01 : f32
      %41 = vector.broadcast %cst_32 : f32 to vector<1x16xf32>
      %42 = arith.mulf %40, %41 : vector<1x16xf32>
      %c4 = arith.constant 4 : index
      %c3_33 = arith.constant 3 : index
      %43 = vector.load %arg7[%c4, %c3_33] : memref<22x22xf32, #tpu.memory_space<vmem>>, vector<1x16xf32>
      tpu.vector_store %arg7[%c4, %c3_33], %42 {strides = array<i32>} : memref<22x22xf32, #tpu.memory_space<vmem>>, vector<1x16xf32>,
      %44 = vector.extract_strided_slice %24 {offsets = [0, 16], sizes = [1, 16], strides = [1, 1]} : vector<2x128xf32> to vector<1x16xf32>
      %c4_34 = arith.constant 4 : index
      %c3_35 = arith.constant 3 : index
      %45 = vector.load %arg8[%c4_34, %c3_35] : memref<22x22xf32, #tpu.memory_space<vmem>>, vector<1x16xf32>
      tpu.vector_store %arg8[%c4_34, %c3_35], %44 {strides = array<i32>} : memref<22x22xf32, #tpu.memory_space<vmem>>, vector<1x16xf32>,
      %46 = vector.extract_strided_slice %23 {offsets = [0, 32], sizes = [1, 16], strides = [1, 1]} : vector<2x128xf32> to vector<1x16xf32>
      %cst_36 = arith.constant 2.500000e-01 : f32
      %47 = vector.broadcast %cst_36 : f32 to vector<1x16xf32>
      %48 = arith.mulf %46, %47 : vector<1x16xf32>
      %c5 = arith.constant 5 : index
      %c3_37 = arith.constant 3 : index
      %49 = vector.load %arg7[%c5, %c3_37] : memref<22x22xf32, #tpu.memory_space<vmem>>, vector<1x16xf32>
      tpu.vector_store %arg7[%c5, %c3_37], %48 {strides = array<i32>} : memref<22x22xf32, #tpu.memory_space<vmem>>, vector<1x16xf32>,
      %50 = vector.extract_strided_slice %24 {offsets = [0, 32], sizes = [1, 16], strides = [1, 1]} : vector<2x128xf32> to vector<1x16xf32>
      %c5_38 = arith.constant 5 : index
      %c3_39 = arith.constant 3 : index
      %51 = vector.load %arg8[%c5_38, %c3_39] : memref<22x22xf32, #tpu.memory_space<vmem>>, vector<1x16xf32>
      tpu.vector_store %arg8[%c5_38, %c3_39], %50 {strides = array<i32>} : memref<22x22xf32, #tpu.memory_space<vmem>>, vector<1x16xf32>,
      %52 = vector.extract_strided_slice %23 {offsets = [0, 48], sizes = [1, 16], strides = [1, 1]} : vector<2x128xf32> to vector<1x16xf32>
      %cst_40 = arith.constant 2.500000e-01 : f32
      %53 = vector.broadcast %cst_40 : f32 to vector<1x16xf32>
      %54 = arith.mulf %52, %53 : vector<1x16xf32>
      %c6 = arith.constant 6 : index
      %c3_41 = arith.constant 3 : index
      %55 = vector.load %arg7[%c6, %c3_41] : memref<22x22xf32, #tpu.memory_space<vmem>>, vector<1x16xf32>
      tpu.vector_store %arg7[%c6, %c3_41], %54 {strides = array<i32>} : memref<22x22xf32, #tpu.memory_space<vmem>>, vector<1x16xf32>,
      %56 = vector.extract_strided_slice %24 {offsets = [0, 48], sizes = [1, 16], strides = [1, 1]} : vector<2x128xf32> to vector<1x16xf32>
      %c6_42 = arith.constant 6 : index
      %c3_43 = arith.constant 3 : index
      %57 = vector.load %arg8[%c6_42, %c3_43] : memref<22x22xf32, #tpu.memory_space<vmem>>, vector<1x16xf32>
      tpu.vector_store %arg8[%c6_42, %c3_43], %56 {strides = array<i32>} : memref<22x22xf32, #tpu.memory_space<vmem>>, vector<1x16xf32>,
      %58 = vector.extract_strided_slice %23 {offsets = [0, 64], sizes = [1, 16], strides = [1, 1]} : vector<2x128xf32> to vector<1x16xf32>
      %cst_44 = arith.constant 2.500000e-01 : f32
      %59 = vector.broadcast %cst_44 : f32 to vector<1x16xf32>
      %60 = arith.mulf %58, %59 : vector<1x16xf32>
      %c7 = arith.constant 7 : index
      %c3_45 = arith.constant 3 : index
      %61 = vector.load %arg7[%c7, %c3_45] : memref<22x22xf32, #tpu.memory_space<vmem>>, vector<1x16xf32>
      tpu.vector_store %arg7[%c7, %c3_45], %60 {strides = array<i32>} : memref<22x22xf32, #tpu.memory_space<vmem>>, vector<1x16xf32>,
      %62 = vector.extract_strided_slice %24 {offsets = [0, 64], sizes = [1, 16], strides = [1, 1]} : vector<2x128xf32> to vector<1x16xf32>
      %c7_46 = arith.constant 7 : index
      %c3_47 = arith.constant 3 : index
      %63 = vector.load %arg8[%c7_46, %c3_47] : memref<22x22xf32, #tpu.memory_space<vmem>>, vector<1x16xf32>
      tpu.vector_store %arg8[%c7_46, %c3_47], %62 {strides = array<i32>} : memref<22x22xf32, #tpu.memory_space<vmem>>, vector<1x16xf32>,
      %64 = vector.extract_strided_slice %23 {offsets = [0, 80], sizes = [1, 16], strides = [1, 1]} : vector<2x128xf32> to vector<1x16xf32>
      %cst_48 = arith.constant 2.500000e-01 : f32
      %65 = vector.broadcast %cst_48 : f32 to vector<1x16xf32>
      %66 = arith.mulf %64, %65 : vector<1x16xf32>
      %c8 = arith.constant 8 : index
      %c3_49 = arith.constant 3 : index
      %67 = vector.load %arg7[%c8, %c3_49] : memref<22x22xf32, #tpu.memory_space<vmem>>, vector<1x16xf32>
      tpu.vector_store %arg7[%c8, %c3_49], %66 {strides = array<i32>} : memref<22x22xf32, #tpu.memory_space<vmem>>, vector<1x16xf32>,
      %68 = vector.extract_strided_slice %24 {offsets = [0, 80], sizes = [1, 16], strides = [1, 1]} : vector<2x128xf32> to vector<1x16xf32>
      %c8_50 = arith.constant 8 : index
      %c3_51 = arith.constant 3 : index
      %69 = vector.load %arg8[%c8_50, %c3_51] : memref<22x22xf32, #tpu.memory_space<vmem>>, vector<1x16xf32>
      tpu.vector_store %arg8[%c8_50, %c3_51], %68 {strides = array<i32>} : memref<22x22xf32, #tpu.memory_space<vmem>>, vector<1x16xf32>,
      %70 = vector.extract_strided_slice %23 {offsets = [0, 96], sizes = [1, 16], strides = [1, 1]} : vector<2x128xf32> to vector<1x16xf32>
      %cst_52 = arith.constant 2.500000e-01 : f32
      %71 = vector.broadcast %cst_52 : f32 to vector<1x16xf32>
      %72 = arith.mulf %70, %71 : vector<1x16xf32>
      %c9 = arith.constant 9 : index
      %c3_53 = arith.constant 3 : index
      %73 = vector.load %arg7[%c9, %c3_53] : memref<22x22xf32, #tpu.memory_space<vmem>>, vector<1x16xf32>
      tpu.vector_store %arg7[%c9, %c3_53], %72 {strides = array<i32>} : memref<22x22xf32, #tpu.memory_space<vmem>>, vector<1x16xf32>,
      %74 = vector.extract_strided_slice %24 {offsets = [0, 96], sizes = [1, 16], strides = [1, 1]} : vector<2x128xf32> to vector<1x16xf32>
      %c9_54 = arith.constant 9 : index
      %c3_55 = arith.constant 3 : index
      %75 = vector.load %arg8[%c9_54, %c3_55] : memref<22x22xf32, #tpu.memory_space<vmem>>, vector<1x16xf32>
      tpu.vector_store %arg8[%c9_54, %c3_55], %74 {strides = array<i32>} : memref<22x22xf32, #tpu.memory_space<vmem>>, vector<1x16xf32>,
      %76 = vector.extract_strided_slice %23 {offsets = [0, 112], sizes = [1, 16], strides = [1, 1]} : vector<2x128xf32> to vector<1x16xf32>
      %cst_56 = arith.constant 2.500000e-01 : f32
      %77 = vector.broadcast %cst_56 : f32 to vector<1x16xf32>
      %78 = arith.mulf %76, %77 : vector<1x16xf32>
      %c10 = arith.constant 10 : index
      %c3_57 = arith.constant 3 : index
      %79 = vector.load %arg7[%c10, %c3_57] : memref<22x22xf32, #tpu.memory_space<vmem>>, vector<1x16xf32>
      tpu.vector_store %arg7[%c10, %c3_57], %78 {strides = array<i32>} : memref<22x22xf32, #tpu.memory_space<vmem>>, vector<1x16xf32>,
      %80 = vector.extract_strided_slice %24 {offsets = [0, 112], sizes = [1, 16], strides = [1, 1]} : vector<2x128xf32> to vector<1x16xf32>
      %c10_58 = arith.constant 10 : index
      %c3_59 = arith.constant 3 : index
      %81 = vector.load %arg8[%c10_58, %c3_59] : memref<22x22xf32, #tpu.memory_space<vmem>>, vector<1x16xf32>
      tpu.vector_store %arg8[%c10_58, %c3_59], %80 {strides = array<i32>} : memref<22x22xf32, #tpu.memory_space<vmem>>, vector<1x16xf32>,
      %82 = vector.extract_strided_slice %23 {offsets = [1, 0], sizes = [1, 16], strides = [1, 1]} : vector<2x128xf32> to vector<1x16xf32>
      %cst_60 = arith.constant 2.500000e-01 : f32
      %83 = vector.broadcast %cst_60 : f32 to vector<1x16xf32>
      %84 = arith.mulf %82, %83 : vector<1x16xf32>
      %c11 = arith.constant 11 : index
      %c3_61 = arith.constant 3 : index
      %85 = vector.load %arg7[%c11, %c3_61] : memref<22x22xf32, #tpu.memory_space<vmem>>, vector<1x16xf32>
      tpu.vector_store %arg7[%c11, %c3_61], %84 {strides = array<i32>} : memref<22x22xf32, #tpu.memory_space<vmem>>, vector<1x16xf32>,
      %86 = vector.extract_strided_slice %24 {offsets = [1, 0], sizes = [1, 16], strides = [1, 1]} : vector<2x128xf32> to vector<1x16xf32>
      %c11_62 = arith.constant 11 : index
      %c3_63 = arith.constant 3 : index
      %87 = vector.load %arg8[%c11_62, %c3_63] : memref<22x22xf32, #tpu.memory_space<vmem>>, vector<1x16xf32>
      tpu.vector_store %arg8[%c11_62, %c3_63], %86 {strides = array<i32>} : memref<22x22xf32, #tpu.memory_space<vmem>>, vector<1x16xf32>,
      %88 = vector.extract_strided_slice %23 {offsets = [1, 16], sizes = [1, 16], strides = [1, 1]} : vector<2x128xf32> to vector<1x16xf32>
      %cst_64 = arith.constant 2.500000e-01 : f32
      %89 = vector.broadcast %cst_64 : f32 to vector<1x16xf32>
      %90 = arith.mulf %88, %89 : vector<1x16xf32>
      %c12 = arith.constant 12 : index
      %c3_65 = arith.constant 3 : index
      %91 = vector.load %arg7[%c12, %c3_65] : memref<22x22xf32, #tpu.memory_space<vmem>>, vector<1x16xf32>
      tpu.vector_store %arg7[%c12, %c3_65], %90 {strides = array<i32>} : memref<22x22xf32, #tpu.memory_space<vmem>>, vector<1x16xf32>,
      %92 = vector.extract_strided_slice %24 {offsets = [1, 16], sizes = [1, 16], strides = [1, 1]} : vector<2x128xf32> to vector<1x16xf32>
      %c12_66 = arith.constant 12 : index
      %c3_67 = arith.constant 3 : index
      %93 = vector.load %arg8[%c12_66, %c3_67] : memref<22x22xf32, #tpu.memory_space<vmem>>, vector<1x16xf32>
      tpu.vector_store %arg8[%c12_66, %c3_67], %92 {strides = array<i32>} : memref<22x22xf32, #tpu.memory_space<vmem>>, vector<1x16xf32>,
      %94 = vector.extract_strided_slice %23 {offsets = [1, 32], sizes = [1, 16], strides = [1, 1]} : vector<2x128xf32> to vector<1x16xf32>
      %cst_68 = arith.constant 2.500000e-01 : f32
      %95 = vector.broadcast %cst_68 : f32 to vector<1x16xf32>
      %96 = arith.mulf %94, %95 : vector<1x16xf32>
      %c13 = arith.constant 13 : index
      %c3_69 = arith.constant 3 : index
      %97 = vector.load %arg7[%c13, %c3_69] : memref<22x22xf32, #tpu.memory_space<vmem>>, vector<1x16xf32>
      tpu.vector_store %arg7[%c13, %c3_69], %96 {strides = array<i32>} : memref<22x22xf32, #tpu.memory_space<vmem>>, vector<1x16xf32>,
      %98 = vector.extract_strided_slice %24 {offsets = [1, 32], sizes = [1, 16], strides = [1, 1]} : vector<2x128xf32> to vector<1x16xf32>
      %c13_70 = arith.constant 13 : index
      %c3_71 = arith.constant 3 : index
      %99 = vector.load %arg8[%c13_70, %c3_71] : memref<22x22xf32, #tpu.memory_space<vmem>>, vector<1x16xf32>
      tpu.vector_store %arg8[%c13_70, %c3_71], %98 {strides = array<i32>} : memref<22x22xf32, #tpu.memory_space<vmem>>, vector<1x16xf32>,
      %100 = vector.extract_strided_slice %23 {offsets = [1, 48], sizes = [1, 16], strides = [1, 1]} : vector<2x128xf32> to vector<1x16xf32>
      %cst_72 = arith.constant 2.500000e-01 : f32
      %101 = vector.broadcast %cst_72 : f32 to vector<1x16xf32>
      %102 = arith.mulf %100, %101 : vector<1x16xf32>
      %c14 = arith.constant 14 : index
      %c3_73 = arith.constant 3 : index
      %103 = vector.load %arg7[%c14, %c3_73] : memref<22x22xf32, #tpu.memory_space<vmem>>, vector<1x16xf32>
      tpu.vector_store %arg7[%c14, %c3_73], %102 {strides = array<i32>} : memref<22x22xf32, #tpu.memory_space<vmem>>, vector<1x16xf32>,
      %104 = vector.extract_strided_slice %24 {offsets = [1, 48], sizes = [1, 16], strides = [1, 1]} : vector<2x128xf32> to vector<1x16xf32>
      %c14_74 = arith.constant 14 : index
      %c3_75 = arith.constant 3 : index
      %105 = vector.load %arg8[%c14_74, %c3_75] : memref<22x22xf32, #tpu.memory_space<vmem>>, vector<1x16xf32>
      tpu.vector_store %arg8[%c14_74, %c3_75], %104 {strides = array<i32>} : memref<22x22xf32, #tpu.memory_space<vmem>>, vector<1x16xf32>,
      %106 = vector.extract_strided_slice %23 {offsets = [1, 64], sizes = [1, 16], strides = [1, 1]} : vector<2x128xf32> to vector<1x16xf32>
      %cst_76 = arith.constant 2.500000e-01 : f32
      %107 = vector.broadcast %cst_76 : f32 to vector<1x16xf32>
      %108 = arith.mulf %106, %107 : vector<1x16xf32>
      %c15 = arith.constant 15 : index
      %c3_77 = arith.constant 3 : index
      %109 = vector.load %arg7[%c15, %c3_77] : memref<22x22xf32, #tpu.memory_space<vmem>>, vector<1x16xf32>
      tpu.vector_store %arg7[%c15, %c3_77], %108 {strides = array<i32>} : memref<22x22xf32, #tpu.memory_space<vmem>>, vector<1x16xf32>,
      %110 = vector.extract_strided_slice %24 {offsets = [1, 64], sizes = [1, 16], strides = [1, 1]} : vector<2x128xf32> to vector<1x16xf32>
      %c15_78 = arith.constant 15 : index
      %c3_79 = arith.constant 3 : index
      %111 = vector.load %arg8[%c15_78, %c3_79] : memref<22x22xf32, #tpu.memory_space<vmem>>, vector<1x16xf32>
      tpu.vector_store %arg8[%c15_78, %c3_79], %110 {strides = array<i32>} : memref<22x22xf32, #tpu.memory_space<vmem>>, vector<1x16xf32>,
      %112 = vector.extract_strided_slice %23 {offsets = [1, 80], sizes = [1, 16], strides = [1, 1]} : vector<2x128xf32> to vector<1x16xf32>
      %cst_80 = arith.constant 2.500000e-01 : f32
      %113 = vector.broadcast %cst_80 : f32 to vector<1x16xf32>
      %114 = arith.mulf %112, %113 : vector<1x16xf32>
      %c16 = arith.constant 16 : index
      %c3_81 = arith.constant 3 : index
      %115 = vector.load %arg7[%c16, %c3_81] : memref<22x22xf32, #tpu.memory_space<vmem>>, vector<1x16xf32>
      tpu.vector_store %arg7[%c16, %c3_81], %114 {strides = array<i32>} : memref<22x22xf32, #tpu.memory_space<vmem>>, vector<1x16xf32>,
      %116 = vector.extract_strided_slice %24 {offsets = [1, 80], sizes = [1, 16], strides = [1, 1]} : vector<2x128xf32> to vector<1x16xf32>
      %c16_82 = arith.constant 16 : index
      %c3_83 = arith.constant 3 : index
      %117 = vector.load %arg8[%c16_82, %c3_83] : memref<22x22xf32, #tpu.memory_space<vmem>>, vector<1x16xf32>
      tpu.vector_store %arg8[%c16_82, %c3_83], %116 {strides = array<i32>} : memref<22x22xf32, #tpu.memory_space<vmem>>, vector<1x16xf32>,
      %118 = vector.extract_strided_slice %23 {offsets = [1, 96], sizes = [1, 16], strides = [1, 1]} : vector<2x128xf32> to vector<1x16xf32>
      %cst_84 = arith.constant 2.500000e-01 : f32
      %119 = vector.broadcast %cst_84 : f32 to vector<1x16xf32>
      %120 = arith.mulf %118, %119 : vector<1x16xf32>
      %c17 = arith.constant 17 : index
      %c3_85 = arith.constant 3 : index
      %121 = vector.load %arg7[%c17, %c3_85] : memref<22x22xf32, #tpu.memory_space<vmem>>, vector<1x16xf32>
      tpu.vector_store %arg7[%c17, %c3_85], %120 {strides = array<i32>} : memref<22x22xf32, #tpu.memory_space<vmem>>, vector<1x16xf32>,
      %122 = vector.extract_strided_slice %24 {offsets = [1, 96], sizes = [1, 16], strides = [1, 1]} : vector<2x128xf32> to vector<1x16xf32>
      %c17_86 = arith.constant 17 : index
      %c3_87 = arith.constant 3 : index
      %123 = vector.load %arg8[%c17_86, %c3_87] : memref<22x22xf32, #tpu.memory_space<vmem>>, vector<1x16xf32>
      tpu.vector_store %arg8[%c17_86, %c3_87], %122 {strides = array<i32>} : memref<22x22xf32, #tpu.memory_space<vmem>>, vector<1x16xf32>,
      %124 = vector.extract_strided_slice %23 {offsets = [1, 112], sizes = [1, 16], strides = [1, 1]} : vector<2x128xf32> to vector<1x16xf32>
      %cst_88 = arith.constant 2.500000e-01 : f32
      %125 = vector.broadcast %cst_88 : f32 to vector<1x16xf32>
      %126 = arith.mulf %124, %125 : vector<1x16xf32>
      %c18 = arith.constant 18 : index
      %c3_89 = arith.constant 3 : index
      %127 = vector.load %arg7[%c18, %c3_89] : memref<22x22xf32, #tpu.memory_space<vmem>>, vector<1x16xf32>
      tpu.vector_store %arg7[%c18, %c3_89], %126 {strides = array<i32>} : memref<22x22xf32, #tpu.memory_space<vmem>>, vector<1x16xf32>,
      %128 = vector.extract_strided_slice %24 {offsets = [1, 112], sizes = [1, 16], strides = [1, 1]} : vector<2x128xf32> to vector<1x16xf32>
      %c18_90 = arith.constant 18 : index
      %c3_91 = arith.constant 3 : index
      %129 = vector.load %arg8[%c18_90, %c3_91] : memref<22x22xf32, #tpu.memory_space<vmem>>, vector<1x16xf32>
      tpu.vector_store %arg8[%c18_90, %c3_91], %128 {strides = array<i32>} : memref<22x22xf32, #tpu.memory_space<vmem>>, vector<1x16xf32>,
      %c0_92 = arith.constant 0 : index
      %c0_93 = arith.constant 0 : index
      %130 = vector.load %arg7[%c0_92, %c0_93] : memref<22x22xf32, #tpu.memory_space<vmem>>, vector<22x22xf32>
      %c0_94 = arith.constant 0 : index
      %c0_95 = arith.constant 0 : index
      %131 = vector.load %arg8[%c0_94, %c0_95] : memref<22x22xf32, #tpu.memory_space<vmem>>, vector<22x22xf32>
      %cst_96 = arith.constant 0.000000e+00 : f32
      %132 = vector.broadcast %cst_96 : f32 to vector<16x16xf32>
      %133 = vector.extract_strided_slice %130 {offsets = [0, 0], sizes = [22, 16], strides = [1, 1]} : vector<22x22xf32> to vector<22x16xf32>
      %134 = vector.extract_strided_slice %131 {offsets = [0, 0], sizes = [22, 16], strides = [1, 1]} : vector<22x22xf32> to vector<22x16xf32>
      %c0_97 = arith.constant 0 : index
      %135 = memref.load %arg2[%c0_97] : memref<98xf32, #tpu.memory_space<smem>>
      %c49 = arith.constant 49 : index
      %136 = memref.load %arg2[%c49] : memref<98xf32, #tpu.memory_space<smem>>
      %137 = vector.extract_strided_slice %133 {offsets = [0, 0], sizes = [16, 16], strides = [1, 1]} : vector<22x16xf32> to vector<16x16xf32>
      %138 = vector.broadcast %135 : f32 to vector<16x16xf32>
      %139 = arith.mulf %138, %137 : vector<16x16xf32>
      %140 = arith.addf %132, %139 : vector<16x16xf32>
      %141 = vector.extract_strided_slice %134 {offsets = [0, 0], sizes = [16, 16], strides = [1, 1]} : vector<22x16xf32> to vector<16x16xf32>
      %142 = vector.broadcast %136 : f32 to vector<16x16xf32>
      %143 = arith.mulf %142, %141 : vector<16x16xf32>
      %144 = arith.addf %140, %143 : vector<16x16xf32>
      %c7_98 = arith.constant 7 : index
      %145 = memref.load %arg2[%c7_98] : memref<98xf32, #tpu.memory_space<smem>>
      %c56 = arith.constant 56 : index
      %146 = memref.load %arg2[%c56] : memref<98xf32, #tpu.memory_space<smem>>
      %147 = vector.extract_strided_slice %133 {offsets = [1, 0], sizes = [16, 16], strides = [1, 1]} : vector<22x16xf32> to vector<16x16xf32>
      %148 = vector.broadcast %145 : f32 to vector<16x16xf32>
      %149 = arith.mulf %148, %147 : vector<16x16xf32>
      %150 = arith.addf %144, %149 : vector<16x16xf32>
      %151 = vector.extract_strided_slice %134 {offsets = [1, 0], sizes = [16, 16], strides = [1, 1]} : vector<22x16xf32> to vector<16x16xf32>
      %152 = vector.broadcast %146 : f32 to vector<16x16xf32>
      %153 = arith.mulf %152, %151 : vector<16x16xf32>
      %154 = arith.addf %150, %153 : vector<16x16xf32>
      %c14_99 = arith.constant 14 : index
      %155 = memref.load %arg2[%c14_99] : memref<98xf32, #tpu.memory_space<smem>>
      %c63 = arith.constant 63 : index
      %156 = memref.load %arg2[%c63] : memref<98xf32, #tpu.memory_space<smem>>
      %157 = vector.extract_strided_slice %133 {offsets = [2, 0], sizes = [16, 16], strides = [1, 1]} : vector<22x16xf32> to vector<16x16xf32>
      %158 = vector.broadcast %155 : f32 to vector<16x16xf32>
      %159 = arith.mulf %158, %157 : vector<16x16xf32>
      %160 = arith.addf %154, %159 : vector<16x16xf32>
      %161 = vector.extract_strided_slice %134 {offsets = [2, 0], sizes = [16, 16], strides = [1, 1]} : vector<22x16xf32> to vector<16x16xf32>
      %162 = vector.broadcast %156 : f32 to vector<16x16xf32>
      %163 = arith.mulf %162, %161 : vector<16x16xf32>
      %164 = arith.addf %160, %163 : vector<16x16xf32>
      %c21 = arith.constant 21 : index
      %165 = memref.load %arg2[%c21] : memref<98xf32, #tpu.memory_space<smem>>
      %c70 = arith.constant 70 : index
      %166 = memref.load %arg2[%c70] : memref<98xf32, #tpu.memory_space<smem>>
      %167 = vector.extract_strided_slice %133 {offsets = [3, 0], sizes = [16, 16], strides = [1, 1]} : vector<22x16xf32> to vector<16x16xf32>
      %168 = vector.broadcast %165 : f32 to vector<16x16xf32>
      %169 = arith.mulf %168, %167 : vector<16x16xf32>
      %170 = arith.addf %164, %169 : vector<16x16xf32>
      %171 = vector.extract_strided_slice %134 {offsets = [3, 0], sizes = [16, 16], strides = [1, 1]} : vector<22x16xf32> to vector<16x16xf32>
      %172 = vector.broadcast %166 : f32 to vector<16x16xf32>
      %173 = arith.mulf %172, %171 : vector<16x16xf32>
      %174 = arith.addf %170, %173 : vector<16x16xf32>
      %c28 = arith.constant 28 : index
      %175 = memref.load %arg2[%c28] : memref<98xf32, #tpu.memory_space<smem>>
      %c77 = arith.constant 77 : index
      %176 = memref.load %arg2[%c77] : memref<98xf32, #tpu.memory_space<smem>>
      %177 = vector.extract_strided_slice %133 {offsets = [4, 0], sizes = [16, 16], strides = [1, 1]} : vector<22x16xf32> to vector<16x16xf32>
      %178 = vector.broadcast %175 : f32 to vector<16x16xf32>
      %179 = arith.mulf %178, %177 : vector<16x16xf32>
      %180 = arith.addf %174, %179 : vector<16x16xf32>
      %181 = vector.extract_strided_slice %134 {offsets = [4, 0], sizes = [16, 16], strides = [1, 1]} : vector<22x16xf32> to vector<16x16xf32>
      %182 = vector.broadcast %176 : f32 to vector<16x16xf32>
      %183 = arith.mulf %182, %181 : vector<16x16xf32>
      %184 = arith.addf %180, %183 : vector<16x16xf32>
      %c35 = arith.constant 35 : index
      %185 = memref.load %arg2[%c35] : memref<98xf32, #tpu.memory_space<smem>>
      %c84 = arith.constant 84 : index
      %186 = memref.load %arg2[%c84] : memref<98xf32, #tpu.memory_space<smem>>
      %187 = vector.extract_strided_slice %133 {offsets = [5, 0], sizes = [16, 16], strides = [1, 1]} : vector<22x16xf32> to vector<16x16xf32>
      %188 = vector.broadcast %185 : f32 to vector<16x16xf32>
      %189 = arith.mulf %188, %187 : vector<16x16xf32>
      %190 = arith.addf %184, %189 : vector<16x16xf32>
      %191 = vector.extract_strided_slice %134 {offsets = [5, 0], sizes = [16, 16], strides = [1, 1]} : vector<22x16xf32> to vector<16x16xf32>
      %192 = vector.broadcast %186 : f32 to vector<16x16xf32>
      %193 = arith.mulf %192, %191 : vector<16x16xf32>
      %194 = arith.addf %190, %193 : vector<16x16xf32>
      %c42 = arith.constant 42 : index
      %195 = memref.load %arg2[%c42] : memref<98xf32, #tpu.memory_space<smem>>
      %c91 = arith.constant 91 : index
      %196 = memref.load %arg2[%c91] : memref<98xf32, #tpu.memory_space<smem>>
      %197 = vector.extract_strided_slice %133 {offsets = [6, 0], sizes = [16, 16], strides = [1, 1]} : vector<22x16xf32> to vector<16x16xf32>
      %198 = vector.broadcast %195 : f32 to vector<16x16xf32>
      %199 = arith.mulf %198, %197 : vector<16x16xf32>
      %200 = arith.addf %194, %199 : vector<16x16xf32>
      %201 = vector.extract_strided_slice %134 {offsets = [6, 0], sizes = [16, 16], strides = [1, 1]} : vector<22x16xf32> to vector<16x16xf32>
      %202 = vector.broadcast %196 : f32 to vector<16x16xf32>
      %203 = arith.mulf %202, %201 : vector<16x16xf32>
      %204 = arith.addf %200, %203 : vector<16x16xf32>
      %205 = vector.extract_strided_slice %130 {offsets = [0, 1], sizes = [22, 16], strides = [1, 1]} : vector<22x22xf32> to vector<22x16xf32>
      %206 = vector.extract_strided_slice %131 {offsets = [0, 1], sizes = [22, 16], strides = [1, 1]} : vector<22x22xf32> to vector<22x16xf32>
      %c1 = arith.constant 1 : index
      %207 = memref.load %arg2[%c1] : memref<98xf32, #tpu.memory_space<smem>>
      %c50 = arith.constant 50 : index
      %208 = memref.load %arg2[%c50] : memref<98xf32, #tpu.memory_space<smem>>
      %209 = vector.extract_strided_slice %205 {offsets = [0, 0], sizes = [16, 16], strides = [1, 1]} : vector<22x16xf32> to vector<16x16xf32>
      %210 = vector.broadcast %207 : f32 to vector<16x16xf32>
      %211 = arith.mulf %210, %209 : vector<16x16xf32>
      %212 = arith.addf %204, %211 : vector<16x16xf32>
      %213 = vector.extract_strided_slice %206 {offsets = [0, 0], sizes = [16, 16], strides = [1, 1]} : vector<22x16xf32> to vector<16x16xf32>
      %214 = vector.broadcast %208 : f32 to vector<16x16xf32>
      %215 = arith.mulf %214, %213 : vector<16x16xf32>
      %216 = arith.addf %212, %215 : vector<16x16xf32>
      %c8_100 = arith.constant 8 : index
      %217 = memref.load %arg2[%c8_100] : memref<98xf32, #tpu.memory_space<smem>>
      %c57 = arith.constant 57 : index
      %218 = memref.load %arg2[%c57] : memref<98xf32, #tpu.memory_space<smem>>
      %219 = vector.extract_strided_slice %205 {offsets = [1, 0], sizes = [16, 16], strides = [1, 1]} : vector<22x16xf32> to vector<16x16xf32>
      %220 = vector.broadcast %217 : f32 to vector<16x16xf32>
      %221 = arith.mulf %220, %219 : vector<16x16xf32>
      %222 = arith.addf %216, %221 : vector<16x16xf32>
      %223 = vector.extract_strided_slice %206 {offsets = [1, 0], sizes = [16, 16], strides = [1, 1]} : vector<22x16xf32> to vector<16x16xf32>
      %224 = vector.broadcast %218 : f32 to vector<16x16xf32>
      %225 = arith.mulf %224, %223 : vector<16x16xf32>
      %226 = arith.addf %222, %225 : vector<16x16xf32>
      %c15_101 = arith.constant 15 : index
      %227 = memref.load %arg2[%c15_101] : memref<98xf32, #tpu.memory_space<smem>>
      %c64 = arith.constant 64 : index
      %228 = memref.load %arg2[%c64] : memref<98xf32, #tpu.memory_space<smem>>
      %229 = vector.extract_strided_slice %205 {offsets = [2, 0], sizes = [16, 16], strides = [1, 1]} : vector<22x16xf32> to vector<16x16xf32>
      %230 = vector.broadcast %227 : f32 to vector<16x16xf32>
      %231 = arith.mulf %230, %229 : vector<16x16xf32>
      %232 = arith.addf %226, %231 : vector<16x16xf32>
      %233 = vector.extract_strided_slice %206 {offsets = [2, 0], sizes = [16, 16], strides = [1, 1]} : vector<22x16xf32> to vector<16x16xf32>
      %234 = vector.broadcast %228 : f32 to vector<16x16xf32>
      %235 = arith.mulf %234, %233 : vector<16x16xf32>
      %236 = arith.addf %232, %235 : vector<16x16xf32>
      %c22 = arith.constant 22 : index
      %237 = memref.load %arg2[%c22] : memref<98xf32, #tpu.memory_space<smem>>
      %c71 = arith.constant 71 : index
      %238 = memref.load %arg2[%c71] : memref<98xf32, #tpu.memory_space<smem>>
      %239 = vector.extract_strided_slice %205 {offsets = [3, 0], sizes = [16, 16], strides = [1, 1]} : vector<22x16xf32> to vector<16x16xf32>
      %240 = vector.broadcast %237 : f32 to vector<16x16xf32>
      %241 = arith.mulf %240, %239 : vector<16x16xf32>
      %242 = arith.addf %236, %241 : vector<16x16xf32>
      %243 = vector.extract_strided_slice %206 {offsets = [3, 0], sizes = [16, 16], strides = [1, 1]} : vector<22x16xf32> to vector<16x16xf32>
      %244 = vector.broadcast %238 : f32 to vector<16x16xf32>
      %245 = arith.mulf %244, %243 : vector<16x16xf32>
      %246 = arith.addf %242, %245 : vector<16x16xf32>
      %c29 = arith.constant 29 : index
      %247 = memref.load %arg2[%c29] : memref<98xf32, #tpu.memory_space<smem>>
      %c78 = arith.constant 78 : index
      %248 = memref.load %arg2[%c78] : memref<98xf32, #tpu.memory_space<smem>>
      %249 = vector.extract_strided_slice %205 {offsets = [4, 0], sizes = [16, 16], strides = [1, 1]} : vector<22x16xf32> to vector<16x16xf32>
      %250 = vector.broadcast %247 : f32 to vector<16x16xf32>
      %251 = arith.mulf %250, %249 : vector<16x16xf32>
      %252 = arith.addf %246, %251 : vector<16x16xf32>
      %253 = vector.extract_strided_slice %206 {offsets = [4, 0], sizes = [16, 16], strides = [1, 1]} : vector<22x16xf32> to vector<16x16xf32>
      %254 = vector.broadcast %248 : f32 to vector<16x16xf32>
      %255 = arith.mulf %254, %253 : vector<16x16xf32>
      %256 = arith.addf %252, %255 : vector<16x16xf32>
      %c36 = arith.constant 36 : index
      %257 = memref.load %arg2[%c36] : memref<98xf32, #tpu.memory_space<smem>>
      %c85 = arith.constant 85 : index
      %258 = memref.load %arg2[%c85] : memref<98xf32, #tpu.memory_space<smem>>
      %259 = vector.extract_strided_slice %205 {offsets = [5, 0], sizes = [16, 16], strides = [1, 1]} : vector<22x16xf32> to vector<16x16xf32>
      %260 = vector.broadcast %257 : f32 to vector<16x16xf32>
      %261 = arith.mulf %260, %259 : vector<16x16xf32>
      %262 = arith.addf %256, %261 : vector<16x16xf32>
      %263 = vector.extract_strided_slice %206 {offsets = [5, 0], sizes = [16, 16], strides = [1, 1]} : vector<22x16xf32> to vector<16x16xf32>
      %264 = vector.broadcast %258 : f32 to vector<16x16xf32>
      %265 = arith.mulf %264, %263 : vector<16x16xf32>
      %266 = arith.addf %262, %265 : vector<16x16xf32>
      %c43 = arith.constant 43 : index
      %267 = memref.load %arg2[%c43] : memref<98xf32, #tpu.memory_space<smem>>
      %c92 = arith.constant 92 : index
      %268 = memref.load %arg2[%c92] : memref<98xf32, #tpu.memory_space<smem>>
      %269 = vector.extract_strided_slice %205 {offsets = [6, 0], sizes = [16, 16], strides = [1, 1]} : vector<22x16xf32> to vector<16x16xf32>
      %270 = vector.broadcast %267 : f32 to vector<16x16xf32>
      %271 = arith.mulf %270, %269 : vector<16x16xf32>
      %272 = arith.addf %266, %271 : vector<16x16xf32>
      %273 = vector.extract_strided_slice %206 {offsets = [6, 0], sizes = [16, 16], strides = [1, 1]} : vector<22x16xf32> to vector<16x16xf32>
      %274 = vector.broadcast %268 : f32 to vector<16x16xf32>
      %275 = arith.mulf %274, %273 : vector<16x16xf32>
      %276 = arith.addf %272, %275 : vector<16x16xf32>
      %277 = vector.extract_strided_slice %130 {offsets = [0, 2], sizes = [22, 16], strides = [1, 1]} : vector<22x22xf32> to vector<22x16xf32>
      %278 = vector.extract_strided_slice %131 {offsets = [0, 2], sizes = [22, 16], strides = [1, 1]} : vector<22x22xf32> to vector<22x16xf32>
      %c2 = arith.constant 2 : index
      %279 = memref.load %arg2[%c2] : memref<98xf32, #tpu.memory_space<smem>>
      %c51 = arith.constant 51 : index
      %280 = memref.load %arg2[%c51] : memref<98xf32, #tpu.memory_space<smem>>
      %281 = vector.extract_strided_slice %277 {offsets = [0, 0], sizes = [16, 16], strides = [1, 1]} : vector<22x16xf32> to vector<16x16xf32>
      %282 = vector.broadcast %279 : f32 to vector<16x16xf32>
      %283 = arith.mulf %282, %281 : vector<16x16xf32>
      %284 = arith.addf %276, %283 : vector<16x16xf32>
      %285 = vector.extract_strided_slice %278 {offsets = [0, 0], sizes = [16, 16], strides = [1, 1]} : vector<22x16xf32> to vector<16x16xf32>
      %286 = vector.broadcast %280 : f32 to vector<16x16xf32>
      %287 = arith.mulf %286, %285 : vector<16x16xf32>
      %288 = arith.addf %284, %287 : vector<16x16xf32>
      %c9_102 = arith.constant 9 : index
      %289 = memref.load %arg2[%c9_102] : memref<98xf32, #tpu.memory_space<smem>>
      %c58 = arith.constant 58 : index
      %290 = memref.load %arg2[%c58] : memref<98xf32, #tpu.memory_space<smem>>
      %291 = vector.extract_strided_slice %277 {offsets = [1, 0], sizes = [16, 16], strides = [1, 1]} : vector<22x16xf32> to vector<16x16xf32>
      %292 = vector.broadcast %289 : f32 to vector<16x16xf32>
      %293 = arith.mulf %292, %291 : vector<16x16xf32>
      %294 = arith.addf %288, %293 : vector<16x16xf32>
      %295 = vector.extract_strided_slice %278 {offsets = [1, 0], sizes = [16, 16], strides = [1, 1]} : vector<22x16xf32> to vector<16x16xf32>
      %296 = vector.broadcast %290 : f32 to vector<16x16xf32>
      %297 = arith.mulf %296, %295 : vector<16x16xf32>
      %298 = arith.addf %294, %297 : vector<16x16xf32>
      %c16_103 = arith.constant 16 : index
      %299 = memref.load %arg2[%c16_103] : memref<98xf32, #tpu.memory_space<smem>>
      %c65 = arith.constant 65 : index
      %300 = memref.load %arg2[%c65] : memref<98xf32, #tpu.memory_space<smem>>
      %301 = vector.extract_strided_slice %277 {offsets = [2, 0], sizes = [16, 16], strides = [1, 1]} : vector<22x16xf32> to vector<16x16xf32>
      %302 = vector.broadcast %299 : f32 to vector<16x16xf32>
      %303 = arith.mulf %302, %301 : vector<16x16xf32>
      %304 = arith.addf %298, %303 : vector<16x16xf32>
      %305 = vector.extract_strided_slice %278 {offsets = [2, 0], sizes = [16, 16], strides = [1, 1]} : vector<22x16xf32> to vector<16x16xf32>
      %306 = vector.broadcast %300 : f32 to vector<16x16xf32>
      %307 = arith.mulf %306, %305 : vector<16x16xf32>
      %308 = arith.addf %304, %307 : vector<16x16xf32>
      %c23 = arith.constant 23 : index
      %309 = memref.load %arg2[%c23] : memref<98xf32, #tpu.memory_space<smem>>
      %c72 = arith.constant 72 : index
      %310 = memref.load %arg2[%c72] : memref<98xf32, #tpu.memory_space<smem>>
      %311 = vector.extract_strided_slice %277 {offsets = [3, 0], sizes = [16, 16], strides = [1, 1]} : vector<22x16xf32> to vector<16x16xf32>
      %312 = vector.broadcast %309 : f32 to vector<16x16xf32>
      %313 = arith.mulf %312, %311 : vector<16x16xf32>
      %314 = arith.addf %308, %313 : vector<16x16xf32>
      %315 = vector.extract_strided_slice %278 {offsets = [3, 0], sizes = [16, 16], strides = [1, 1]} : vector<22x16xf32> to vector<16x16xf32>
      %316 = vector.broadcast %310 : f32 to vector<16x16xf32>
      %317 = arith.mulf %316, %315 : vector<16x16xf32>
      %318 = arith.addf %314, %317 : vector<16x16xf32>
      %c30 = arith.constant 30 : index
      %319 = memref.load %arg2[%c30] : memref<98xf32, #tpu.memory_space<smem>>
      %c79 = arith.constant 79 : index
      %320 = memref.load %arg2[%c79] : memref<98xf32, #tpu.memory_space<smem>>
      %321 = vector.extract_strided_slice %277 {offsets = [4, 0], sizes = [16, 16], strides = [1, 1]} : vector<22x16xf32> to vector<16x16xf32>
      %322 = vector.broadcast %319 : f32 to vector<16x16xf32>
      %323 = arith.mulf %322, %321 : vector<16x16xf32>
      %324 = arith.addf %318, %323 : vector<16x16xf32>
      %325 = vector.extract_strided_slice %278 {offsets = [4, 0], sizes = [16, 16], strides = [1, 1]} : vector<22x16xf32> to vector<16x16xf32>
      %326 = vector.broadcast %320 : f32 to vector<16x16xf32>
      %327 = arith.mulf %326, %325 : vector<16x16xf32>
      %328 = arith.addf %324, %327 : vector<16x16xf32>
      %c37 = arith.constant 37 : index
      %329 = memref.load %arg2[%c37] : memref<98xf32, #tpu.memory_space<smem>>
      %c86 = arith.constant 86 : index
      %330 = memref.load %arg2[%c86] : memref<98xf32, #tpu.memory_space<smem>>
      %331 = vector.extract_strided_slice %277 {offsets = [5, 0], sizes = [16, 16], strides = [1, 1]} : vector<22x16xf32> to vector<16x16xf32>
      %332 = vector.broadcast %329 : f32 to vector<16x16xf32>
      %333 = arith.mulf %332, %331 : vector<16x16xf32>
      %334 = arith.addf %328, %333 : vector<16x16xf32>
      %335 = vector.extract_strided_slice %278 {offsets = [5, 0], sizes = [16, 16], strides = [1, 1]} : vector<22x16xf32> to vector<16x16xf32>
      %336 = vector.broadcast %330 : f32 to vector<16x16xf32>
      %337 = arith.mulf %336, %335 : vector<16x16xf32>
      %338 = arith.addf %334, %337 : vector<16x16xf32>
      %c44 = arith.constant 44 : index
      %339 = memref.load %arg2[%c44] : memref<98xf32, #tpu.memory_space<smem>>
      %c93 = arith.constant 93 : index
      %340 = memref.load %arg2[%c93] : memref<98xf32, #tpu.memory_space<smem>>
      %341 = vector.extract_strided_slice %277 {offsets = [6, 0], sizes = [16, 16], strides = [1, 1]} : vector<22x16xf32> to vector<16x16xf32>
      %342 = vector.broadcast %339 : f32 to vector<16x16xf32>
      %343 = arith.mulf %342, %341 : vector<16x16xf32>
      %344 = arith.addf %338, %343 : vector<16x16xf32>
      %345 = vector.extract_strided_slice %278 {offsets = [6, 0], sizes = [16, 16], strides = [1, 1]} : vector<22x16xf32> to vector<16x16xf32>
      %346 = vector.broadcast %340 : f32 to vector<16x16xf32>
      %347 = arith.mulf %346, %345 : vector<16x16xf32>
      %348 = arith.addf %344, %347 : vector<16x16xf32>
      %349 = vector.extract_strided_slice %130 {offsets = [0, 3], sizes = [22, 16], strides = [1, 1]} : vector<22x22xf32> to vector<22x16xf32>
      %350 = vector.extract_strided_slice %131 {offsets = [0, 3], sizes = [22, 16], strides = [1, 1]} : vector<22x22xf32> to vector<22x16xf32>
      %c3_104 = arith.constant 3 : index
      %351 = memref.load %arg2[%c3_104] : memref<98xf32, #tpu.memory_space<smem>>
      %c52 = arith.constant 52 : index
      %352 = memref.load %arg2[%c52] : memref<98xf32, #tpu.memory_space<smem>>
      %353 = vector.extract_strided_slice %349 {offsets = [0, 0], sizes = [16, 16], strides = [1, 1]} : vector<22x16xf32> to vector<16x16xf32>
      %354 = vector.broadcast %351 : f32 to vector<16x16xf32>
      %355 = arith.mulf %354, %353 : vector<16x16xf32>
      %356 = arith.addf %348, %355 : vector<16x16xf32>
      %357 = vector.extract_strided_slice %350 {offsets = [0, 0], sizes = [16, 16], strides = [1, 1]} : vector<22x16xf32> to vector<16x16xf32>
      %358 = vector.broadcast %352 : f32 to vector<16x16xf32>
      %359 = arith.mulf %358, %357 : vector<16x16xf32>
      %360 = arith.addf %356, %359 : vector<16x16xf32>
      %c10_105 = arith.constant 10 : index
      %361 = memref.load %arg2[%c10_105] : memref<98xf32, #tpu.memory_space<smem>>
      %c59 = arith.constant 59 : index
      %362 = memref.load %arg2[%c59] : memref<98xf32, #tpu.memory_space<smem>>
      %363 = vector.extract_strided_slice %349 {offsets = [1, 0], sizes = [16, 16], strides = [1, 1]} : vector<22x16xf32> to vector<16x16xf32>
      %364 = vector.broadcast %361 : f32 to vector<16x16xf32>
      %365 = arith.mulf %364, %363 : vector<16x16xf32>
      %366 = arith.addf %360, %365 : vector<16x16xf32>
      %367 = vector.extract_strided_slice %350 {offsets = [1, 0], sizes = [16, 16], strides = [1, 1]} : vector<22x16xf32> to vector<16x16xf32>
      %368 = vector.broadcast %362 : f32 to vector<16x16xf32>
      %369 = arith.mulf %368, %367 : vector<16x16xf32>
      %370 = arith.addf %366, %369 : vector<16x16xf32>
      %c17_106 = arith.constant 17 : index
      %371 = memref.load %arg2[%c17_106] : memref<98xf32, #tpu.memory_space<smem>>
      %c66 = arith.constant 66 : index
      %372 = memref.load %arg2[%c66] : memref<98xf32, #tpu.memory_space<smem>>
      %373 = vector.extract_strided_slice %349 {offsets = [2, 0], sizes = [16, 16], strides = [1, 1]} : vector<22x16xf32> to vector<16x16xf32>
      %374 = vector.broadcast %371 : f32 to vector<16x16xf32>
      %375 = arith.mulf %374, %373 : vector<16x16xf32>
      %376 = arith.addf %370, %375 : vector<16x16xf32>
      %377 = vector.extract_strided_slice %350 {offsets = [2, 0], sizes = [16, 16], strides = [1, 1]} : vector<22x16xf32> to vector<16x16xf32>
      %378 = vector.broadcast %372 : f32 to vector<16x16xf32>
      %379 = arith.mulf %378, %377 : vector<16x16xf32>
      %380 = arith.addf %376, %379 : vector<16x16xf32>
      %c24 = arith.constant 24 : index
      %381 = memref.load %arg2[%c24] : memref<98xf32, #tpu.memory_space<smem>>
      %c73 = arith.constant 73 : index
      %382 = memref.load %arg2[%c73] : memref<98xf32, #tpu.memory_space<smem>>
      %383 = vector.extract_strided_slice %349 {offsets = [3, 0], sizes = [16, 16], strides = [1, 1]} : vector<22x16xf32> to vector<16x16xf32>
      %384 = vector.broadcast %381 : f32 to vector<16x16xf32>
      %385 = arith.mulf %384, %383 : vector<16x16xf32>
      %386 = arith.addf %380, %385 : vector<16x16xf32>
      %387 = vector.extract_strided_slice %350 {offsets = [3, 0], sizes = [16, 16], strides = [1, 1]} : vector<22x16xf32> to vector<16x16xf32>
      %388 = vector.broadcast %382 : f32 to vector<16x16xf32>
      %389 = arith.mulf %388, %387 : vector<16x16xf32>
      %390 = arith.addf %386, %389 : vector<16x16xf32>
      %c31 = arith.constant 31 : index
      %391 = memref.load %arg2[%c31] : memref<98xf32, #tpu.memory_space<smem>>
      %c80 = arith.constant 80 : index
      %392 = memref.load %arg2[%c80] : memref<98xf32, #tpu.memory_space<smem>>
      %393 = vector.extract_strided_slice %349 {offsets = [4, 0], sizes = [16, 16], strides = [1, 1]} : vector<22x16xf32> to vector<16x16xf32>
      %394 = vector.broadcast %391 : f32 to vector<16x16xf32>
      %395 = arith.mulf %394, %393 : vector<16x16xf32>
      %396 = arith.addf %390, %395 : vector<16x16xf32>
      %397 = vector.extract_strided_slice %350 {offsets = [4, 0], sizes = [16, 16], strides = [1, 1]} : vector<22x16xf32> to vector<16x16xf32>
      %398 = vector.broadcast %392 : f32 to vector<16x16xf32>
      %399 = arith.mulf %398, %397 : vector<16x16xf32>
      %400 = arith.addf %396, %399 : vector<16x16xf32>
      %c38 = arith.constant 38 : index
      %401 = memref.load %arg2[%c38] : memref<98xf32, #tpu.memory_space<smem>>
      %c87 = arith.constant 87 : index
      %402 = memref.load %arg2[%c87] : memref<98xf32, #tpu.memory_space<smem>>
      %403 = vector.extract_strided_slice %349 {offsets = [5, 0], sizes = [16, 16], strides = [1, 1]} : vector<22x16xf32> to vector<16x16xf32>
      %404 = vector.broadcast %401 : f32 to vector<16x16xf32>
      %405 = arith.mulf %404, %403 : vector<16x16xf32>
      %406 = arith.addf %400, %405 : vector<16x16xf32>
      %407 = vector.extract_strided_slice %350 {offsets = [5, 0], sizes = [16, 16], strides = [1, 1]} : vector<22x16xf32> to vector<16x16xf32>
      %408 = vector.broadcast %402 : f32 to vector<16x16xf32>
      %409 = arith.mulf %408, %407 : vector<16x16xf32>
      %410 = arith.addf %406, %409 : vector<16x16xf32>
      %c45 = arith.constant 45 : index
      %411 = memref.load %arg2[%c45] : memref<98xf32, #tpu.memory_space<smem>>
      %c94 = arith.constant 94 : index
      %412 = memref.load %arg2[%c94] : memref<98xf32, #tpu.memory_space<smem>>
      %413 = vector.extract_strided_slice %349 {offsets = [6, 0], sizes = [16, 16], strides = [1, 1]} : vector<22x16xf32> to vector<16x16xf32>
      %414 = vector.broadcast %411 : f32 to vector<16x16xf32>
      %415 = arith.mulf %414, %413 : vector<16x16xf32>
      %416 = arith.addf %410, %415 : vector<16x16xf32>
      %417 = vector.extract_strided_slice %350 {offsets = [6, 0], sizes = [16, 16], strides = [1, 1]} : vector<22x16xf32> to vector<16x16xf32>
      %418 = vector.broadcast %412 : f32 to vector<16x16xf32>
      %419 = arith.mulf %418, %417 : vector<16x16xf32>
      %420 = arith.addf %416, %419 : vector<16x16xf32>
      %421 = vector.extract_strided_slice %130 {offsets = [0, 4], sizes = [22, 16], strides = [1, 1]} : vector<22x22xf32> to vector<22x16xf32>
      %422 = vector.extract_strided_slice %131 {offsets = [0, 4], sizes = [22, 16], strides = [1, 1]} : vector<22x22xf32> to vector<22x16xf32>
      %c4_107 = arith.constant 4 : index
      %423 = memref.load %arg2[%c4_107] : memref<98xf32, #tpu.memory_space<smem>>
      %c53 = arith.constant 53 : index
      %424 = memref.load %arg2[%c53] : memref<98xf32, #tpu.memory_space<smem>>
      %425 = vector.extract_strided_slice %421 {offsets = [0, 0], sizes = [16, 16], strides = [1, 1]} : vector<22x16xf32> to vector<16x16xf32>
      %426 = vector.broadcast %423 : f32 to vector<16x16xf32>
      %427 = arith.mulf %426, %425 : vector<16x16xf32>
      %428 = arith.addf %420, %427 : vector<16x16xf32>
      %429 = vector.extract_strided_slice %422 {offsets = [0, 0], sizes = [16, 16], strides = [1, 1]} : vector<22x16xf32> to vector<16x16xf32>
      %430 = vector.broadcast %424 : f32 to vector<16x16xf32>
      %431 = arith.mulf %430, %429 : vector<16x16xf32>
      %432 = arith.addf %428, %431 : vector<16x16xf32>
      %c11_108 = arith.constant 11 : index
      %433 = memref.load %arg2[%c11_108] : memref<98xf32, #tpu.memory_space<smem>>
      %c60 = arith.constant 60 : index
      %434 = memref.load %arg2[%c60] : memref<98xf32, #tpu.memory_space<smem>>
      %435 = vector.extract_strided_slice %421 {offsets = [1, 0], sizes = [16, 16], strides = [1, 1]} : vector<22x16xf32> to vector<16x16xf32>
      %436 = vector.broadcast %433 : f32 to vector<16x16xf32>
      %437 = arith.mulf %436, %435 : vector<16x16xf32>
      %438 = arith.addf %432, %437 : vector<16x16xf32>
      %439 = vector.extract_strided_slice %422 {offsets = [1, 0], sizes = [16, 16], strides = [1, 1]} : vector<22x16xf32> to vector<16x16xf32>
      %440 = vector.broadcast %434 : f32 to vector<16x16xf32>
      %441 = arith.mulf %440, %439 : vector<16x16xf32>
      %442 = arith.addf %438, %441 : vector<16x16xf32>
      %c18_109 = arith.constant 18 : index
      %443 = memref.load %arg2[%c18_109] : memref<98xf32, #tpu.memory_space<smem>>
      %c67 = arith.constant 67 : index
      %444 = memref.load %arg2[%c67] : memref<98xf32, #tpu.memory_space<smem>>
      %445 = vector.extract_strided_slice %421 {offsets = [2, 0], sizes = [16, 16], strides = [1, 1]} : vector<22x16xf32> to vector<16x16xf32>
      %446 = vector.broadcast %443 : f32 to vector<16x16xf32>
      %447 = arith.mulf %446, %445 : vector<16x16xf32>
      %448 = arith.addf %442, %447 : vector<16x16xf32>
      %449 = vector.extract_strided_slice %422 {offsets = [2, 0], sizes = [16, 16], strides = [1, 1]} : vector<22x16xf32> to vector<16x16xf32>
      %450 = vector.broadcast %444 : f32 to vector<16x16xf32>
      %451 = arith.mulf %450, %449 : vector<16x16xf32>
      %452 = arith.addf %448, %451 : vector<16x16xf32>
      %c25 = arith.constant 25 : index
      %453 = memref.load %arg2[%c25] : memref<98xf32, #tpu.memory_space<smem>>
      %c74 = arith.constant 74 : index
      %454 = memref.load %arg2[%c74] : memref<98xf32, #tpu.memory_space<smem>>
      %455 = vector.extract_strided_slice %421 {offsets = [3, 0], sizes = [16, 16], strides = [1, 1]} : vector<22x16xf32> to vector<16x16xf32>
      %456 = vector.broadcast %453 : f32 to vector<16x16xf32>
      %457 = arith.mulf %456, %455 : vector<16x16xf32>
      %458 = arith.addf %452, %457 : vector<16x16xf32>
      %459 = vector.extract_strided_slice %422 {offsets = [3, 0], sizes = [16, 16], strides = [1, 1]} : vector<22x16xf32> to vector<16x16xf32>
      %460 = vector.broadcast %454 : f32 to vector<16x16xf32>
      %461 = arith.mulf %460, %459 : vector<16x16xf32>
      %462 = arith.addf %458, %461 : vector<16x16xf32>
      %c32 = arith.constant 32 : index
      %463 = memref.load %arg2[%c32] : memref<98xf32, #tpu.memory_space<smem>>
      %c81 = arith.constant 81 : index
      %464 = memref.load %arg2[%c81] : memref<98xf32, #tpu.memory_space<smem>>
      %465 = vector.extract_strided_slice %421 {offsets = [4, 0], sizes = [16, 16], strides = [1, 1]} : vector<22x16xf32> to vector<16x16xf32>
      %466 = vector.broadcast %463 : f32 to vector<16x16xf32>
      %467 = arith.mulf %466, %465 : vector<16x16xf32>
      %468 = arith.addf %462, %467 : vector<16x16xf32>
      %469 = vector.extract_strided_slice %422 {offsets = [4, 0], sizes = [16, 16], strides = [1, 1]} : vector<22x16xf32> to vector<16x16xf32>
      %470 = vector.broadcast %464 : f32 to vector<16x16xf32>
      %471 = arith.mulf %470, %469 : vector<16x16xf32>
      %472 = arith.addf %468, %471 : vector<16x16xf32>
      %c39 = arith.constant 39 : index
      %473 = memref.load %arg2[%c39] : memref<98xf32, #tpu.memory_space<smem>>
      %c88 = arith.constant 88 : index
      %474 = memref.load %arg2[%c88] : memref<98xf32, #tpu.memory_space<smem>>
      %475 = vector.extract_strided_slice %421 {offsets = [5, 0], sizes = [16, 16], strides = [1, 1]} : vector<22x16xf32> to vector<16x16xf32>
      %476 = vector.broadcast %473 : f32 to vector<16x16xf32>
      %477 = arith.mulf %476, %475 : vector<16x16xf32>
      %478 = arith.addf %472, %477 : vector<16x16xf32>
      %479 = vector.extract_strided_slice %422 {offsets = [5, 0], sizes = [16, 16], strides = [1, 1]} : vector<22x16xf32> to vector<16x16xf32>
      %480 = vector.broadcast %474 : f32 to vector<16x16xf32>
      %481 = arith.mulf %480, %479 : vector<16x16xf32>
      %482 = arith.addf %478, %481 : vector<16x16xf32>
      %c46 = arith.constant 46 : index
      %483 = memref.load %arg2[%c46] : memref<98xf32, #tpu.memory_space<smem>>
      %c95 = arith.constant 95 : index
      %484 = memref.load %arg2[%c95] : memref<98xf32, #tpu.memory_space<smem>>
      %485 = vector.extract_strided_slice %421 {offsets = [6, 0], sizes = [16, 16], strides = [1, 1]} : vector<22x16xf32> to vector<16x16xf32>
      %486 = vector.broadcast %483 : f32 to vector<16x16xf32>
      %487 = arith.mulf %486, %485 : vector<16x16xf32>
      %488 = arith.addf %482, %487 : vector<16x16xf32>
      %489 = vector.extract_strided_slice %422 {offsets = [6, 0], sizes = [16, 16], strides = [1, 1]} : vector<22x16xf32> to vector<16x16xf32>
      %490 = vector.broadcast %484 : f32 to vector<16x16xf32>
      %491 = arith.mulf %490, %489 : vector<16x16xf32>
      %492 = arith.addf %488, %491 : vector<16x16xf32>
      %493 = vector.extract_strided_slice %130 {offsets = [0, 5], sizes = [22, 16], strides = [1, 1]} : vector<22x22xf32> to vector<22x16xf32>
      %494 = vector.extract_strided_slice %131 {offsets = [0, 5], sizes = [22, 16], strides = [1, 1]} : vector<22x22xf32> to vector<22x16xf32>
      %c5_110 = arith.constant 5 : index
      %495 = memref.load %arg2[%c5_110] : memref<98xf32, #tpu.memory_space<smem>>
      %c54 = arith.constant 54 : index
      %496 = memref.load %arg2[%c54] : memref<98xf32, #tpu.memory_space<smem>>
      %497 = vector.extract_strided_slice %493 {offsets = [0, 0], sizes = [16, 16], strides = [1, 1]} : vector<22x16xf32> to vector<16x16xf32>
      %498 = vector.broadcast %495 : f32 to vector<16x16xf32>
      %499 = arith.mulf %498, %497 : vector<16x16xf32>
      %500 = arith.addf %492, %499 : vector<16x16xf32>
      %501 = vector.extract_strided_slice %494 {offsets = [0, 0], sizes = [16, 16], strides = [1, 1]} : vector<22x16xf32> to vector<16x16xf32>
      %502 = vector.broadcast %496 : f32 to vector<16x16xf32>
      %503 = arith.mulf %502, %501 : vector<16x16xf32>
      %504 = arith.addf %500, %503 : vector<16x16xf32>
      %c12_111 = arith.constant 12 : index
      %505 = memref.load %arg2[%c12_111] : memref<98xf32, #tpu.memory_space<smem>>
      %c61 = arith.constant 61 : index
      %506 = memref.load %arg2[%c61] : memref<98xf32, #tpu.memory_space<smem>>
      %507 = vector.extract_strided_slice %493 {offsets = [1, 0], sizes = [16, 16], strides = [1, 1]} : vector<22x16xf32> to vector<16x16xf32>
      %508 = vector.broadcast %505 : f32 to vector<16x16xf32>
      %509 = arith.mulf %508, %507 : vector<16x16xf32>
      %510 = arith.addf %504, %509 : vector<16x16xf32>
      %511 = vector.extract_strided_slice %494 {offsets = [1, 0], sizes = [16, 16], strides = [1, 1]} : vector<22x16xf32> to vector<16x16xf32>
      %512 = vector.broadcast %506 : f32 to vector<16x16xf32>
      %513 = arith.mulf %512, %511 : vector<16x16xf32>
      %514 = arith.addf %510, %513 : vector<16x16xf32>
      %c19 = arith.constant 19 : index
      %515 = memref.load %arg2[%c19] : memref<98xf32, #tpu.memory_space<smem>>
      %c68 = arith.constant 68 : index
      %516 = memref.load %arg2[%c68] : memref<98xf32, #tpu.memory_space<smem>>
      %517 = vector.extract_strided_slice %493 {offsets = [2, 0], sizes = [16, 16], strides = [1, 1]} : vector<22x16xf32> to vector<16x16xf32>
      %518 = vector.broadcast %515 : f32 to vector<16x16xf32>
      %519 = arith.mulf %518, %517 : vector<16x16xf32>
      %520 = arith.addf %514, %519 : vector<16x16xf32>
      %521 = vector.extract_strided_slice %494 {offsets = [2, 0], sizes = [16, 16], strides = [1, 1]} : vector<22x16xf32> to vector<16x16xf32>
      %522 = vector.broadcast %516 : f32 to vector<16x16xf32>
      %523 = arith.mulf %522, %521 : vector<16x16xf32>
      %524 = arith.addf %520, %523 : vector<16x16xf32>
      %c26 = arith.constant 26 : index
      %525 = memref.load %arg2[%c26] : memref<98xf32, #tpu.memory_space<smem>>
      %c75 = arith.constant 75 : index
      %526 = memref.load %arg2[%c75] : memref<98xf32, #tpu.memory_space<smem>>
      %527 = vector.extract_strided_slice %493 {offsets = [3, 0], sizes = [16, 16], strides = [1, 1]} : vector<22x16xf32> to vector<16x16xf32>
      %528 = vector.broadcast %525 : f32 to vector<16x16xf32>
      %529 = arith.mulf %528, %527 : vector<16x16xf32>
      %530 = arith.addf %524, %529 : vector<16x16xf32>
      %531 = vector.extract_strided_slice %494 {offsets = [3, 0], sizes = [16, 16], strides = [1, 1]} : vector<22x16xf32> to vector<16x16xf32>
      %532 = vector.broadcast %526 : f32 to vector<16x16xf32>
      %533 = arith.mulf %532, %531 : vector<16x16xf32>
      %534 = arith.addf %530, %533 : vector<16x16xf32>
      %c33 = arith.constant 33 : index
      %535 = memref.load %arg2[%c33] : memref<98xf32, #tpu.memory_space<smem>>
      %c82 = arith.constant 82 : index
      %536 = memref.load %arg2[%c82] : memref<98xf32, #tpu.memory_space<smem>>
      %537 = vector.extract_strided_slice %493 {offsets = [4, 0], sizes = [16, 16], strides = [1, 1]} : vector<22x16xf32> to vector<16x16xf32>
      %538 = vector.broadcast %535 : f32 to vector<16x16xf32>
      %539 = arith.mulf %538, %537 : vector<16x16xf32>
      %540 = arith.addf %534, %539 : vector<16x16xf32>
      %541 = vector.extract_strided_slice %494 {offsets = [4, 0], sizes = [16, 16], strides = [1, 1]} : vector<22x16xf32> to vector<16x16xf32>
      %542 = vector.broadcast %536 : f32 to vector<16x16xf32>
      %543 = arith.mulf %542, %541 : vector<16x16xf32>
      %544 = arith.addf %540, %543 : vector<16x16xf32>
      %c40 = arith.constant 40 : index
      %545 = memref.load %arg2[%c40] : memref<98xf32, #tpu.memory_space<smem>>
      %c89 = arith.constant 89 : index
      %546 = memref.load %arg2[%c89] : memref<98xf32, #tpu.memory_space<smem>>
      %547 = vector.extract_strided_slice %493 {offsets = [5, 0], sizes = [16, 16], strides = [1, 1]} : vector<22x16xf32> to vector<16x16xf32>
      %548 = vector.broadcast %545 : f32 to vector<16x16xf32>
      %549 = arith.mulf %548, %547 : vector<16x16xf32>
      %550 = arith.addf %544, %549 : vector<16x16xf32>
      %551 = vector.extract_strided_slice %494 {offsets = [5, 0], sizes = [16, 16], strides = [1, 1]} : vector<22x16xf32> to vector<16x16xf32>
      %552 = vector.broadcast %546 : f32 to vector<16x16xf32>
      %553 = arith.mulf %552, %551 : vector<16x16xf32>
      %554 = arith.addf %550, %553 : vector<16x16xf32>
      %c47 = arith.constant 47 : index
      %555 = memref.load %arg2[%c47] : memref<98xf32, #tpu.memory_space<smem>>
      %c96 = arith.constant 96 : index
      %556 = memref.load %arg2[%c96] : memref<98xf32, #tpu.memory_space<smem>>
      %557 = vector.extract_strided_slice %493 {offsets = [6, 0], sizes = [16, 16], strides = [1, 1]} : vector<22x16xf32> to vector<16x16xf32>
      %558 = vector.broadcast %555 : f32 to vector<16x16xf32>
      %559 = arith.mulf %558, %557 : vector<16x16xf32>
      %560 = arith.addf %554, %559 : vector<16x16xf32>
      %561 = vector.extract_strided_slice %494 {offsets = [6, 0], sizes = [16, 16], strides = [1, 1]} : vector<22x16xf32> to vector<16x16xf32>
      %562 = vector.broadcast %556 : f32 to vector<16x16xf32>
      %563 = arith.mulf %562, %561 : vector<16x16xf32>
      %564 = arith.addf %560, %563 : vector<16x16xf32>
      %565 = vector.extract_strided_slice %130 {offsets = [0, 6], sizes = [22, 16], strides = [1, 1]} : vector<22x22xf32> to vector<22x16xf32>
      %566 = vector.extract_strided_slice %131 {offsets = [0, 6], sizes = [22, 16], strides = [1, 1]} : vector<22x22xf32> to vector<22x16xf32>
      %c6_112 = arith.constant 6 : index
      %567 = memref.load %arg2[%c6_112] : memref<98xf32, #tpu.memory_space<smem>>
      %c55 = arith.constant 55 : index
      %568 = memref.load %arg2[%c55] : memref<98xf32, #tpu.memory_space<smem>>
      %569 = vector.extract_strided_slice %565 {offsets = [0, 0], sizes = [16, 16], strides = [1, 1]} : vector<22x16xf32> to vector<16x16xf32>
      %570 = vector.broadcast %567 : f32 to vector<16x16xf32>
      %571 = arith.mulf %570, %569 : vector<16x16xf32>
      %572 = arith.addf %564, %571 : vector<16x16xf32>
      %573 = vector.extract_strided_slice %566 {offsets = [0, 0], sizes = [16, 16], strides = [1, 1]} : vector<22x16xf32> to vector<16x16xf32>
      %574 = vector.broadcast %568 : f32 to vector<16x16xf32>
      %575 = arith.mulf %574, %573 : vector<16x16xf32>
      %576 = arith.addf %572, %575 : vector<16x16xf32>
      %c13_113 = arith.constant 13 : index
      %577 = memref.load %arg2[%c13_113] : memref<98xf32, #tpu.memory_space<smem>>
      %c62 = arith.constant 62 : index
      %578 = memref.load %arg2[%c62] : memref<98xf32, #tpu.memory_space<smem>>
      %579 = vector.extract_strided_slice %565 {offsets = [1, 0], sizes = [16, 16], strides = [1, 1]} : vector<22x16xf32> to vector<16x16xf32>
      %580 = vector.broadcast %577 : f32 to vector<16x16xf32>
      %581 = arith.mulf %580, %579 : vector<16x16xf32>
      %582 = arith.addf %576, %581 : vector<16x16xf32>
      %583 = vector.extract_strided_slice %566 {offsets = [1, 0], sizes = [16, 16], strides = [1, 1]} : vector<22x16xf32> to vector<16x16xf32>
      %584 = vector.broadcast %578 : f32 to vector<16x16xf32>
      %585 = arith.mulf %584, %583 : vector<16x16xf32>
      %586 = arith.addf %582, %585 : vector<16x16xf32>
      %c20 = arith.constant 20 : index
      %587 = memref.load %arg2[%c20] : memref<98xf32, #tpu.memory_space<smem>>
      %c69 = arith.constant 69 : index
      %588 = memref.load %arg2[%c69] : memref<98xf32, #tpu.memory_space<smem>>
      %589 = vector.extract_strided_slice %565 {offsets = [2, 0], sizes = [16, 16], strides = [1, 1]} : vector<22x16xf32> to vector<16x16xf32>
      %590 = vector.broadcast %587 : f32 to vector<16x16xf32>
      %591 = arith.mulf %590, %589 : vector<16x16xf32>
      %592 = arith.addf %586, %591 : vector<16x16xf32>
      %593 = vector.extract_strided_slice %566 {offsets = [2, 0], sizes = [16, 16], strides = [1, 1]} : vector<22x16xf32> to vector<16x16xf32>
      %594 = vector.broadcast %588 : f32 to vector<16x16xf32>
      %595 = arith.mulf %594, %593 : vector<16x16xf32>
      %596 = arith.addf %592, %595 : vector<16x16xf32>
      %c27 = arith.constant 27 : index
      %597 = memref.load %arg2[%c27] : memref<98xf32, #tpu.memory_space<smem>>
      %c76 = arith.constant 76 : index
      %598 = memref.load %arg2[%c76] : memref<98xf32, #tpu.memory_space<smem>>
      %599 = vector.extract_strided_slice %565 {offsets = [3, 0], sizes = [16, 16], strides = [1, 1]} : vector<22x16xf32> to vector<16x16xf32>
      %600 = vector.broadcast %597 : f32 to vector<16x16xf32>
      %601 = arith.mulf %600, %599 : vector<16x16xf32>
      %602 = arith.addf %596, %601 : vector<16x16xf32>
      %603 = vector.extract_strided_slice %566 {offsets = [3, 0], sizes = [16, 16], strides = [1, 1]} : vector<22x16xf32> to vector<16x16xf32>
      %604 = vector.broadcast %598 : f32 to vector<16x16xf32>
      %605 = arith.mulf %604, %603 : vector<16x16xf32>
      %606 = arith.addf %602, %605 : vector<16x16xf32>
      %c34 = arith.constant 34 : index
      %607 = memref.load %arg2[%c34] : memref<98xf32, #tpu.memory_space<smem>>
      %c83 = arith.constant 83 : index
      %608 = memref.load %arg2[%c83] : memref<98xf32, #tpu.memory_space<smem>>
      %609 = vector.extract_strided_slice %565 {offsets = [4, 0], sizes = [16, 16], strides = [1, 1]} : vector<22x16xf32> to vector<16x16xf32>
      %610 = vector.broadcast %607 : f32 to vector<16x16xf32>
      %611 = arith.mulf %610, %609 : vector<16x16xf32>
      %612 = arith.addf %606, %611 : vector<16x16xf32>
      %613 = vector.extract_strided_slice %566 {offsets = [4, 0], sizes = [16, 16], strides = [1, 1]} : vector<22x16xf32> to vector<16x16xf32>
      %614 = vector.broadcast %608 : f32 to vector<16x16xf32>
      %615 = arith.mulf %614, %613 : vector<16x16xf32>
      %616 = arith.addf %612, %615 : vector<16x16xf32>
      %c41 = arith.constant 41 : index
      %617 = memref.load %arg2[%c41] : memref<98xf32, #tpu.memory_space<smem>>
      %c90 = arith.constant 90 : index
      %618 = memref.load %arg2[%c90] : memref<98xf32, #tpu.memory_space<smem>>
      %619 = vector.extract_strided_slice %565 {offsets = [5, 0], sizes = [16, 16], strides = [1, 1]} : vector<22x16xf32> to vector<16x16xf32>
      %620 = vector.broadcast %617 : f32 to vector<16x16xf32>
      %621 = arith.mulf %620, %619 : vector<16x16xf32>
      %622 = arith.addf %616, %621 : vector<16x16xf32>
      %623 = vector.extract_strided_slice %566 {offsets = [5, 0], sizes = [16, 16], strides = [1, 1]} : vector<22x16xf32> to vector<16x16xf32>
      %624 = vector.broadcast %618 : f32 to vector<16x16xf32>
      %625 = arith.mulf %624, %623 : vector<16x16xf32>
      %626 = arith.addf %622, %625 : vector<16x16xf32>
      %c48 = arith.constant 48 : index
      %627 = memref.load %arg2[%c48] : memref<98xf32, #tpu.memory_space<smem>>
      %c97 = arith.constant 97 : index
      %628 = memref.load %arg2[%c97] : memref<98xf32, #tpu.memory_space<smem>>
      %629 = vector.extract_strided_slice %565 {offsets = [6, 0], sizes = [16, 16], strides = [1, 1]} : vector<22x16xf32> to vector<16x16xf32>
      %630 = vector.broadcast %627 : f32 to vector<16x16xf32>
      %631 = arith.mulf %630, %629 : vector<16x16xf32>
      %632 = arith.addf %626, %631 : vector<16x16xf32>
      %633 = vector.extract_strided_slice %566 {offsets = [6, 0], sizes = [16, 16], strides = [1, 1]} : vector<22x16xf32> to vector<16x16xf32>
      %634 = vector.broadcast %628 : f32 to vector<16x16xf32>
      %635 = arith.mulf %634, %633 : vector<16x16xf32>
      %636 = arith.addf %632, %635 : vector<16x16xf32>
      %637 = arith.negf %636 : vector<16x16xf32>
      %638 = math.exp %637 : vector<16x16xf32>
      %cst_114 = arith.constant 1.000000e+00 : f32
      %639 = vector.broadcast %cst_114 : f32 to vector<16x16xf32>
      %640 = arith.addf %639, %638 : vector<16x16xf32>
      %641 = arith.divf %639, %640 : vector<16x16xf32>
      %642 = vector.extract_strided_slice %641 {offsets = [0, 0], sizes = [1, 16], strides = [1, 1]} : vector<16x16xf32> to vector<1x16xf32>
      %c0_115 = arith.constant 0 : index
      %c0_116 = arith.constant 0 : index
      %c0_117 = arith.constant 0 : index
      %c0_118 = arith.constant 0 : index
      %643 = vector.load %arg4[%c0_115, %c0_116, %c0_117, %c0_118] : memref<1x1x2x128xf32, #tpu.memory_space<vmem>>, vector<1x1x1x16xf32>
      %644 = vector.shape_cast %643 : vector<1x1x1x16xf32> to vector<1x16xf32>
      %645 = vector.shape_cast %642 : vector<1x16xf32> to vector<1x1x1x16xf32>
      tpu.vector_store %arg4[%c0_115, %c0_116, %c0_117, %c0_118], %645 {strides = array<i32>} : memref<1x1x2x128xf32, #tpu.memory_space<vmem>>, vector<1x1x1x16xf32>,
      %646 = vector.extract_strided_slice %641 {offsets = [1, 0], sizes = [1, 16], strides = [1, 1]} : vector<16x16xf32> to vector<1x16xf32>
      %c0_119 = arith.constant 0 : index
      %c0_120 = arith.constant 0 : index
      %c0_121 = arith.constant 0 : index
      %c16_122 = arith.constant 16 : index
      %647 = vector.load %arg4[%c0_119, %c0_120, %c0_121, %c16_122] : memref<1x1x2x128xf32, #tpu.memory_space<vmem>>, vector<1x1x1x16xf32>
      %648 = vector.shape_cast %647 : vector<1x1x1x16xf32> to vector<1x16xf32>
      %649 = vector.shape_cast %646 : vector<1x16xf32> to vector<1x1x1x16xf32>
      tpu.vector_store %arg4[%c0_119, %c0_120, %c0_121, %c16_122], %649 {strides = array<i32>} : memref<1x1x2x128xf32, #tpu.memory_space<vmem>>, vector<1x1x1x16xf32>,
      %650 = vector.extract_strided_slice %641 {offsets = [2, 0], sizes = [1, 16], strides = [1, 1]} : vector<16x16xf32> to vector<1x16xf32>
      %c0_123 = arith.constant 0 : index
      %c0_124 = arith.constant 0 : index
      %c0_125 = arith.constant 0 : index
      %c32_126 = arith.constant 32 : index
      %651 = vector.load %arg4[%c0_123, %c0_124, %c0_125, %c32_126] : memref<1x1x2x128xf32, #tpu.memory_space<vmem>>, vector<1x1x1x16xf32>
      %652 = vector.shape_cast %651 : vector<1x1x1x16xf32> to vector<1x16xf32>
      %653 = vector.shape_cast %650 : vector<1x16xf32> to vector<1x1x1x16xf32>
      tpu.vector_store %arg4[%c0_123, %c0_124, %c0_125, %c32_126], %653 {strides = array<i32>} : memref<1x1x2x128xf32, #tpu.memory_space<vmem>>, vector<1x1x1x16xf32>,
      %654 = vector.extract_strided_slice %641 {offsets = [3, 0], sizes = [1, 16], strides = [1, 1]} : vector<16x16xf32> to vector<1x16xf32>
      %c0_127 = arith.constant 0 : index
      %c0_128 = arith.constant 0 : index
      %c0_129 = arith.constant 0 : index
      %c48_130 = arith.constant 48 : index
      %655 = vector.load %arg4[%c0_127, %c0_128, %c0_129, %c48_130] : memref<1x1x2x128xf32, #tpu.memory_space<vmem>>, vector<1x1x1x16xf32>
      %656 = vector.shape_cast %655 : vector<1x1x1x16xf32> to vector<1x16xf32>
      %657 = vector.shape_cast %654 : vector<1x16xf32> to vector<1x1x1x16xf32>
      tpu.vector_store %arg4[%c0_127, %c0_128, %c0_129, %c48_130], %657 {strides = array<i32>} : memref<1x1x2x128xf32, #tpu.memory_space<vmem>>, vector<1x1x1x16xf32>,
      %658 = vector.extract_strided_slice %641 {offsets = [4, 0], sizes = [1, 16], strides = [1, 1]} : vector<16x16xf32> to vector<1x16xf32>
      %c0_131 = arith.constant 0 : index
      %c0_132 = arith.constant 0 : index
      %c0_133 = arith.constant 0 : index
      %c64_134 = arith.constant 64 : index
      %659 = vector.load %arg4[%c0_131, %c0_132, %c0_133, %c64_134] : memref<1x1x2x128xf32, #tpu.memory_space<vmem>>, vector<1x1x1x16xf32>
      %660 = vector.shape_cast %659 : vector<1x1x1x16xf32> to vector<1x16xf32>
      %661 = vector.shape_cast %658 : vector<1x16xf32> to vector<1x1x1x16xf32>
      tpu.vector_store %arg4[%c0_131, %c0_132, %c0_133, %c64_134], %661 {strides = array<i32>} : memref<1x1x2x128xf32, #tpu.memory_space<vmem>>, vector<1x1x1x16xf32>,
      %662 = vector.extract_strided_slice %641 {offsets = [5, 0], sizes = [1, 16], strides = [1, 1]} : vector<16x16xf32> to vector<1x16xf32>
      %c0_135 = arith.constant 0 : index
      %c0_136 = arith.constant 0 : index
      %c0_137 = arith.constant 0 : index
      %c80_138 = arith.constant 80 : index
      %663 = vector.load %arg4[%c0_135, %c0_136, %c0_137, %c80_138] : memref<1x1x2x128xf32, #tpu.memory_space<vmem>>, vector<1x1x1x16xf32>
      %664 = vector.shape_cast %663 : vector<1x1x1x16xf32> to vector<1x16xf32>
      %665 = vector.shape_cast %662 : vector<1x16xf32> to vector<1x1x1x16xf32>
      tpu.vector_store %arg4[%c0_135, %c0_136, %c0_137, %c80_138], %665 {strides = array<i32>} : memref<1x1x2x128xf32, #tpu.memory_space<vmem>>, vector<1x1x1x16xf32>,
      %666 = vector.extract_strided_slice %641 {offsets = [6, 0], sizes = [1, 16], strides = [1, 1]} : vector<16x16xf32> to vector<1x16xf32>
      %c0_139 = arith.constant 0 : index
      %c0_140 = arith.constant 0 : index
      %c0_141 = arith.constant 0 : index
      %c96_142 = arith.constant 96 : index
      %667 = vector.load %arg4[%c0_139, %c0_140, %c0_141, %c96_142] : memref<1x1x2x128xf32, #tpu.memory_space<vmem>>, vector<1x1x1x16xf32>
      %668 = vector.shape_cast %667 : vector<1x1x1x16xf32> to vector<1x16xf32>
      %669 = vector.shape_cast %666 : vector<1x16xf32> to vector<1x1x1x16xf32>
      tpu.vector_store %arg4[%c0_139, %c0_140, %c0_141, %c96_142], %669 {strides = array<i32>} : memref<1x1x2x128xf32, #tpu.memory_space<vmem>>, vector<1x1x1x16xf32>,
      %670 = vector.extract_strided_slice %641 {offsets = [7, 0], sizes = [1, 16], strides = [1, 1]} : vector<16x16xf32> to vector<1x16xf32>
      %c0_143 = arith.constant 0 : index
      %c0_144 = arith.constant 0 : index
      %c0_145 = arith.constant 0 : index
      %c112 = arith.constant 112 : index
      %671 = vector.load %arg4[%c0_143, %c0_144, %c0_145, %c112] : memref<1x1x2x128xf32, #tpu.memory_space<vmem>>, vector<1x1x1x16xf32>
      %672 = vector.shape_cast %671 : vector<1x1x1x16xf32> to vector<1x16xf32>
      %673 = vector.shape_cast %670 : vector<1x16xf32> to vector<1x1x1x16xf32>
      tpu.vector_store %arg4[%c0_143, %c0_144, %c0_145, %c112], %673 {strides = array<i32>} : memref<1x1x2x128xf32, #tpu.memory_space<vmem>>, vector<1x1x1x16xf32>,
      %674 = vector.extract_strided_slice %641 {offsets = [8, 0], sizes = [1, 16], strides = [1, 1]} : vector<16x16xf32> to vector<1x16xf32>
      %c0_146 = arith.constant 0 : index
      %c0_147 = arith.constant 0 : index
      %c1_148 = arith.constant 1 : index
      %c0_149 = arith.constant 0 : index
      %675 = vector.load %arg4[%c0_146, %c0_147, %c1_148, %c0_149] : memref<1x1x2x128xf32, #tpu.memory_space<vmem>>, vector<1x1x1x16xf32>
      %676 = vector.shape_cast %675 : vector<1x1x1x16xf32> to vector<1x16xf32>
      %677 = vector.shape_cast %674 : vector<1x16xf32> to vector<1x1x1x16xf32>
      tpu.vector_store %arg4[%c0_146, %c0_147, %c1_148, %c0_149], %677 {strides = array<i32>} : memref<1x1x2x128xf32, #tpu.memory_space<vmem>>, vector<1x1x1x16xf32>,
      %678 = vector.extract_strided_slice %641 {offsets = [9, 0], sizes = [1, 16], strides = [1, 1]} : vector<16x16xf32> to vector<1x16xf32>
      %c0_150 = arith.constant 0 : index
      %c0_151 = arith.constant 0 : index
      %c1_152 = arith.constant 1 : index
      %c16_153 = arith.constant 16 : index
      %679 = vector.load %arg4[%c0_150, %c0_151, %c1_152, %c16_153] : memref<1x1x2x128xf32, #tpu.memory_space<vmem>>, vector<1x1x1x16xf32>
      %680 = vector.shape_cast %679 : vector<1x1x1x16xf32> to vector<1x16xf32>
      %681 = vector.shape_cast %678 : vector<1x16xf32> to vector<1x1x1x16xf32>
      tpu.vector_store %arg4[%c0_150, %c0_151, %c1_152, %c16_153], %681 {strides = array<i32>} : memref<1x1x2x128xf32, #tpu.memory_space<vmem>>, vector<1x1x1x16xf32>,
      %682 = vector.extract_strided_slice %641 {offsets = [10, 0], sizes = [1, 16], strides = [1, 1]} : vector<16x16xf32> to vector<1x16xf32>
      %c0_154 = arith.constant 0 : index
      %c0_155 = arith.constant 0 : index
      %c1_156 = arith.constant 1 : index
      %c32_157 = arith.constant 32 : index
      %683 = vector.load %arg4[%c0_154, %c0_155, %c1_156, %c32_157] : memref<1x1x2x128xf32, #tpu.memory_space<vmem>>, vector<1x1x1x16xf32>
      %684 = vector.shape_cast %683 : vector<1x1x1x16xf32> to vector<1x16xf32>
      %685 = vector.shape_cast %682 : vector<1x16xf32> to vector<1x1x1x16xf32>
      tpu.vector_store %arg4[%c0_154, %c0_155, %c1_156, %c32_157], %685 {strides = array<i32>} : memref<1x1x2x128xf32, #tpu.memory_space<vmem>>, vector<1x1x1x16xf32>,
      %686 = vector.extract_strided_slice %641 {offsets = [11, 0], sizes = [1, 16], strides = [1, 1]} : vector<16x16xf32> to vector<1x16xf32>
      %c0_158 = arith.constant 0 : index
      %c0_159 = arith.constant 0 : index
      %c1_160 = arith.constant 1 : index
      %c48_161 = arith.constant 48 : index
      %687 = vector.load %arg4[%c0_158, %c0_159, %c1_160, %c48_161] : memref<1x1x2x128xf32, #tpu.memory_space<vmem>>, vector<1x1x1x16xf32>
      %688 = vector.shape_cast %687 : vector<1x1x1x16xf32> to vector<1x16xf32>
      %689 = vector.shape_cast %686 : vector<1x16xf32> to vector<1x1x1x16xf32>
      tpu.vector_store %arg4[%c0_158, %c0_159, %c1_160, %c48_161], %689 {strides = array<i32>} : memref<1x1x2x128xf32, #tpu.memory_space<vmem>>, vector<1x1x1x16xf32>,
      %690 = vector.extract_strided_slice %641 {offsets = [12, 0], sizes = [1, 16], strides = [1, 1]} : vector<16x16xf32> to vector<1x16xf32>
      %c0_162 = arith.constant 0 : index
      %c0_163 = arith.constant 0 : index
      %c1_164 = arith.constant 1 : index
      %c64_165 = arith.constant 64 : index
      %691 = vector.load %arg4[%c0_162, %c0_163, %c1_164, %c64_165] : memref<1x1x2x128xf32, #tpu.memory_space<vmem>>, vector<1x1x1x16xf32>
      %692 = vector.shape_cast %691 : vector<1x1x1x16xf32> to vector<1x16xf32>
      %693 = vector.shape_cast %690 : vector<1x16xf32> to vector<1x1x1x16xf32>
      tpu.vector_store %arg4[%c0_162, %c0_163, %c1_164, %c64_165], %693 {strides = array<i32>} : memref<1x1x2x128xf32, #tpu.memory_space<vmem>>, vector<1x1x1x16xf32>,
      %694 = vector.extract_strided_slice %641 {offsets = [13, 0], sizes = [1, 16], strides = [1, 1]} : vector<16x16xf32> to vector<1x16xf32>
      %c0_166 = arith.constant 0 : index
      %c0_167 = arith.constant 0 : index
      %c1_168 = arith.constant 1 : index
      %c80_169 = arith.constant 80 : index
      %695 = vector.load %arg4[%c0_166, %c0_167, %c1_168, %c80_169] : memref<1x1x2x128xf32, #tpu.memory_space<vmem>>, vector<1x1x1x16xf32>
      %696 = vector.shape_cast %695 : vector<1x1x1x16xf32> to vector<1x16xf32>
      %697 = vector.shape_cast %694 : vector<1x16xf32> to vector<1x1x1x16xf32>
      tpu.vector_store %arg4[%c0_166, %c0_167, %c1_168, %c80_169], %697 {strides = array<i32>} : memref<1x1x2x128xf32, #tpu.memory_space<vmem>>, vector<1x1x1x16xf32>,
      %698 = vector.extract_strided_slice %641 {offsets = [14, 0], sizes = [1, 16], strides = [1, 1]} : vector<16x16xf32> to vector<1x16xf32>
      %c0_170 = arith.constant 0 : index
      %c0_171 = arith.constant 0 : index
      %c1_172 = arith.constant 1 : index
      %c96_173 = arith.constant 96 : index
      %699 = vector.load %arg4[%c0_170, %c0_171, %c1_172, %c96_173] : memref<1x1x2x128xf32, #tpu.memory_space<vmem>>, vector<1x1x1x16xf32>
      %700 = vector.shape_cast %699 : vector<1x1x1x16xf32> to vector<1x16xf32>
      %701 = vector.shape_cast %698 : vector<1x16xf32> to vector<1x1x1x16xf32>
      tpu.vector_store %arg4[%c0_170, %c0_171, %c1_172, %c96_173], %701 {strides = array<i32>} : memref<1x1x2x128xf32, #tpu.memory_space<vmem>>, vector<1x1x1x16xf32>,
      %702 = vector.extract_strided_slice %641 {offsets = [15, 0], sizes = [1, 16], strides = [1, 1]} : vector<16x16xf32> to vector<1x16xf32>
      %c0_174 = arith.constant 0 : index
      %c0_175 = arith.constant 0 : index
      %c1_176 = arith.constant 1 : index
      %c112_177 = arith.constant 112 : index
      %703 = vector.load %arg4[%c0_174, %c0_175, %c1_176, %c112_177] : memref<1x1x2x128xf32, #tpu.memory_space<vmem>>, vector<1x1x1x16xf32>
      %704 = vector.shape_cast %703 : vector<1x1x1x16xf32> to vector<1x16xf32>
      %705 = vector.shape_cast %702 : vector<1x16xf32> to vector<1x1x1x16xf32>
      tpu.vector_store %arg4[%c0_174, %c0_175, %c1_176, %c112_177], %705 {strides = array<i32>} : memref<1x1x2x128xf32, #tpu.memory_space<vmem>>, vector<1x1x1x16xf32>,
    } else {
    }
    return
  }
  func.func @transform_0(%arg0: i32, %arg1: i32, %arg2: memref<98xf32, #tpu.memory_space<smem>>) -> (i32, i32, i32, i32) {
    %c0_i32 = arith.constant 0 : i32
    %c0_i32_0 = arith.constant 0 : i32
    %c0_i32_1 = arith.constant 0 : i32
    return %arg0, %arg1, %c0_i32, %c0_i32_0 : i32, i32, i32, i32
  }
  func.func @transform_1(%arg0: i32, %arg1: i32, %arg2: memref<98xf32, #tpu.memory_space<smem>>) -> (i32, i32, i32, i32) {
    %c0_i32 = arith.constant 0 : i32
    %c0_i32_0 = arith.constant 0 : i32
    %c0_i32_1 = arith.constant 0 : i32
    %c0_i32_2 = arith.constant 0 : i32
    return %arg0, %c0_i32, %c0_i32_0, %c0_i32_1 : i32, i32, i32, i32
  }
}

</mosaic_0001>

<llo_original>
// kernel: spatial_attention.1
$region0: #{spatial_attention.1}
  #allocation0 [shape = 'u32[]', space=smem, size = 0x4, offset = 0x4, fixed_abs, tag = 'smem constant byte address 0x4 - core index']
  #allocation1 [shape = 'u32[144,128]{1,0:T(1,128)}', space=vmem, size = 0x12000, scoped, tag = 'internal scratch']
  #allocation2 [shape = 'f32[2,128]{1,0:T(2,128)}', space=vmem, size = 0x400, scoped, tag = 'scratch operand']
  #allocation3 [shape = 'f32[2,128]{1,0:T(2,128)}', space=vmem, size = 0x400, scoped, tag = 'scratch operand']
  #allocation4 [shape = 'f32[22,22]{1,0:T(8,128)}', space=vmem, size = 0x3000, scoped, tag = 'scratch operand']
  #allocation5 [shape = 'f32[22,22]{1,0:T(8,128)}', space=vmem, size = 0x3000, scoped, tag = 'scratch operand']
  #allocation6 [shape = 's32[1]{0}', space=sflag, size = 0x4, scoped, tag = 'scoped memory for spatial_attention.1']
  #allocation7 [shape = 'u8[512]{0}', space=smem, size = 0x200, scoped, tag = 'prefetched SMEM operand 0']
  %s0 = inlined_call_operand.vmem [shape: f32[98], index: 0, kind: input, shape index: {}]
  %s1 = inlined_call_operand.vmem [shape: f32[2,4,2,128], index: 1, kind: input, shape index: {}]
  %s2 = inlined_call_operand.vmem [shape: f32[2,1,2,128], index: 2, kind: output, shape index: {}]
  %s3 = sld [smem:[#allocation0]]
  $region45: #{spatial_attention.1} parent=0
    _
  %s5 = ssub.s32 1, %s3
  %s6 = scalar_select 0, %s5, %s3
  %s7 = sshll.u32 %s0, 4
  %s8 = int_to_ptr.vmem [resolvable:$true] %s7
  %10 = dma.vmem_to_smem %s8, 16, [#allocation7], [#allocation6]
  %11 = dma.done [#allocation6], 16
  %12 = sfence
  loop: start=0, step=1, limit=4
  $region2: #{spatial_attention.1} parent=0 // loop_pre_header
    _
  $region3: #{spatial_attention.1} parent=0 // loop_header
    %s14 = sphi 0, %s18
    %p15 = scmp.ge.s32.totalorder %s14, 4
    %s21 = sphi 0, %s33
    %s22 = sphi 0, %s29
    %s23 = sphi 0, %s21
    %s24 = sphi 0, %s22
    %s25 = sphi 0, %s23
    %s26 = sphi 0, %s24
    %s38 = sphi 0, %s40
    %s41 = sphi 0, %s38
    %s42 = sphi 0, %s41
    %s58 = sphi 0, %s42
    %s64 = sphi 0, %s66
    %s67 = sphi 0, %s64
    %s68 = sphi 0, %s67
    %s84 = sphi 0, %s68
  $region4: #{spatial_attention.1} parent=0 // loop_header_branch
    %17 = sbr.rel (%p15) target = $region8
  $region5: #{spatial_attention.1} parent=0 // loop_body
    %s19 = ssub.s32 %s14, 1
    %s20 = ssub.s32 %s14, 2
    %s27 = sadd.s32 1, %s22
    %p28 = scmp.ge.s32.totalorder %s27, 1
    %s29 = scalar_select %p28, 0, %s27
    %s30 = sadd.s32 1, %s21
    %s31 = scalar_select %p28, %s30, %s21
    %p32 = scmp.ge.s32.totalorder %s31, 2
    %s33 = scalar_select %p32, 0, %s31
    %s34 = ssub.s32 %s21, %s33
    %s35 = ssub.s32 %s22, %s29
    %s36 = sor.u32 %s34, %s35
    %p37 = scmp.eq.s32.totalorder %s36, 0
    %s39 = sadd.s32 %s38, 1
    %s40 = scalar_select %p37, %s38, %s39
    %p43 = pneg %p37
    %p44 = scmp.eq.s32.totalorder %s14, 1
    %p45 = por %p43, %p44
    %p46 = scmp.ne.s32.totalorder %s38, %s41
    %p47 = scmp.eq.s32.totalorder %s14, 0
    %p48 = por %p46, %p47
    %p49 = scmp.ne.s32.totalorder %s38, %s41
    %p50 = scmp.eq.s32.totalorder %s19, 1
    %p51 = por %p49, %p50
    %p52 = scmp.ne.s32.totalorder %s41, %s42
    %p53 = scmp.eq.s32.totalorder %s19, 0
    %p54 = por %p52, %p53
    %p55 = scmp.ne.s32.totalorder %s41, %s42
    %p56 = scmp.eq.s32.totalorder %s20, 1
    %p57 = por %p55, %p56
    %p59 = scmp.ne.s32.totalorder %s42, %s58
    %p60 = scmp.eq.s32.totalorder %s20, 0
    %p61 = por %p59, %p60
    %s62 = ssub.s32 %s21, %s33
    %p63 = scmp.eq.s32.totalorder %s62, 0
    %s65 = sadd.s32 %s64, 1
    %s66 = scalar_select %p63, %s64, %s65
    %p69 = pneg %p63
    %p70 = scmp.eq.s32.totalorder %s14, 1
    %p71 = por %p69, %p70
    %p72 = scmp.ne.s32.totalorder %s64, %s67
    %p73 = scmp.eq.s32.totalorder %s14, 0
    %p74 = por %p72, %p73
    %p75 = scmp.ne.s32.totalorder %s64, %s67
    %p76 = scmp.eq.s32.totalorder %s19, 1
    %p77 = por %p75, %p76
    %p78 = scmp.ne.s32.totalorder %s67, %s68
    %p79 = scmp.eq.s32.totalorder %s19, 0
    %p80 = por %p78, %p79
    %p81 = scmp.ne.s32.totalorder %s67, %s68
    %p82 = scmp.eq.s32.totalorder %s20, 1
    %p83 = por %p81, %p82
    %p85 = scmp.ne.s32.totalorder %s68, %s84
    %p86 = scmp.eq.s32.totalorder %s20, 0
    %p87 = por %p85, %p86
    %p88 = scmp.le.s32.totalorder 1, %s14
    %p89 = scmp.lt.s32.totalorder %s14, 3
    %p90 = pnand %p88, %p89
    %p91 = pneg %p90
    // Predicated region
    $region9: #{spatial_attention.1} parent=5 // pred_check
      _
    $region10: #{spatial_attention.1} parent=5 // pred_check_branch
      %93 = sbr.rel (%p90) target = $region12
    $region11: #{spatial_attention.1} parent=5 // pred_region
      %s94 = ssub.s32 %s14, 1
    $region12: #{spatial_attention.1} parent=5 // pred_fallthru
      _
    %p95 = scmp.lt.s32.totalorder %s14, 2
    // Predicated region
    $region13: #{spatial_attention.1} parent=5 // pred_check
      %p96 = pneg %p95
    $region14: #{spatial_attention.1} parent=5 // pred_check_branch
      %98 = sbr.rel (%p96) target = $region16
    $region15: #{spatial_attention.1} parent=5 // pred_region
      // Predicated region
      $region17: #{spatial_attention.1} parent=15 // pred_check
        %p99 = pneg %p48
      $region18: #{spatial_attention.1} parent=15 // pred_check_branch
        %101 = sbr.rel (%p99) target = $region20
      $region19: #{spatial_attention.1} parent=15 // pred_region
        %s102 = smul.u32 4, %s22
        %p103 = scmp.lt.s32.totalorder %s21, 1
        %s104 = scalar_select %p103, %s21, 1
        %p105 = scmp.lt.s32.totalorder %s102, 3
        %s106 = scalar_select %p105, %s102, 3
        %s107 = smul.addr %s104, 4
        %s108 = sadd.s32 %s106, %s107
        %s109 = smul.addr %s108, 2
        %s110 = scalar_lea.vmem %s1, %s109
        %s111 = smul.u32 4, %s22
      $region20: #{spatial_attention.1} parent=15 // pred_fallthru
        _
    $region16: #{spatial_attention.1} parent=5 // pred_fallthru
      _
    %p112 = scmp.le.s32.totalorder 1, %s14
    %p113 = scmp.lt.s32.totalorder %s14, 3
    %p114 = pnand %p112, %p113
    %p115 = pneg %p114
    // Predicated region
    $region21: #{spatial_attention.1} parent=5 // pred_check
      _
    $region22: #{spatial_attention.1} parent=5 // pred_check_branch
      %117 = sbr.rel (%p114) target = $region24
    $region23: #{spatial_attention.1} parent=5 // pred_region
      %s118 = ssub.s32 %s14, 1
      %s119 = smul.u32 4, %s24
      %p120 = scmp.lt.s32.totalorder %s23, 1
      %s121 = scalar_select %p120, %s23, 1
      %p122 = scmp.lt.s32.totalorder %s119, 3
      %s123 = scalar_select %p122, %s119, 3
      %s124 = smul.addr %s121, 4
      %s125 = sadd.s32 %s123, %s124
      %s126 = smul.addr %s125, 2
      %s127 = scalar_lea.vmem %s1, %s126
      %p128 = pneg %p54
      %p129 = pneg %p51
      %p130 = pneg %p80
      %p131 = pneg %p77
      %p132 = scmp.lt.s32.totalorder %s23, 1
      %s133 = scalar_select %p132, %s23, 1
      %s134 = smul.addr %s133, 2
      %s135 = scalar_lea.vmem %s2, %s134
      %s136 = smul.u32 4, %s24
      %p137 = scmp.lt.s32.totalorder %s23, 1
      %s138 = scalar_select %p137, %s23, 1
      %p139 = scmp.lt.s32.totalorder %s136, 3
      %s140 = scalar_select %p139, %s136, 3
      %s141 = smul.addr %s138, 4
      %s142 = sadd.s32 %s140, %s141
      %s143 = smul.addr %s142, 2
      %s144 = scalar_lea.vmem %s1, %s143
      %s145 = smul.u32 4, %s24
      %p146 = scmp.lt.s32.totalorder %s23, 1
      %s147 = scalar_select %p146, %s23, 1
      %s148 = smul.addr %s147, 2
      %s149 = scalar_lea.vmem %s2, %s148
      %p150 = scmp.eq.s32.totalorder %s24, 0
      // Predicated region
      $region25: #{spatial_attention.1} parent=23 // pred_check
        %p151 = pneg %p150
      $region26: #{spatial_attention.1} parent=23 // pred_check_branch
        %153 = sbr.rel (%p151) target = $region28
      $region27: #{spatial_attention.1} parent=23 // pred_region
        %154 = vst [vmem:[#allocation2] sm:$0x3] 0.0
        %155 = vst [vmem:[#allocation3] sm:$0x3] -inf
      $region28: #{spatial_attention.1} parent=23 // pred_fallthru
        _
      %v156 = vld [vmem:[#allocation2] sm:$0x3]
      %v157 = vld [vmem:[#allocation3] sm:$0x3]
      %v158 = vld [vmem:[%s144] sm:$0x3]
      %v159 = vadd.f32 %v156, %v158
      %v160 = vmax.f32 %v157, %v158
      %s161 = scalar_lea.vmem %s144, 2
      %v162 = vld [vmem:[%s161] sm:$0x3]
      %v163 = vadd.f32 %v159, %v162
      %v164 = vmax.f32 %v160, %v162
      %s165 = scalar_lea.vmem %s144, 4
      %v166 = vld [vmem:[%s165] sm:$0x3]
      %v167 = vadd.f32 %v163, %v166
      %v168 = vmax.f32 %v164, %v166
      %s169 = scalar_lea.vmem %s144, 6
      %v170 = vld [vmem:[%s169] sm:$0x3]
      %v171 = vadd.f32 %v167, %v170
      %v172 = vmax.f32 %v168, %v170
      %173 = vst [vmem:[#allocation2] sm:$0x3] %v171
      %174 = vst [vmem:[#allocation3] sm:$0x3] %v172
      // Predicated region
      $region29: #{spatial_attention.1} parent=23 // pred_check
        %p175 = pneg %p150
      $region30: #{spatial_attention.1} parent=23 // pred_check_branch
        %177 = sbr.rel (%p175) target = $region32
      $region31: #{spatial_attention.1} parent=23 // pred_region
        %vm178 = vcmask 179200
        %179 = vst.msk [vmem:[#allocation4] sm:$0xff] %vm178, 0.0
        %180 = vst.msk [vmem:[#allocation4 + $0x8] sm:$0xff] %vm178, 0.0
        %vm181 = vcmask 177152
        %182 = vst.msk [vmem:[#allocation4 + $0x10] sm:$0x3f] %vm181, 0.0
        %183 = vst.msk [vmem:[#allocation5] sm:$0xff] %vm178, 0.0
        %184 = vst.msk [vmem:[#allocation5 + $0x8] sm:$0xff] %vm178, 0.0
        %185 = vst.msk [vmem:[#allocation5 + $0x10] sm:$0x3f] %vm181, 0.0
        %v186 = vmul.f32 %v171, 0.25
        %188 = vrot.lane.b32.xlu0 %v186, 3
        %v189 = vpop.permute.xlu0 %188
        %vm191 = vcmask 147480
        %192 = vst.msk [vmem:[#allocation4 + $0x3] sm:$0x1] %vm191, %v189
        %194 = vrot.lane.b32.xlu0 %v172, 3
        %v195 = vpop.permute.xlu0 %194
        %197 = vst.msk [vmem:[#allocation5 + $0x3] sm:$0x1] %vm191, %v195
        %198 = vrot.lane.b32.xlu0 %v186, 115
        %v199 = vpop.permute.xlu0 %198
        %201 = vst.msk [vmem:[#allocation4 + $0x4] sm:$0x1] %vm191, %v199
        %202 = vrot.lane.b32.xlu0 %v172, 115
        %v203 = vpop.permute.xlu0 %202
        %205 = vst.msk [vmem:[#allocation5 + $0x4] sm:$0x1] %vm191, %v203
        %206 = vrot.lane.b32.xlu0 %v186, 99
        %v207 = vpop.permute.xlu0 %206
        %209 = vst.msk [vmem:[#allocation4 + $0x5] sm:$0x1] %vm191, %v207
        %210 = vrot.lane.b32.xlu0 %v172, 99
        %v211 = vpop.permute.xlu0 %210
        %213 = vst.msk [vmem:[#allocation5 + $0x5] sm:$0x1] %vm191, %v211
        %214 = vrot.lane.b32.xlu0 %v186, 83
        %v215 = vpop.permute.xlu0 %214
        %217 = vst.msk [vmem:[#allocation4 + $0x6] sm:$0x1] %vm191, %v215
        %218 = vrot.lane.b32.xlu0 %v172, 83
        %v219 = vpop.permute.xlu0 %218
        %221 = vst.msk [vmem:[#allocation5 + $0x6] sm:$0x1] %vm191, %v219
        %222 = vrot.lane.b32.xlu0 %v186, 67
        %v223 = vpop.permute.xlu0 %222
        %225 = vst.msk [vmem:[#allocation4 + $0x7] sm:$0x1] %vm191, %v223
        %226 = vrot.lane.b32.xlu0 %v172, 67
        %v227 = vpop.permute.xlu0 %226
        %229 = vst.msk [vmem:[#allocation5 + $0x7] sm:$0x1] %vm191, %v227
        %230 = vrot.lane.b32.xlu0 %v186, 51
        %v231 = vpop.permute.xlu0 %230
        %233 = vst.msk [vmem:[#allocation4 + $0x8] sm:$0x1] %vm191, %v231
        %234 = vrot.lane.b32.xlu0 %v172, 51
        %v235 = vpop.permute.xlu0 %234
        %237 = vst.msk [vmem:[#allocation5 + $0x8] sm:$0x1] %vm191, %v235
        %238 = vrot.lane.b32.xlu0 %v186, 35
        %v239 = vpop.permute.xlu0 %238
        %241 = vst.msk [vmem:[#allocation4 + $0x9] sm:$0x1] %vm191, %v239
        %242 = vrot.lane.b32.xlu0 %v172, 35
        %v243 = vpop.permute.xlu0 %242
        %245 = vst.msk [vmem:[#allocation5 + $0x9] sm:$0x1] %vm191, %v243
        %246 = vrot.lane.b32.xlu0 %v186, 19
        %v247 = vpop.permute.xlu0 %246
        %249 = vst.msk [vmem:[#allocation4 + $0xa] sm:$0x1] %vm191, %v247
        %250 = vrot.lane.b32.xlu0 %v172, 19
        %v251 = vpop.permute.xlu0 %250
        %253 = vst.msk [vmem:[#allocation5 + $0xa] sm:$0x1] %vm191, %v251
        %vm254 = vcmask 148505
        %255 = vst.msk [vmem:[#allocation4 + $0xa] sm:$0x2] %vm254, %v189
        %256 = vst.msk [vmem:[#allocation5 + $0xa] sm:$0x2] %vm254, %v195
        %257 = vst.msk [vmem:[#allocation4 + $0xb] sm:$0x2] %vm254, %v199
        %258 = vst.msk [vmem:[#allocation5 + $0xb] sm:$0x2] %vm254, %v203
        %259 = vst.msk [vmem:[#allocation4 + $0xc] sm:$0x2] %vm254, %v207
        %260 = vst.msk [vmem:[#allocation5 + $0xc] sm:$0x2] %vm254, %v211
        %261 = vst.msk [vmem:[#allocation4 + $0xd] sm:$0x2] %vm254, %v215
        %262 = vst.msk [vmem:[#allocation5 + $0xd] sm:$0x2] %vm254, %v219
        %263 = vst.msk [vmem:[#allocation4 + $0xe] sm:$0x2] %vm254, %v223
        %264 = vst.msk [vmem:[#allocation5 + $0xe] sm:$0x2] %vm254, %v227
        %265 = vst.msk [vmem:[#allocation4 + $0xf] sm:$0x2] %vm254, %v231
        %266 = vst.msk [vmem:[#allocation5 + $0xf] sm:$0x2] %vm254, %v235
        %267 = vst.msk [vmem:[#allocation4 + $0x10] sm:$0x2] %vm254, %v239
        %268 = vst.msk [vmem:[#allocation5 + $0x10] sm:$0x2] %vm254, %v243
        %269 = vst.msk [vmem:[#allocation4 + $0x11] sm:$0x2] %vm254, %v247
        %270 = vst.msk [vmem:[#allocation5 + $0x11] sm:$0x2] %vm254, %v251
        %v271 = vld [vmem:[#allocation4] sm:$0xff]
        %v272 = vld [vmem:[#allocation4 + $0x8] sm:$0xff]
        %v273 = vld [vmem:[#allocation4 + $0x10] sm:$0x3f]
        %v274 = vld [vmem:[#allocation5] sm:$0xff]
        %v275 = vld [vmem:[#allocation5 + $0x8] sm:$0xff]
        %v276 = vld [vmem:[#allocation5 + $0x10] sm:$0x3f]
        %s277 = sld [smem:[#allocation7]]
        %s278 = sld [smem:[#allocation7 + $0x31]]
        %v279 = vstv %s277
        %v280 = vmul.f32 %v279, %v271
        %v281 = vmul.f32 %v279, %v272
        %v282 = vadd.f32 %v280, 0.0
        %v283 = vadd.f32 %v281, 0.0
        %v284 = vstv %s278
        %v285 = vmul.f32 %v284, %v274
        %v286 = vmul.f32 %v284, %v275
        %v287 = vadd.f32 %v282, %v285
        %v288 = vadd.f32 %v283, %v286
        %s289 = sld [smem:[#allocation7 + $0x7]]
        %s290 = sld [smem:[#allocation7 + $0x38]]
        %v291 = vstv %s289
        %v292 = vmul.f32 %v291, %v271
        %v293 = vmul.f32 %v291, %v272
        %v294 = vmul.f32 %v291, %v273
        %vm298 = vcmask 1046528
        %v299 = vrot.slane %v292, 1
        %v300 = vrot.slane %v293, 1
        %v301 = vsel %vm298, %v299, %v300
        %v302 = vrot.slane %v294, 1
        %v303 = vsel %vm298, %v300, %v302
        %v306 = vadd.f32 %v287, %v301
        %v307 = vadd.f32 %v288, %v303
        %v308 = vstv %s290
        %v309 = vmul.f32 %v308, %v274
        %v310 = vmul.f32 %v308, %v275
        %v311 = vmul.f32 %v308, %v276
        %v315 = vrot.slane %v309, 1
        %v316 = vrot.slane %v310, 1
        %v317 = vsel %vm298, %v315, %v316
        %v318 = vrot.slane %v311, 1
        %v319 = vsel %vm298, %v316, %v318
        %v322 = vadd.f32 %v306, %v317
        %v323 = vadd.f32 %v307, %v319
        %s324 = sld [smem:[#allocation7 + $0xe]]
        %s325 = sld [smem:[#allocation7 + $0x3f]]
        %v326 = vstv %s324
        %v327 = vmul.f32 %v326, %v271
        %v328 = vmul.f32 %v326, %v272
        %v329 = vmul.f32 %v326, %v273
        %vm333 = vcmask 1045504
        %v334 = vrot.slane %v327, 2
        %v335 = vrot.slane %v328, 2
        %v336 = vsel %vm333, %v334, %v335
        %v337 = vrot.slane %v329, 2
        %v338 = vsel %vm333, %v335, %v337
        %v341 = vadd.f32 %v322, %v336
        %v342 = vadd.f32 %v323, %v338
        %v343 = vstv %s325
        %v344 = vmul.f32 %v343, %v274
        %v345 = vmul.f32 %v343, %v275
        %v346 = vmul.f32 %v343, %v276
        %v350 = vrot.slane %v344, 2
        %v351 = vrot.slane %v345, 2
        %v352 = vsel %vm333, %v350, %v351
        %v353 = vrot.slane %v346, 2
        %v354 = vsel %vm333, %v351, %v353
        %v357 = vadd.f32 %v341, %v352
        %v358 = vadd.f32 %v342, %v354
        %s359 = sld [smem:[#allocation7 + $0x15]]
        %s360 = sld [smem:[#allocation7 + $0x46]]
        %v361 = vstv %s359
        %v362 = vmul.f32 %v361, %v271
        %v363 = vmul.f32 %v361, %v272
        %v364 = vmul.f32 %v361, %v273
        %vm368 = vcmask 1044480
        %v369 = vrot.slane %v362, 3
        %v370 = vrot.slane %v363, 3
        %v371 = vsel %vm368, %v369, %v370
        %v372 = vrot.slane %v364, 3
        %v373 = vsel %vm368, %v370, %v372
        %v376 = vadd.f32 %v357, %v371
        %v377 = vadd.f32 %v358, %v373
        %v378 = vstv %s360
        %v379 = vmul.f32 %v378, %v274
        %v380 = vmul.f32 %v378, %v275
        %v381 = vmul.f32 %v378, %v276
        %v385 = vrot.slane %v379, 3
        %v386 = vrot.slane %v380, 3
        %v387 = vsel %vm368, %v385, %v386
        %v388 = vrot.slane %v381, 3
        %v389 = vsel %vm368, %v386, %v388
        %v392 = vadd.f32 %v376, %v387
        %v393 = vadd.f32 %v377, %v389
        %s394 = sld [smem:[#allocation7 + $0x1c]]
        %s395 = sld [smem:[#allocation7 + $0x4d]]
        %v396 = vstv %s394
        %v397 = vmul.f32 %v396, %v271
        %v398 = vmul.f32 %v396, %v272
        %v399 = vmul.f32 %v396, %v273
        %vm403 = vcmask 1043456
        %v404 = vrot.slane %v397, 4
        %v405 = vrot.slane %v398, 4
        %v406 = vsel %vm403, %v404, %v405
        %v407 = vrot.slane %v399, 4
        %v408 = vsel %vm403, %v405, %v407
        %v411 = vadd.f32 %v392, %v406
        %v412 = vadd.f32 %v393, %v408
        %v413 = vstv %s395
        %v414 = vmul.f32 %v413, %v274
        %v415 = vmul.f32 %v413, %v275
        %v416 = vmul.f32 %v413, %v276
        %v420 = vrot.slane %v414, 4
        %v421 = vrot.slane %v415, 4
        %v422 = vsel %vm403, %v420, %v421
        %v423 = vrot.slane %v416, 4
        %v424 = vsel %vm403, %v421, %v423
        %v427 = vadd.f32 %v411, %v422
        %v428 = vadd.f32 %v412, %v424
        %s429 = sld [smem:[#allocation7 + $0x23]]
        %s430 = sld [smem:[#allocation7 + $0x54]]
        %v431 = vstv %s429
        %v432 = vmul.f32 %v431, %v271
        %v433 = vmul.f32 %v431, %v272
        %v434 = vmul.f32 %v431, %v273
        %vm438 = vcmask 1042432
        %v439 = vrot.slane %v432, 5
        %v440 = vrot.slane %v433, 5
        %v441 = vsel %vm438, %v439, %v440
        %v442 = vrot.slane %v434, 5
        %v443 = vsel %vm438, %v440, %v442
        %v446 = vadd.f32 %v427, %v441
        %v447 = vadd.f32 %v428, %v443
        %v448 = vstv %s430
        %v449 = vmul.f32 %v448, %v274
        %v450 = vmul.f32 %v448, %v275
        %v451 = vmul.f32 %v448, %v276
        %v455 = vrot.slane %v449, 5
        %v456 = vrot.slane %v450, 5
        %v457 = vsel %vm438, %v455, %v456
        %v458 = vrot.slane %v451, 5
        %v459 = vsel %vm438, %v456, %v458
        %v462 = vadd.f32 %v446, %v457
        %v463 = vadd.f32 %v447, %v459
        %s464 = sld [smem:[#allocation7 + $0x2a]]
        %s465 = sld [smem:[#allocation7 + $0x5b]]
        %v466 = vstv %s464
        %v467 = vmul.f32 %v466, %v271
        %v468 = vmul.f32 %v466, %v272
        %v469 = vmul.f32 %v466, %v273
        %vm473 = vcmask 1041408
        %v474 = vrot.slane %v467, 6
        %v475 = vrot.slane %v468, 6
        %v476 = vsel %vm473, %v474, %v475
        %v477 = vrot.slane %v469, 6
        %v478 = vsel %vm473, %v475, %v477
        %v481 = vadd.f32 %v462, %v476
        %v482 = vadd.f32 %v463, %v478
        %v483 = vstv %s465
        %v484 = vmul.f32 %v483, %v274
        %v485 = vmul.f32 %v483, %v275
        %v486 = vmul.f32 %v483, %v276
        %v490 = vrot.slane %v484, 6
        %v491 = vrot.slane %v485, 6
        %v492 = vsel %vm473, %v490, %v491
        %v493 = vrot.slane %v486, 6
        %v494 = vsel %vm473, %v491, %v493
        %v497 = vadd.f32 %v481, %v492
        %v498 = vadd.f32 %v482, %v494
        %s499 = sld [smem:[#allocation7 + $0x1]]
        %s500 = sld [smem:[#allocation7 + $0x32]]
        %v501 = vstv %s499
        %v502 = vmul.f32 %v501, %v271
        %v503 = vmul.f32 %v501, %v272
        %506 = vrot.lane.b32.xlu0 %v502, 127
        %v507 = vpop.permute.xlu0 %506
        %508 = vrot.lane.b32.xlu0 %v503, 127
        %v509 = vpop.permute.xlu0 %508
        %v512 = vadd.f32 %v497, %v507
        %v513 = vadd.f32 %v498, %v509
        %v514 = vstv %s500
        %v515 = vmul.f32 %v514, %v274
        %v516 = vmul.f32 %v514, %v275
        %519 = vrot.lane.b32.xlu0 %v515, 127
        %v520 = vpop.permute.xlu0 %519
        %521 = vrot.lane.b32.xlu0 %v516, 127
        %v522 = vpop.permute.xlu0 %521
        %v525 = vadd.f32 %v512, %v520
        %v526 = vadd.f32 %v513, %v522
        %s527 = sld [smem:[#allocation7 + $0x8]]
        %s528 = sld [smem:[#allocation7 + $0x39]]
        %v529 = vstv %s527
        %v530 = vmul.f32 %v529, %v271
        %v531 = vmul.f32 %v529, %v272
        %v532 = vmul.f32 %v529, %v273
        %v536 = vrot.slane %v530, 1
        %v537 = vrot.slane %v531, 1
        %v538 = vsel %vm298, %v536, %v537
        %v539 = vrot.slane %v532, 1
        %v540 = vsel %vm298, %v537, %v539
        %541 = vrot.lane.b32.xlu0 %v538, 127
        %v542 = vpop.permute.xlu0 %541
        %543 = vrot.lane.b32.xlu0 %v540, 127
        %v544 = vpop.permute.xlu0 %543
        %v547 = vadd.f32 %v525, %v542
        %v548 = vadd.f32 %v526, %v544
        %v549 = vstv %s528
        %v550 = vmul.f32 %v549, %v274
        %v551 = vmul.f32 %v549, %v275
        %v552 = vmul.f32 %v549, %v276
        %v556 = vrot.slane %v550, 1
        %v557 = vrot.slane %v551, 1
        %v558 = vsel %vm298, %v556, %v557
        %v559 = vrot.slane %v552, 1
        %v560 = vsel %vm298, %v557, %v559
        %561 = vrot.lane.b32.xlu0 %v558, 127
        %v562 = vpop.permute.xlu0 %561
        %563 = vrot.lane.b32.xlu0 %v560, 127
        %v564 = vpop.permute.xlu0 %563
        %v567 = vadd.f32 %v547, %v562
        %v568 = vadd.f32 %v548, %v564
        %s569 = sld [smem:[#allocation7 + $0xf]]
        %s570 = sld [smem:[#allocation7 + $0x40]]
        %v571 = vstv %s569
        %v572 = vmul.f32 %v571, %v271
        %v573 = vmul.f32 %v571, %v272
        %v574 = vmul.f32 %v571, %v273
        %v578 = vrot.slane %v572, 2
        %v579 = vrot.slane %v573, 2
        %v580 = vsel %vm333, %v578, %v579
        %v581 = vrot.slane %v574, 2
        %v582 = vsel %vm333, %v579, %v581
        %583 = vrot.lane.b32.xlu0 %v580, 127
        %v584 = vpop.permute.xlu0 %583
        %585 = vrot.lane.b32.xlu0 %v582, 127
        %v586 = vpop.permute.xlu0 %585
        %v589 = vadd.f32 %v567, %v584
        %v590 = vadd.f32 %v568, %v586
        %v591 = vstv %s570
        %v592 = vmul.f32 %v591, %v274
        %v593 = vmul.f32 %v591, %v275
        %v594 = vmul.f32 %v591, %v276
        %v598 = vrot.slane %v592, 2
        %v599 = vrot.slane %v593, 2
        %v600 = vsel %vm333, %v598, %v599
        %v601 = vrot.slane %v594, 2
        %v602 = vsel %vm333, %v599, %v601
        %603 = vrot.lane.b32.xlu0 %v600, 127
        %v604 = vpop.permute.xlu0 %603
        %605 = vrot.lane.b32.xlu0 %v602, 127
        %v606 = vpop.permute.xlu0 %605
        %v609 = vadd.f32 %v589, %v604
        %v610 = vadd.f32 %v590, %v606
        %s611 = sld [smem:[#allocation7 + $0x16]]
        %s612 = sld [smem:[#allocation7 + $0x47]]
        %v613 = vstv %s611
        %v614 = vmul.f32 %v613, %v271
        %v615 = vmul.f32 %v613, %v272
        %v616 = vmul.f32 %v613, %v273
        %v620 = vrot.slane %v614, 3
        %v621 = vrot.slane %v615, 3
        %v622 = vsel %vm368, %v620, %v621
        %v623 = vrot.slane %v616, 3
        %v624 = vsel %vm368, %v621, %v623
        %625 = vrot.lane.b32.xlu0 %v622, 127
        %v626 = vpop.permute.xlu0 %625
        %627 = vrot.lane.b32.xlu0 %v624, 127
        %v628 = vpop.permute.xlu0 %627
        %v631 = vadd.f32 %v609, %v626
        %v632 = vadd.f32 %v610, %v628
        %v633 = vstv %s612
        %v634 = vmul.f32 %v633, %v274
        %v635 = vmul.f32 %v633, %v275
        %v636 = vmul.f32 %v633, %v276
        %v640 = vrot.slane %v634, 3
        %v641 = vrot.slane %v635, 3
        %v642 = vsel %vm368, %v640, %v641
        %v643 = vrot.slane %v636, 3
        %v644 = vsel %vm368, %v641, %v643
        %645 = vrot.lane.b32.xlu0 %v642, 127
        %v646 = vpop.permute.xlu0 %645
        %647 = vrot.lane.b32.xlu0 %v644, 127
        %v648 = vpop.permute.xlu0 %647
        %v651 = vadd.f32 %v631, %v646
        %v652 = vadd.f32 %v632, %v648
        %s653 = sld [smem:[#allocation7 + $0x1d]]
        %s654 = sld [smem:[#allocation7 + $0x4e]]
        %v655 = vstv %s653
        %v656 = vmul.f32 %v655, %v271
        %v657 = vmul.f32 %v655, %v272
        %v658 = vmul.f32 %v655, %v273
        %v662 = vrot.slane %v656, 4
        %v663 = vrot.slane %v657, 4
        %v664 = vsel %vm403, %v662, %v663
        %v665 = vrot.slane %v658, 4
        %v666 = vsel %vm403, %v663, %v665
        %667 = vrot.lane.b32.xlu0 %v664, 127
        %v668 = vpop.permute.xlu0 %667
        %669 = vrot.lane.b32.xlu0 %v666, 127
        %v670 = vpop.permute.xlu0 %669
        %v673 = vadd.f32 %v651, %v668
        %v674 = vadd.f32 %v652, %v670
        %v675 = vstv %s654
        %v676 = vmul.f32 %v675, %v274
        %v677 = vmul.f32 %v675, %v275
        %v678 = vmul.f32 %v675, %v276
        %v682 = vrot.slane %v676, 4
        %v683 = vrot.slane %v677, 4
        %v684 = vsel %vm403, %v682, %v683
        %v685 = vrot.slane %v678, 4
        %v686 = vsel %vm403, %v683, %v685
        %687 = vrot.lane.b32.xlu0 %v684, 127
        %v688 = vpop.permute.xlu0 %687
        %689 = vrot.lane.b32.xlu0 %v686, 127
        %v690 = vpop.permute.xlu0 %689
        %v693 = vadd.f32 %v673, %v688
        %v694 = vadd.f32 %v674, %v690
        %s695 = sld [smem:[#allocation7 + $0x24]]
        %s696 = sld [smem:[#allocation7 + $0x55]]
        %v697 = vstv %s695
        %v698 = vmul.f32 %v697, %v271
        %v699 = vmul.f32 %v697, %v272
        %v700 = vmul.f32 %v697, %v273
        %v704 = vrot.slane %v698, 5
        %v705 = vrot.slane %v699, 5
        %v706 = vsel %vm438, %v704, %v705
        %v707 = vrot.slane %v700, 5
        %v708 = vsel %vm438, %v705, %v707
        %709 = vrot.lane.b32.xlu0 %v706, 127
        %v710 = vpop.permute.xlu0 %709
        %711 = vrot.lane.b32.xlu0 %v708, 127
        %v712 = vpop.permute.xlu0 %711
        %v715 = vadd.f32 %v693, %v710
        %v716 = vadd.f32 %v694, %v712
        %v717 = vstv %s696
        %v718 = vmul.f32 %v717, %v274
        %v719 = vmul.f32 %v717, %v275
        %v720 = vmul.f32 %v717, %v276
        %v724 = vrot.slane %v718, 5
        %v725 = vrot.slane %v719, 5
        %v726 = vsel %vm438, %v724, %v725
        %v727 = vrot.slane %v720, 5
        %v728 = vsel %vm438, %v725, %v727
        %729 = vrot.lane.b32.xlu0 %v726, 127
        %v730 = vpop.permute.xlu0 %729
        %731 = vrot.lane.b32.xlu0 %v728, 127
        %v732 = vpop.permute.xlu0 %731
        %v735 = vadd.f32 %v715, %v730
        %v736 = vadd.f32 %v716, %v732
        %s737 = sld [smem:[#allocation7 + $0x2b]]
        %s738 = sld [smem:[#allocation7 + $0x5c]]
        %v739 = vstv %s737
        %v740 = vmul.f32 %v739, %v271
        %v741 = vmul.f32 %v739, %v272
        %v742 = vmul.f32 %v739, %v273
        %v746 = vrot.slane %v740, 6
        %v747 = vrot.slane %v741, 6
        %v748 = vsel %vm473, %v746, %v747
        %v749 = vrot.slane %v742, 6
        %v750 = vsel %vm473, %v747, %v749
        %751 = vrot.lane.b32.xlu0 %v748, 127
        %v752 = vpop.permute.xlu0 %751
        %753 = vrot.lane.b32.xlu0 %v750, 127
        %v754 = vpop.permute.xlu0 %753
        %v757 = vadd.f32 %v735, %v752
        %v758 = vadd.f32 %v736, %v754
        %v759 = vstv %s738
        %v760 = vmul.f32 %v759, %v274
        %v761 = vmul.f32 %v759, %v275
        %v762 = vmul.f32 %v759, %v276
        %v766 = vrot.slane %v760, 6
        %v767 = vrot.slane %v761, 6
        %v768 = vsel %vm473, %v766, %v767
        %v769 = vrot.slane %v762, 6
        %v770 = vsel %vm473, %v767, %v769
        %771 = vrot.lane.b32.xlu0 %v768, 127
        %v772 = vpop.permute.xlu0 %771
        %773 = vrot.lane.b32.xlu0 %v770, 127
        %v774 = vpop.permute.xlu0 %773
        %v777 = vadd.f32 %v757, %v772
        %v778 = vadd.f32 %v758, %v774
        %s779 = sld [smem:[#allocation7 + $0x2]]
        %s780 = sld [smem:[#allocation7 + $0x33]]
        %v781 = vstv %s779
        %v782 = vmul.f32 %v781, %v271
        %v783 = vmul.f32 %v781, %v272
        %786 = vrot.lane.b32.xlu0 %v782, 126
        %v787 = vpop.permute.xlu0 %786
        %788 = vrot.lane.b32.xlu0 %v783, 126
        %v789 = vpop.permute.xlu0 %788
        %v792 = vadd.f32 %v777, %v787
        %v793 = vadd.f32 %v778, %v789
        %v794 = vstv %s780
        %v795 = vmul.f32 %v794, %v274
        %v796 = vmul.f32 %v794, %v275
        %799 = vrot.lane.b32.xlu0 %v795, 126
        %v800 = vpop.permute.xlu0 %799
        %801 = vrot.lane.b32.xlu0 %v796, 126
        %v802 = vpop.permute.xlu0 %801
        %v805 = vadd.f32 %v792, %v800
        %v806 = vadd.f32 %v793, %v802
        %s807 = sld [smem:[#allocation7 + $0x9]]
        %s808 = sld [smem:[#allocation7 + $0x3a]]
        %v809 = vstv %s807
        %v810 = vmul.f32 %v809, %v271
        %v811 = vmul.f32 %v809, %v272
        %v812 = vmul.f32 %v809, %v273
        %v816 = vrot.slane %v810, 1
        %v817 = vrot.slane %v811, 1
        %v818 = vsel %vm298, %v816, %v817
        %v819 = vrot.slane %v812, 1
        %v820 = vsel %vm298, %v817, %v819
        %821 = vrot.lane.b32.xlu0 %v818, 126
        %v822 = vpop.permute.xlu0 %821
        %823 = vrot.lane.b32.xlu0 %v820, 126
        %v824 = vpop.permute.xlu0 %823
        %v827 = vadd.f32 %v805, %v822
        %v828 = vadd.f32 %v806, %v824
        %v829 = vstv %s808
        %v830 = vmul.f32 %v829, %v274
        %v831 = vmul.f32 %v829, %v275
        %v832 = vmul.f32 %v829, %v276
        %v836 = vrot.slane %v830, 1
        %v837 = vrot.slane %v831, 1
        %v838 = vsel %vm298, %v836, %v837
        %v839 = vrot.slane %v832, 1
        %v840 = vsel %vm298, %v837, %v839
        %841 = vrot.lane.b32.xlu0 %v838, 126
        %v842 = vpop.permute.xlu0 %841
        %843 = vrot.lane.b32.xlu0 %v840, 126
        %v844 = vpop.permute.xlu0 %843
        %v847 = vadd.f32 %v827, %v842
        %v848 = vadd.f32 %v828, %v844
        %s849 = sld [smem:[#allocation7 + $0x10]]
        %s850 = sld [smem:[#allocation7 + $0x41]]
        %v851 = vstv %s849
        %v852 = vmul.f32 %v851, %v271
        %v853 = vmul.f32 %v851, %v272
        %v854 = vmul.f32 %v851, %v273
        %v858 = vrot.slane %v852, 2
        %v859 = vrot.slane %v853, 2
        %v860 = vsel %vm333, %v858, %v859
        %v861 = vrot.slane %v854, 2
        %v862 = vsel %vm333, %v859, %v861
        %863 = vrot.lane.b32.xlu0 %v860, 126
        %v864 = vpop.permute.xlu0 %863
        %865 = vrot.lane.b32.xlu0 %v862, 126
        %v866 = vpop.permute.xlu0 %865
        %v869 = vadd.f32 %v847, %v864
        %v870 = vadd.f32 %v848, %v866
        %v871 = vstv %s850
        %v872 = vmul.f32 %v871, %v274
        %v873 = vmul.f32 %v871, %v275
        %v874 = vmul.f32 %v871, %v276
        %v878 = vrot.slane %v872, 2
        %v879 = vrot.slane %v873, 2
        %v880 = vsel %vm333, %v878, %v879
        %v881 = vrot.slane %v874, 2
        %v882 = vsel %vm333, %v879, %v881
        %883 = vrot.lane.b32.xlu0 %v880, 126
        %v884 = vpop.permute.xlu0 %883
        %885 = vrot.lane.b32.xlu0 %v882, 126
        %v886 = vpop.permute.xlu0 %885
        %v889 = vadd.f32 %v869, %v884
        %v890 = vadd.f32 %v870, %v886
        %s891 = sld [smem:[#allocation7 + $0x17]]
        %s892 = sld [smem:[#allocation7 + $0x48]]
        %v893 = vstv %s891
        %v894 = vmul.f32 %v893, %v271
        %v895 = vmul.f32 %v893, %v272
        %v896 = vmul.f32 %v893, %v273
        %v900 = vrot.slane %v894, 3
        %v901 = vrot.slane %v895, 3
        %v902 = vsel %vm368, %v900, %v901
        %v903 = vrot.slane %v896, 3
        %v904 = vsel %vm368, %v901, %v903
        %905 = vrot.lane.b32.xlu0 %v902, 126
        %v906 = vpop.permute.xlu0 %905
        %907 = vrot.lane.b32.xlu0 %v904, 126
        %v908 = vpop.permute.xlu0 %907
        %v911 = vadd.f32 %v889, %v906
        %v912 = vadd.f32 %v890, %v908
        %v913 = vstv %s892
        %v914 = vmul.f32 %v913, %v274
        %v915 = vmul.f32 %v913, %v275
        %v916 = vmul.f32 %v913, %v276
        %v920 = vrot.slane %v914, 3
        %v921 = vrot.slane %v915, 3
        %v922 = vsel %vm368, %v920, %v921
        %v923 = vrot.slane %v916, 3
        %v924 = vsel %vm368, %v921, %v923
        %925 = vrot.lane.b32.xlu0 %v922, 126
        %v926 = vpop.permute.xlu0 %925
        %927 = vrot.lane.b32.xlu0 %v924, 126
        %v928 = vpop.permute.xlu0 %927
        %v931 = vadd.f32 %v911, %v926
        %v932 = vadd.f32 %v912, %v928
        %s933 = sld [smem:[#allocation7 + $0x1e]]
        %s934 = sld [smem:[#allocation7 + $0x4f]]
        %v935 = vstv %s933
        %v936 = vmul.f32 %v935, %v271
        %v937 = vmul.f32 %v935, %v272
        %v938 = vmul.f32 %v935, %v273
        %v942 = vrot.slane %v936, 4
        %v943 = vrot.slane %v937, 4
        %v944 = vsel %vm403, %v942, %v943
        %v945 = vrot.slane %v938, 4
        %v946 = vsel %vm403, %v943, %v945
        %947 = vrot.lane.b32.xlu0 %v944, 126
        %v948 = vpop.permute.xlu0 %947
        %949 = vrot.lane.b32.xlu0 %v946, 126
        %v950 = vpop.permute.xlu0 %949
        %v953 = vadd.f32 %v931, %v948
        %v954 = vadd.f32 %v932, %v950
        %v955 = vstv %s934
        %v956 = vmul.f32 %v955, %v274
        %v957 = vmul.f32 %v955, %v275
        %v958 = vmul.f32 %v955, %v276
        %v962 = vrot.slane %v956, 4
        %v963 = vrot.slane %v957, 4
        %v964 = vsel %vm403, %v962, %v963
        %v965 = vrot.slane %v958, 4
        %v966 = vsel %vm403, %v963, %v965
        %967 = vrot.lane.b32.xlu0 %v964, 126
        %v968 = vpop.permute.xlu0 %967
        %969 = vrot.lane.b32.xlu0 %v966, 126
        %v970 = vpop.permute.xlu0 %969
        %v973 = vadd.f32 %v953, %v968
        %v974 = vadd.f32 %v954, %v970
        %s975 = sld [smem:[#allocation7 + $0x25]]
        %s976 = sld [smem:[#allocation7 + $0x56]]
        %v977 = vstv %s975
        %v978 = vmul.f32 %v977, %v271
        %v979 = vmul.f32 %v977, %v272
        %v980 = vmul.f32 %v977, %v273
        %v984 = vrot.slane %v978, 5
        %v985 = vrot.slane %v979, 5
        %v986 = vsel %vm438, %v984, %v985
        %v987 = vrot.slane %v980, 5
        %v988 = vsel %vm438, %v985, %v987
        %989 = vrot.lane.b32.xlu0 %v986, 126
        %v990 = vpop.permute.xlu0 %989
        %991 = vrot.lane.b32.xlu0 %v988, 126
        %v992 = vpop.permute.xlu0 %991
        %v995 = vadd.f32 %v973, %v990
        %v996 = vadd.f32 %v974, %v992
        %v997 = vstv %s976
        %v998 = vmul.f32 %v997, %v274
        %v999 = vmul.f32 %v997, %v275
        %v1000 = vmul.f32 %v997, %v276
        %v1004 = vrot.slane %v998, 5
        %v1005 = vrot.slane %v999, 5
        %v1006 = vsel %vm438, %v1004, %v1005
        %v1007 = vrot.slane %v1000, 5
        %v1008 = vsel %vm438, %v1005, %v1007
        %1009 = vrot.lane.b32.xlu0 %v1006, 126
        %v1010 = vpop.permute.xlu0 %1009
        %1011 = vrot.lane.b32.xlu0 %v1008, 126
        %v1012 = vpop.permute.xlu0 %1011
        %v1015 = vadd.f32 %v995, %v1010
        %v1016 = vadd.f32 %v996, %v1012
        %s1017 = sld [smem:[#allocation7 + $0x2c]]
        %s1018 = sld [smem:[#allocation7 + $0x5d]]
        %v1019 = vstv %s1017
        %v1020 = vmul.f32 %v1019, %v271
        %v1021 = vmul.f32 %v1019, %v272
        %v1022 = vmul.f32 %v1019, %v273
        %v1026 = vrot.slane %v1020, 6
        %v1027 = vrot.slane %v1021, 6
        %v1028 = vsel %vm473, %v1026, %v1027
        %v1029 = vrot.slane %v1022, 6
        %v1030 = vsel %vm473, %v1027, %v1029
        %1031 = vrot.lane.b32.xlu0 %v1028, 126
        %v1032 = vpop.permute.xlu0 %1031
        %1033 = vrot.lane.b32.xlu0 %v1030, 126
        %v1034 = vpop.permute.xlu0 %1033
        %v1037 = vadd.f32 %v1015, %v1032
        %v1038 = vadd.f32 %v1016, %v1034
        %v1039 = vstv %s1018
        %v1040 = vmul.f32 %v1039, %v274
        %v1041 = vmul.f32 %v1039, %v275
        %v1042 = vmul.f32 %v1039, %v276
        %v1046 = vrot.slane %v1040, 6
        %v1047 = vrot.slane %v1041, 6
        %v1048 = vsel %vm473, %v1046, %v1047
        %v1049 = vrot.slane %v1042, 6
        %v1050 = vsel %vm473, %v1047, %v1049
        %1051 = vrot.lane.b32.xlu0 %v1048, 126
        %v1052 = vpop.permute.xlu0 %1051
        %1053 = vrot.lane.b32.xlu0 %v1050, 126
        %v1054 = vpop.permute.xlu0 %1053
        %v1057 = vadd.f32 %v1037, %v1052
        %v1058 = vadd.f32 %v1038, %v1054
        %s1059 = sld [smem:[#allocation7 + $0x3]]
        %s1060 = sld [smem:[#allocation7 + $0x34]]
        %v1061 = vstv %s1059
        %v1062 = vmul.f32 %v1061, %v271
        %v1063 = vmul.f32 %v1061, %v272
        %1066 = vrot.lane.b32.xlu0 %v1062, 125
        %v1067 = vpop.permute.xlu0 %1066
        %1068 = vrot.lane.b32.xlu0 %v1063, 125
        %v1069 = vpop.permute.xlu0 %1068
        %v1072 = vadd.f32 %v1057, %v1067
        %v1073 = vadd.f32 %v1058, %v1069
        %v1074 = vstv %s1060
        %v1075 = vmul.f32 %v1074, %v274
        %v1076 = vmul.f32 %v1074, %v275
        %1079 = vrot.lane.b32.xlu0 %v1075, 125
        %v1080 = vpop.permute.xlu0 %1079
        %1081 = vrot.lane.b32.xlu0 %v1076, 125
        %v1082 = vpop.permute.xlu0 %1081
        %v1085 = vadd.f32 %v1072, %v1080
        %v1086 = vadd.f32 %v1073, %v1082
        %s1087 = sld [smem:[#allocation7 + $0xa]]
        %s1088 = sld [smem:[#allocation7 + $0x3b]]
        %v1089 = vstv %s1087
        %v1090 = vmul.f32 %v1089, %v271
        %v1091 = vmul.f32 %v1089, %v272
        %v1092 = vmul.f32 %v1089, %v273
        %v1096 = vrot.slane %v1090, 1
        %v1097 = vrot.slane %v1091, 1
        %v1098 = vsel %vm298, %v1096, %v1097
        %v1099 = vrot.slane %v1092, 1
        %v1100 = vsel %vm298, %v1097, %v1099
        %1101 = vrot.lane.b32.xlu0 %v1098, 125
        %v1102 = vpop.permute.xlu0 %1101
        %1103 = vrot.lane.b32.xlu0 %v1100, 125
        %v1104 = vpop.permute.xlu0 %1103
        %v1107 = vadd.f32 %v1085, %v1102
        %v1108 = vadd.f32 %v1086, %v1104
        %v1109 = vstv %s1088
        %v1110 = vmul.f32 %v1109, %v274
        %v1111 = vmul.f32 %v1109, %v275
        %v1112 = vmul.f32 %v1109, %v276
        %v1116 = vrot.slane %v1110, 1
        %v1117 = vrot.slane %v1111, 1
        %v1118 = vsel %vm298, %v1116, %v1117
        %v1119 = vrot.slane %v1112, 1
        %v1120 = vsel %vm298, %v1117, %v1119
        %1121 = vrot.lane.b32.xlu0 %v1118, 125
        %v1122 = vpop.permute.xlu0 %1121
        %1123 = vrot.lane.b32.xlu0 %v1120, 125
        %v1124 = vpop.permute.xlu0 %1123
        %v1127 = vadd.f32 %v1107, %v1122
        %v1128 = vadd.f32 %v1108, %v1124
        %s1129 = sld [smem:[#allocation7 + $0x11]]
        %s1130 = sld [smem:[#allocation7 + $0x42]]
        %v1131 = vstv %s1129
        %v1132 = vmul.f32 %v1131, %v271
        %v1133 = vmul.f32 %v1131, %v272
        %v1134 = vmul.f32 %v1131, %v273
        %v1138 = vrot.slane %v1132, 2
        %v1139 = vrot.slane %v1133, 2
        %v1140 = vsel %vm333, %v1138, %v1139
        %v1141 = vrot.slane %v1134, 2
        %v1142 = vsel %vm333, %v1139, %v1141
        %1143 = vrot.lane.b32.xlu0 %v1140, 125
        %v1144 = vpop.permute.xlu0 %1143
        %1145 = vrot.lane.b32.xlu0 %v1142, 125
        %v1146 = vpop.permute.xlu0 %1145
        %v1149 = vadd.f32 %v1127, %v1144
        %v1150 = vadd.f32 %v1128, %v1146
        %v1151 = vstv %s1130
        %v1152 = vmul.f32 %v1151, %v274
        %v1153 = vmul.f32 %v1151, %v275
        %v1154 = vmul.f32 %v1151, %v276
        %v1158 = vrot.slane %v1152, 2
        %v1159 = vrot.slane %v1153, 2
        %v1160 = vsel %vm333, %v1158, %v1159
        %v1161 = vrot.slane %v1154, 2
        %v1162 = vsel %vm333, %v1159, %v1161
        %1163 = vrot.lane.b32.xlu0 %v1160, 125
        %v1164 = vpop.permute.xlu0 %1163
        %1165 = vrot.lane.b32.xlu0 %v1162, 125
        %v1166 = vpop.permute.xlu0 %1165
        %v1169 = vadd.f32 %v1149, %v1164
        %v1170 = vadd.f32 %v1150, %v1166
        %s1171 = sld [smem:[#allocation7 + $0x18]]
        %s1172 = sld [smem:[#allocation7 + $0x49]]
        %v1173 = vstv %s1171
        %v1174 = vmul.f32 %v1173, %v271
        %v1175 = vmul.f32 %v1173, %v272
        %v1176 = vmul.f32 %v1173, %v273
        %v1180 = vrot.slane %v1174, 3
        %v1181 = vrot.slane %v1175, 3
        %v1182 = vsel %vm368, %v1180, %v1181
        %v1183 = vrot.slane %v1176, 3
        %v1184 = vsel %vm368, %v1181, %v1183
        %1185 = vrot.lane.b32.xlu0 %v1182, 125
        %v1186 = vpop.permute.xlu0 %1185
        %1187 = vrot.lane.b32.xlu0 %v1184, 125
        %v1188 = vpop.permute.xlu0 %1187
        %v1191 = vadd.f32 %v1169, %v1186
        %v1192 = vadd.f32 %v1170, %v1188
        %v1193 = vstv %s1172
        %v1194 = vmul.f32 %v1193, %v274
        %v1195 = vmul.f32 %v1193, %v275
        %v1196 = vmul.f32 %v1193, %v276
        %v1200 = vrot.slane %v1194, 3
        %v1201 = vrot.slane %v1195, 3
        %v1202 = vsel %vm368, %v1200, %v1201
        %v1203 = vrot.slane %v1196, 3
        %v1204 = vsel %vm368, %v1201, %v1203
        %1205 = vrot.lane.b32.xlu0 %v1202, 125
        %v1206 = vpop.permute.xlu0 %1205
        %1207 = vrot.lane.b32.xlu0 %v1204, 125
        %v1208 = vpop.permute.xlu0 %1207
        %v1211 = vadd.f32 %v1191, %v1206
        %v1212 = vadd.f32 %v1192, %v1208
        %s1213 = sld [smem:[#allocation7 + $0x1f]]
        %s1214 = sld [smem:[#allocation7 + $0x50]]
        %v1215 = vstv %s1213
        %v1216 = vmul.f32 %v1215, %v271
        %v1217 = vmul.f32 %v1215, %v272
        %v1218 = vmul.f32 %v1215, %v273
        %v1222 = vrot.slane %v1216, 4
        %v1223 = vrot.slane %v1217, 4
        %v1224 = vsel %vm403, %v1222, %v1223
        %v1225 = vrot.slane %v1218, 4
        %v1226 = vsel %vm403, %v1223, %v1225
        %1227 = vrot.lane.b32.xlu0 %v1224, 125
        %v1228 = vpop.permute.xlu0 %1227
        %1229 = vrot.lane.b32.xlu0 %v1226, 125
        %v1230 = vpop.permute.xlu0 %1229
        %v1233 = vadd.f32 %v1211, %v1228
        %v1234 = vadd.f32 %v1212, %v1230
        %v1235 = vstv %s1214
        %v1236 = vmul.f32 %v1235, %v274
        %v1237 = vmul.f32 %v1235, %v275
        %v1238 = vmul.f32 %v1235, %v276
        %v1242 = vrot.slane %v1236, 4
        %v1243 = vrot.slane %v1237, 4
        %v1244 = vsel %vm403, %v1242, %v1243
        %v1245 = vrot.slane %v1238, 4
        %v1246 = vsel %vm403, %v1243, %v1245
        %1247 = vrot.lane.b32.xlu0 %v1244, 125
        %v1248 = vpop.permute.xlu0 %1247
        %1249 = vrot.lane.b32.xlu0 %v1246, 125
        %v1250 = vpop.permute.xlu0 %1249
        %v1253 = vadd.f32 %v1233, %v1248
        %v1254 = vadd.f32 %v1234, %v1250
        %s1255 = sld [smem:[#allocation7 + $0x26]]
        %s1256 = sld [smem:[#allocation7 + $0x57]]
        %v1257 = vstv %s1255
        %v1258 = vmul.f32 %v1257, %v271
        %v1259 = vmul.f32 %v1257, %v272
        %v1260 = vmul.f32 %v1257, %v273
        %v1264 = vrot.slane %v1258, 5
        %v1265 = vrot.slane %v1259, 5
        %v1266 = vsel %vm438, %v1264, %v1265
        %v1267 = vrot.slane %v1260, 5
        %v1268 = vsel %vm438, %v1265, %v1267
        %1269 = vrot.lane.b32.xlu0 %v1266, 125
        %v1270 = vpop.permute.xlu0 %1269
        %1271 = vrot.lane.b32.xlu0 %v1268, 125
        %v1272 = vpop.permute.xlu0 %1271
        %v1275 = vadd.f32 %v1253, %v1270
        %v1276 = vadd.f32 %v1254, %v1272
        %v1277 = vstv %s1256
        %v1278 = vmul.f32 %v1277, %v274
        %v1279 = vmul.f32 %v1277, %v275
        %v1280 = vmul.f32 %v1277, %v276
        %v1284 = vrot.slane %v1278, 5
        %v1285 = vrot.slane %v1279, 5
        %v1286 = vsel %vm438, %v1284, %v1285
        %v1287 = vrot.slane %v1280, 5
        %v1288 = vsel %vm438, %v1285, %v1287
        %1289 = vrot.lane.b32.xlu0 %v1286, 125
        %v1290 = vpop.permute.xlu0 %1289
        %1291 = vrot.lane.b32.xlu0 %v1288, 125
        %v1292 = vpop.permute.xlu0 %1291
        %v1295 = vadd.f32 %v1275, %v1290
        %v1296 = vadd.f32 %v1276, %v1292
        %s1297 = sld [smem:[#allocation7 + $0x2d]]
        %s1298 = sld [smem:[#allocation7 + $0x5e]]
        %v1299 = vstv %s1297
        %v1300 = vmul.f32 %v1299, %v271
        %v1301 = vmul.f32 %v1299, %v272
        %v1302 = vmul.f32 %v1299, %v273
        %v1306 = vrot.slane %v1300, 6
        %v1307 = vrot.slane %v1301, 6
        %v1308 = vsel %vm473, %v1306, %v1307
        %v1309 = vrot.slane %v1302, 6
        %v1310 = vsel %vm473, %v1307, %v1309
        %1311 = vrot.lane.b32.xlu0 %v1308, 125
        %v1312 = vpop.permute.xlu0 %1311
        %1313 = vrot.lane.b32.xlu0 %v1310, 125
        %v1314 = vpop.permute.xlu0 %1313
        %v1317 = vadd.f32 %v1295, %v1312
        %v1318 = vadd.f32 %v1296, %v1314
        %v1319 = vstv %s1298
        %v1320 = vmul.f32 %v1319, %v274
        %v1321 = vmul.f32 %v1319, %v275
        %v1322 = vmul.f32 %v1319, %v276
        %v1326 = vrot.slane %v1320, 6
        %v1327 = vrot.slane %v1321, 6
        %v1328 = vsel %vm473, %v1326, %v1327
        %v1329 = vrot.slane %v1322, 6
        %v1330 = vsel %vm473, %v1327, %v1329
        %1331 = vrot.lane.b32.xlu0 %v1328, 125
        %v1332 = vpop.permute.xlu0 %1331
        %1333 = vrot.lane.b32.xlu0 %v1330, 125
        %v1334 = vpop.permute.xlu0 %1333
        %v1337 = vadd.f32 %v1317, %v1332
        %v1338 = vadd.f32 %v1318, %v1334
        %s1339 = sld [smem:[#allocation7 + $0x4]]
        %s1340 = sld [smem:[#allocation7 + $0x35]]
        %v1341 = vstv %s1339
        %v1342 = vmul.f32 %v1341, %v271
        %v1343 = vmul.f32 %v1341, %v272
        %1346 = vrot.lane.b32.xlu0 %v1342, 124
        %v1347 = vpop.permute.xlu0 %1346
        %1348 = vrot.lane.b32.xlu0 %v1343, 124
        %v1349 = vpop.permute.xlu0 %1348
        %v1352 = vadd.f32 %v1337, %v1347
        %v1353 = vadd.f32 %v1338, %v1349
        %v1354 = vstv %s1340
        %v1355 = vmul.f32 %v1354, %v274
        %v1356 = vmul.f32 %v1354, %v275
        %1359 = vrot.lane.b32.xlu0 %v1355, 124
        %v1360 = vpop.permute.xlu0 %1359
        %1361 = vrot.lane.b32.xlu0 %v1356, 124
        %v1362 = vpop.permute.xlu0 %1361
        %v1365 = vadd.f32 %v1352, %v1360
        %v1366 = vadd.f32 %v1353, %v1362
        %s1367 = sld [smem:[#allocation7 + $0xb]]
        %s1368 = sld [smem:[#allocation7 + $0x3c]]
        %v1369 = vstv %s1367
        %v1370 = vmul.f32 %v1369, %v271
        %v1371 = vmul.f32 %v1369, %v272
        %v1372 = vmul.f32 %v1369, %v273
        %v1376 = vrot.slane %v1370, 1
        %v1377 = vrot.slane %v1371, 1
        %v1378 = vsel %vm298, %v1376, %v1377
        %v1379 = vrot.slane %v1372, 1
        %v1380 = vsel %vm298, %v1377, %v1379
        %1381 = vrot.lane.b32.xlu0 %v1378, 124
        %v1382 = vpop.permute.xlu0 %1381
        %1383 = vrot.lane.b32.xlu0 %v1380, 124
        %v1384 = vpop.permute.xlu0 %1383
        %v1387 = vadd.f32 %v1365, %v1382
        %v1388 = vadd.f32 %v1366, %v1384
        %v1389 = vstv %s1368
        %v1390 = vmul.f32 %v1389, %v274
        %v1391 = vmul.f32 %v1389, %v275
        %v1392 = vmul.f32 %v1389, %v276
        %v1396 = vrot.slane %v1390, 1
        %v1397 = vrot.slane %v1391, 1
        %v1398 = vsel %vm298, %v1396, %v1397
        %v1399 = vrot.slane %v1392, 1
        %v1400 = vsel %vm298, %v1397, %v1399
        %1401 = vrot.lane.b32.xlu0 %v1398, 124
        %v1402 = vpop.permute.xlu0 %1401
        %1403 = vrot.lane.b32.xlu0 %v1400, 124
        %v1404 = vpop.permute.xlu0 %1403
        %v1407 = vadd.f32 %v1387, %v1402
        %v1408 = vadd.f32 %v1388, %v1404
        %s1409 = sld [smem:[#allocation7 + $0x12]]
        %s1410 = sld [smem:[#allocation7 + $0x43]]
        %v1411 = vstv %s1409
        %v1412 = vmul.f32 %v1411, %v271
        %v1413 = vmul.f32 %v1411, %v272
        %v1414 = vmul.f32 %v1411, %v273
        %v1418 = vrot.slane %v1412, 2
        %v1419 = vrot.slane %v1413, 2
        %v1420 = vsel %vm333, %v1418, %v1419
        %v1421 = vrot.slane %v1414, 2
        %v1422 = vsel %vm333, %v1419, %v1421
        %1423 = vrot.lane.b32.xlu0 %v1420, 124
        %v1424 = vpop.permute.xlu0 %1423
        %1425 = vrot.lane.b32.xlu0 %v1422, 124
        %v1426 = vpop.permute.xlu0 %1425
        %v1429 = vadd.f32 %v1407, %v1424
        %v1430 = vadd.f32 %v1408, %v1426
        %v1431 = vstv %s1410
        %v1432 = vmul.f32 %v1431, %v274
        %v1433 = vmul.f32 %v1431, %v275
        %v1434 = vmul.f32 %v1431, %v276
        %v1438 = vrot.slane %v1432, 2
        %v1439 = vrot.slane %v1433, 2
        %v1440 = vsel %vm333, %v1438, %v1439
        %v1441 = vrot.slane %v1434, 2
        %v1442 = vsel %vm333, %v1439, %v1441
        %1443 = vrot.lane.b32.xlu0 %v1440, 124
        %v1444 = vpop.permute.xlu0 %1443
        %1445 = vrot.lane.b32.xlu0 %v1442, 124
        %v1446 = vpop.permute.xlu0 %1445
        %v1449 = vadd.f32 %v1429, %v1444
        %v1450 = vadd.f32 %v1430, %v1446
        %s1451 = sld [smem:[#allocation7 + $0x19]]
        %s1452 = sld [smem:[#allocation7 + $0x4a]]
        %v1453 = vstv %s1451
        %v1454 = vmul.f32 %v1453, %v271
        %v1455 = vmul.f32 %v1453, %v272
        %v1456 = vmul.f32 %v1453, %v273
        %v1460 = vrot.slane %v1454, 3
        %v1461 = vrot.slane %v1455, 3
        %v1462 = vsel %vm368, %v1460, %v1461
        %v1463 = vrot.slane %v1456, 3
        %v1464 = vsel %vm368, %v1461, %v1463
        %1465 = vrot.lane.b32.xlu0 %v1462, 124
        %v1466 = vpop.permute.xlu0 %1465
        %1467 = vrot.lane.b32.xlu0 %v1464, 124
        %v1468 = vpop.permute.xlu0 %1467
        %v1471 = vadd.f32 %v1449, %v1466
        %v1472 = vadd.f32 %v1450, %v1468
        %v1473 = vstv %s1452
        %v1474 = vmul.f32 %v1473, %v274
        %v1475 = vmul.f32 %v1473, %v275
        %v1476 = vmul.f32 %v1473, %v276
        %v1480 = vrot.slane %v1474, 3
        %v1481 = vrot.slane %v1475, 3
        %v1482 = vsel %vm368, %v1480, %v1481
        %v1483 = vrot.slane %v1476, 3
        %v1484 = vsel %vm368, %v1481, %v1483
        %1485 = vrot.lane.b32.xlu0 %v1482, 124
        %v1486 = vpop.permute.xlu0 %1485
        %1487 = vrot.lane.b32.xlu0 %v1484, 124
        %v1488 = vpop.permute.xlu0 %1487
        %v1491 = vadd.f32 %v1471, %v1486
        %v1492 = vadd.f32 %v1472, %v1488
        %s1493 = sld [smem:[#allocation7 + $0x20]]
        %s1494 = sld [smem:[#allocation7 + $0x51]]
        %v1495 = vstv %s1493
        %v1496 = vmul.f32 %v1495, %v271
        %v1497 = vmul.f32 %v1495, %v272
        %v1498 = vmul.f32 %v1495, %v273
        %v1502 = vrot.slane %v1496, 4
        %v1503 = vrot.slane %v1497, 4
        %v1504 = vsel %vm403, %v1502, %v1503
        %v1505 = vrot.slane %v1498, 4
        %v1506 = vsel %vm403, %v1503, %v1505
        %1507 = vrot.lane.b32.xlu0 %v1504, 124
        %v1508 = vpop.permute.xlu0 %1507
        %1509 = vrot.lane.b32.xlu0 %v1506, 124
        %v1510 = vpop.permute.xlu0 %1509
        %v1513 = vadd.f32 %v1491, %v1508
        %v1514 = vadd.f32 %v1492, %v1510
        %v1515 = vstv %s1494
        %v1516 = vmul.f32 %v1515, %v274
        %v1517 = vmul.f32 %v1515, %v275
        %v1518 = vmul.f32 %v1515, %v276
        %v1522 = vrot.slane %v1516, 4
        %v1523 = vrot.slane %v1517, 4
        %v1524 = vsel %vm403, %v1522, %v1523
        %v1525 = vrot.slane %v1518, 4
        %v1526 = vsel %vm403, %v1523, %v1525
        %1527 = vrot.lane.b32.xlu0 %v1524, 124
        %v1528 = vpop.permute.xlu0 %1527
        %1529 = vrot.lane.b32.xlu0 %v1526, 124
        %v1530 = vpop.permute.xlu0 %1529
        %v1533 = vadd.f32 %v1513, %v1528
        %v1534 = vadd.f32 %v1514, %v1530
        %s1535 = sld [smem:[#allocation7 + $0x27]]
        %s1536 = sld [smem:[#allocation7 + $0x58]]
        %v1537 = vstv %s1535
        %v1538 = vmul.f32 %v1537, %v271
        %v1539 = vmul.f32 %v1537, %v272
        %v1540 = vmul.f32 %v1537, %v273
        %v1544 = vrot.slane %v1538, 5
        %v1545 = vrot.slane %v1539, 5
        %v1546 = vsel %vm438, %v1544, %v1545
        %v1547 = vrot.slane %v1540, 5
        %v1548 = vsel %vm438, %v1545, %v1547
        %1549 = vrot.lane.b32.xlu0 %v1546, 124
        %v1550 = vpop.permute.xlu0 %1549
        %1551 = vrot.lane.b32.xlu0 %v1548, 124
        %v1552 = vpop.permute.xlu0 %1551
        %v1555 = vadd.f32 %v1533, %v1550
        %v1556 = vadd.f32 %v1534, %v1552
        %v1557 = vstv %s1536
        %v1558 = vmul.f32 %v1557, %v274
        %v1559 = vmul.f32 %v1557, %v275
        %v1560 = vmul.f32 %v1557, %v276
        %v1564 = vrot.slane %v1558, 5
        %v1565 = vrot.slane %v1559, 5
        %v1566 = vsel %vm438, %v1564, %v1565
        %v1567 = vrot.slane %v1560, 5
        %v1568 = vsel %vm438, %v1565, %v1567
        %1569 = vrot.lane.b32.xlu0 %v1566, 124
        %v1570 = vpop.permute.xlu0 %1569
        %1571 = vrot.lane.b32.xlu0 %v1568, 124
        %v1572 = vpop.permute.xlu0 %1571
        %v1575 = vadd.f32 %v1555, %v1570
        %v1576 = vadd.f32 %v1556, %v1572
        %s1577 = sld [smem:[#allocation7 + $0x2e]]
        %s1578 = sld [smem:[#allocation7 + $0x5f]]
        %v1579 = vstv %s1577
        %v1580 = vmul.f32 %v1579, %v271
        %v1581 = vmul.f32 %v1579, %v272
        %v1582 = vmul.f32 %v1579, %v273
        %v1586 = vrot.slane %v1580, 6
        %v1587 = vrot.slane %v1581, 6
        %v1588 = vsel %vm473, %v1586, %v1587
        %v1589 = vrot.slane %v1582, 6
        %v1590 = vsel %vm473, %v1587, %v1589
        %1591 = vrot.lane.b32.xlu0 %v1588, 124
        %v1592 = vpop.permute.xlu0 %1591
        %1593 = vrot.lane.b32.xlu0 %v1590, 124
        %v1594 = vpop.permute.xlu0 %1593
        %v1597 = vadd.f32 %v1575, %v1592
        %v1598 = vadd.f32 %v1576, %v1594
        %v1599 = vstv %s1578
        %v1600 = vmul.f32 %v1599, %v274
        %v1601 = vmul.f32 %v1599, %v275
        %v1602 = vmul.f32 %v1599, %v276
        %v1606 = vrot.slane %v1600, 6
        %v1607 = vrot.slane %v1601, 6
        %v1608 = vsel %vm473, %v1606, %v1607
        %v1609 = vrot.slane %v1602, 6
        %v1610 = vsel %vm473, %v1607, %v1609
        %1611 = vrot.lane.b32.xlu0 %v1608, 124
        %v1612 = vpop.permute.xlu0 %1611
        %1613 = vrot.lane.b32.xlu0 %v1610, 124
        %v1614 = vpop.permute.xlu0 %1613
        %v1617 = vadd.f32 %v1597, %v1612
        %v1618 = vadd.f32 %v1598, %v1614
        %s1619 = sld [smem:[#allocation7 + $0x5]]
        %s1620 = sld [smem:[#allocation7 + $0x36]]
        %v1621 = vstv %s1619
        %v1622 = vmul.f32 %v1621, %v271
        %v1623 = vmul.f32 %v1621, %v272
        %1626 = vrot.lane.b32.xlu0 %v1622, 123
        %v1627 = vpop.permute.xlu0 %1626
        %1628 = vrot.lane.b32.xlu0 %v1623, 123
        %v1629 = vpop.permute.xlu0 %1628
        %v1632 = vadd.f32 %v1617, %v1627
        %v1633 = vadd.f32 %v1618, %v1629
        %v1634 = vstv %s1620
        %v1635 = vmul.f32 %v1634, %v274
        %v1636 = vmul.f32 %v1634, %v275
        %1639 = vrot.lane.b32.xlu0 %v1635, 123
        %v1640 = vpop.permute.xlu0 %1639
        %1641 = vrot.lane.b32.xlu0 %v1636, 123
        %v1642 = vpop.permute.xlu0 %1641
        %v1645 = vadd.f32 %v1632, %v1640
        %v1646 = vadd.f32 %v1633, %v1642
        %s1647 = sld [smem:[#allocation7 + $0xc]]
        %s1648 = sld [smem:[#allocation7 + $0x3d]]
        %v1649 = vstv %s1647
        %v1650 = vmul.f32 %v1649, %v271
        %v1651 = vmul.f32 %v1649, %v272
        %v1652 = vmul.f32 %v1649, %v273
        %v1656 = vrot.slane %v1650, 1
        %v1657 = vrot.slane %v1651, 1
        %v1658 = vsel %vm298, %v1656, %v1657
        %v1659 = vrot.slane %v1652, 1
        %v1660 = vsel %vm298, %v1657, %v1659
        %1661 = vrot.lane.b32.xlu0 %v1658, 123
        %v1662 = vpop.permute.xlu0 %1661
        %1663 = vrot.lane.b32.xlu0 %v1660, 123
        %v1664 = vpop.permute.xlu0 %1663
        %v1667 = vadd.f32 %v1645, %v1662
        %v1668 = vadd.f32 %v1646, %v1664
        %v1669 = vstv %s1648
        %v1670 = vmul.f32 %v1669, %v274
        %v1671 = vmul.f32 %v1669, %v275
        %v1672 = vmul.f32 %v1669, %v276
        %v1676 = vrot.slane %v1670, 1
        %v1677 = vrot.slane %v1671, 1
        %v1678 = vsel %vm298, %v1676, %v1677
        %v1679 = vrot.slane %v1672, 1
        %v1680 = vsel %vm298, %v1677, %v1679
        %1681 = vrot.lane.b32.xlu0 %v1678, 123
        %v1682 = vpop.permute.xlu0 %1681
        %1683 = vrot.lane.b32.xlu0 %v1680, 123
        %v1684 = vpop.permute.xlu0 %1683
        %v1687 = vadd.f32 %v1667, %v1682
        %v1688 = vadd.f32 %v1668, %v1684
        %s1689 = sld [smem:[#allocation7 + $0x13]]
        %s1690 = sld [smem:[#allocation7 + $0x44]]
        %v1691 = vstv %s1689
        %v1692 = vmul.f32 %v1691, %v271
        %v1693 = vmul.f32 %v1691, %v272
        %v1694 = vmul.f32 %v1691, %v273
        %v1698 = vrot.slane %v1692, 2
        %v1699 = vrot.slane %v1693, 2
        %v1700 = vsel %vm333, %v1698, %v1699
        %v1701 = vrot.slane %v1694, 2
        %v1702 = vsel %vm333, %v1699, %v1701
        %1703 = vrot.lane.b32.xlu0 %v1700, 123
        %v1704 = vpop.permute.xlu0 %1703
        %1705 = vrot.lane.b32.xlu0 %v1702, 123
        %v1706 = vpop.permute.xlu0 %1705
        %v1709 = vadd.f32 %v1687, %v1704
        %v1710 = vadd.f32 %v1688, %v1706
        %v1711 = vstv %s1690
        %v1712 = vmul.f32 %v1711, %v274
        %v1713 = vmul.f32 %v1711, %v275
        %v1714 = vmul.f32 %v1711, %v276
        %v1718 = vrot.slane %v1712, 2
        %v1719 = vrot.slane %v1713, 2
        %v1720 = vsel %vm333, %v1718, %v1719
        %v1721 = vrot.slane %v1714, 2
        %v1722 = vsel %vm333, %v1719, %v1721
        %1723 = vrot.lane.b32.xlu0 %v1720, 123
        %v1724 = vpop.permute.xlu0 %1723
        %1725 = vrot.lane.b32.xlu0 %v1722, 123
        %v1726 = vpop.permute.xlu0 %1725
        %v1729 = vadd.f32 %v1709, %v1724
        %v1730 = vadd.f32 %v1710, %v1726
        %s1731 = sld [smem:[#allocation7 + $0x1a]]
        %s1732 = sld [smem:[#allocation7 + $0x4b]]
        %v1733 = vstv %s1731
        %v1734 = vmul.f32 %v1733, %v271
        %v1735 = vmul.f32 %v1733, %v272
        %v1736 = vmul.f32 %v1733, %v273
        %v1740 = vrot.slane %v1734, 3
        %v1741 = vrot.slane %v1735, 3
        %v1742 = vsel %vm368, %v1740, %v1741
        %v1743 = vrot.slane %v1736, 3
        %v1744 = vsel %vm368, %v1741, %v1743
        %1745 = vrot.lane.b32.xlu0 %v1742, 123
        %v1746 = vpop.permute.xlu0 %1745
        %1747 = vrot.lane.b32.xlu0 %v1744, 123
        %v1748 = vpop.permute.xlu0 %1747
        %v1751 = vadd.f32 %v1729, %v1746
        %v1752 = vadd.f32 %v1730, %v1748
        %v1753 = vstv %s1732
        %v1754 = vmul.f32 %v1753, %v274
        %v1755 = vmul.f32 %v1753, %v275
        %v1756 = vmul.f32 %v1753, %v276
        %v1760 = vrot.slane %v1754, 3
        %v1761 = vrot.slane %v1755, 3
        %v1762 = vsel %vm368, %v1760, %v1761
        %v1763 = vrot.slane %v1756, 3
        %v1764 = vsel %vm368, %v1761, %v1763
        %1765 = vrot.lane.b32.xlu0 %v1762, 123
        %v1766 = vpop.permute.xlu0 %1765
        %1767 = vrot.lane.b32.xlu0 %v1764, 123
        %v1768 = vpop.permute.xlu0 %1767
        %v1771 = vadd.f32 %v1751, %v1766
        %v1772 = vadd.f32 %v1752, %v1768
        %s1773 = sld [smem:[#allocation7 + $0x21]]
        %s1774 = sld [smem:[#allocation7 + $0x52]]
        %v1775 = vstv %s1773
        %v1776 = vmul.f32 %v1775, %v271
        %v1777 = vmul.f32 %v1775, %v272
        %v1778 = vmul.f32 %v1775, %v273
        %v1782 = vrot.slane %v1776, 4
        %v1783 = vrot.slane %v1777, 4
        %v1784 = vsel %vm403, %v1782, %v1783
        %v1785 = vrot.slane %v1778, 4
        %v1786 = vsel %vm403, %v1783, %v1785
        %1787 = vrot.lane.b32.xlu0 %v1784, 123
        %v1788 = vpop.permute.xlu0 %1787
        %1789 = vrot.lane.b32.xlu0 %v1786, 123
        %v1790 = vpop.permute.xlu0 %1789
        %v1793 = vadd.f32 %v1771, %v1788
        %v1794 = vadd.f32 %v1772, %v1790
        %v1795 = vstv %s1774
        %v1796 = vmul.f32 %v1795, %v274
        %v1797 = vmul.f32 %v1795, %v275
        %v1798 = vmul.f32 %v1795, %v276
        %v1802 = vrot.slane %v1796, 4
        %v1803 = vrot.slane %v1797, 4
        %v1804 = vsel %vm403, %v1802, %v1803
        %v1805 = vrot.slane %v1798, 4
        %v1806 = vsel %vm403, %v1803, %v1805
        %1807 = vrot.lane.b32.xlu0 %v1804, 123
        %v1808 = vpop.permute.xlu0 %1807
        %1809 = vrot.lane.b32.xlu0 %v1806, 123
        %v1810 = vpop.permute.xlu0 %1809
        %v1813 = vadd.f32 %v1793, %v1808
        %v1814 = vadd.f32 %v1794, %v1810
        %s1815 = sld [smem:[#allocation7 + $0x28]]
        %s1816 = sld [smem:[#allocation7 + $0x59]]
        %v1817 = vstv %s1815
        %v1818 = vmul.f32 %v1817, %v271
        %v1819 = vmul.f32 %v1817, %v272
        %v1820 = vmul.f32 %v1817, %v273
        %v1824 = vrot.slane %v1818, 5
        %v1825 = vrot.slane %v1819, 5
        %v1826 = vsel %vm438, %v1824, %v1825
        %v1827 = vrot.slane %v1820, 5
        %v1828 = vsel %vm438, %v1825, %v1827
        %1829 = vrot.lane.b32.xlu0 %v1826, 123
        %v1830 = vpop.permute.xlu0 %1829
        %1831 = vrot.lane.b32.xlu0 %v1828, 123
        %v1832 = vpop.permute.xlu0 %1831
        %v1835 = vadd.f32 %v1813, %v1830
        %v1836 = vadd.f32 %v1814, %v1832
        %v1837 = vstv %s1816
        %v1838 = vmul.f32 %v1837, %v274
        %v1839 = vmul.f32 %v1837, %v275
        %v1840 = vmul.f32 %v1837, %v276
        %v1844 = vrot.slane %v1838, 5
        %v1845 = vrot.slane %v1839, 5
        %v1846 = vsel %vm438, %v1844, %v1845
        %v1847 = vrot.slane %v1840, 5
        %v1848 = vsel %vm438, %v1845, %v1847
        %1849 = vrot.lane.b32.xlu0 %v1846, 123
        %v1850 = vpop.permute.xlu0 %1849
        %1851 = vrot.lane.b32.xlu0 %v1848, 123
        %v1852 = vpop.permute.xlu0 %1851
        %v1855 = vadd.f32 %v1835, %v1850
        %v1856 = vadd.f32 %v1836, %v1852
        %s1857 = sld [smem:[#allocation7 + $0x2f]]
        %s1858 = sld [smem:[#allocation7 + $0x60]]
        %v1859 = vstv %s1857
        %v1860 = vmul.f32 %v1859, %v271
        %v1861 = vmul.f32 %v1859, %v272
        %v1862 = vmul.f32 %v1859, %v273
        %v1866 = vrot.slane %v1860, 6
        %v1867 = vrot.slane %v1861, 6
        %v1868 = vsel %vm473, %v1866, %v1867
        %v1869 = vrot.slane %v1862, 6
        %v1870 = vsel %vm473, %v1867, %v1869
        %1871 = vrot.lane.b32.xlu0 %v1868, 123
        %v1872 = vpop.permute.xlu0 %1871
        %1873 = vrot.lane.b32.xlu0 %v1870, 123
        %v1874 = vpop.permute.xlu0 %1873
        %v1877 = vadd.f32 %v1855, %v1872
        %v1878 = vadd.f32 %v1856, %v1874
        %v1879 = vstv %s1858
        %v1880 = vmul.f32 %v1879, %v274
        %v1881 = vmul.f32 %v1879, %v275
        %v1882 = vmul.f32 %v1879, %v276
        %v1886 = vrot.slane %v1880, 6
        %v1887 = vrot.slane %v1881, 6
        %v1888 = vsel %vm473, %v1886, %v1887
        %v1889 = vrot.slane %v1882, 6
        %v1890 = vsel %vm473, %v1887, %v1889
        %1891 = vrot.lane.b32.xlu0 %v1888, 123
        %v1892 = vpop.permute.xlu0 %1891
        %1893 = vrot.lane.b32.xlu0 %v1890, 123
        %v1894 = vpop.permute.xlu0 %1893
        %v1897 = vadd.f32 %v1877, %v1892
        %v1898 = vadd.f32 %v1878, %v1894
        %s1899 = sld [smem:[#allocation7 + $0x6]]
        %s1900 = sld [smem:[#allocation7 + $0x37]]
        %v1901 = vstv %s1899
        %v1902 = vmul.f32 %v1901, %v271
        %v1903 = vmul.f32 %v1901, %v272
        %1906 = vrot.lane.b32.xlu0 %v1902, 122
        %v1907 = vpop.permute.xlu0 %1906
        %1908 = vrot.lane.b32.xlu0 %v1903, 122
        %v1909 = vpop.permute.xlu0 %1908
        %v1912 = vadd.f32 %v1897, %v1907
        %v1913 = vadd.f32 %v1898, %v1909
        %v1914 = vstv %s1900
        %v1915 = vmul.f32 %v1914, %v274
        %v1916 = vmul.f32 %v1914, %v275
        %1919 = vrot.lane.b32.xlu0 %v1915, 122
        %v1920 = vpop.permute.xlu0 %1919
        %1921 = vrot.lane.b32.xlu0 %v1916, 122
        %v1922 = vpop.permute.xlu0 %1921
        %v1925 = vadd.f32 %v1912, %v1920
        %v1926 = vadd.f32 %v1913, %v1922
        %s1927 = sld [smem:[#allocation7 + $0xd]]
        %s1928 = sld [smem:[#allocation7 + $0x3e]]
        %v1929 = vstv %s1927
        %v1930 = vmul.f32 %v1929, %v271
        %v1931 = vmul.f32 %v1929, %v272
        %v1932 = vmul.f32 %v1929, %v273
        %v1936 = vrot.slane %v1930, 1
        %v1937 = vrot.slane %v1931, 1
        %v1938 = vsel %vm298, %v1936, %v1937
        %v1939 = vrot.slane %v1932, 1
        %v1940 = vsel %vm298, %v1937, %v1939
        %1941 = vrot.lane.b32.xlu0 %v1938, 122
        %v1942 = vpop.permute.xlu0 %1941
        %1943 = vrot.lane.b32.xlu0 %v1940, 122
        %v1944 = vpop.permute.xlu0 %1943
        %v1947 = vadd.f32 %v1925, %v1942
        %v1948 = vadd.f32 %v1926, %v1944
        %v1949 = vstv %s1928
        %v1950 = vmul.f32 %v1949, %v274
        %v1951 = vmul.f32 %v1949, %v275
        %v1952 = vmul.f32 %v1949, %v276
        %v1956 = vrot.slane %v1950, 1
        %v1957 = vrot.slane %v1951, 1
        %v1958 = vsel %vm298, %v1956, %v1957
        %v1959 = vrot.slane %v1952, 1
        %v1960 = vsel %vm298, %v1957, %v1959
        %1961 = vrot.lane.b32.xlu0 %v1958, 122
        %v1962 = vpop.permute.xlu0 %1961
        %1963 = vrot.lane.b32.xlu0 %v1960, 122
        %v1964 = vpop.permute.xlu0 %1963
        %v1967 = vadd.f32 %v1947, %v1962
        %v1968 = vadd.f32 %v1948, %v1964
        %s1969 = sld [smem:[#allocation7 + $0x14]]
        %s1970 = sld [smem:[#allocation7 + $0x45]]
        %v1971 = vstv %s1969
        %v1972 = vmul.f32 %v1971, %v271
        %v1973 = vmul.f32 %v1971, %v272
        %v1974 = vmul.f32 %v1971, %v273
        %v1978 = vrot.slane %v1972, 2
        %v1979 = vrot.slane %v1973, 2
        %v1980 = vsel %vm333, %v1978, %v1979
        %v1981 = vrot.slane %v1974, 2
        %v1982 = vsel %vm333, %v1979, %v1981
        %1983 = vrot.lane.b32.xlu0 %v1980, 122
        %v1984 = vpop.permute.xlu0 %1983
        %1985 = vrot.lane.b32.xlu0 %v1982, 122
        %v1986 = vpop.permute.xlu0 %1985
        %v1989 = vadd.f32 %v1967, %v1984
        %v1990 = vadd.f32 %v1968, %v1986
        %v1991 = vstv %s1970
        %v1992 = vmul.f32 %v1991, %v274
        %v1993 = vmul.f32 %v1991, %v275
        %v1994 = vmul.f32 %v1991, %v276
        %v1998 = vrot.slane %v1992, 2
        %v1999 = vrot.slane %v1993, 2
        %v2000 = vsel %vm333, %v1998, %v1999
        %v2001 = vrot.slane %v1994, 2
        %v2002 = vsel %vm333, %v1999, %v2001
        %2003 = vrot.lane.b32.xlu0 %v2000, 122
        %v2004 = vpop.permute.xlu0 %2003
        %2005 = vrot.lane.b32.xlu0 %v2002, 122
        %v2006 = vpop.permute.xlu0 %2005
        %v2009 = vadd.f32 %v1989, %v2004
        %v2010 = vadd.f32 %v1990, %v2006
        %s2011 = sld [smem:[#allocation7 + $0x1b]]
        %s2012 = sld [smem:[#allocation7 + $0x4c]]
        %v2013 = vstv %s2011
        %v2014 = vmul.f32 %v2013, %v271
        %v2015 = vmul.f32 %v2013, %v272
        %v2016 = vmul.f32 %v2013, %v273
        %v2020 = vrot.slane %v2014, 3
        %v2021 = vrot.slane %v2015, 3
        %v2022 = vsel %vm368, %v2020, %v2021
        %v2023 = vrot.slane %v2016, 3
        %v2024 = vsel %vm368, %v2021, %v2023
        %2025 = vrot.lane.b32.xlu0 %v2022, 122
        %v2026 = vpop.permute.xlu0 %2025
        %2027 = vrot.lane.b32.xlu0 %v2024, 122
        %v2028 = vpop.permute.xlu0 %2027
        %v2031 = vadd.f32 %v2009, %v2026
        %v2032 = vadd.f32 %v2010, %v2028
        %v2033 = vstv %s2012
        %v2034 = vmul.f32 %v2033, %v274
        %v2035 = vmul.f32 %v2033, %v275
        %v2036 = vmul.f32 %v2033, %v276
        %v2040 = vrot.slane %v2034, 3
        %v2041 = vrot.slane %v2035, 3
        %v2042 = vsel %vm368, %v2040, %v2041
        %v2043 = vrot.slane %v2036, 3
        %v2044 = vsel %vm368, %v2041, %v2043
        %2045 = vrot.lane.b32.xlu0 %v2042, 122
        %v2046 = vpop.permute.xlu0 %2045
        %2047 = vrot.lane.b32.xlu0 %v2044, 122
        %v2048 = vpop.permute.xlu0 %2047
        %v2051 = vadd.f32 %v2031, %v2046
        %v2052 = vadd.f32 %v2032, %v2048
        %s2053 = sld [smem:[#allocation7 + $0x22]]
        %s2054 = sld [smem:[#allocation7 + $0x53]]
        %v2055 = vstv %s2053
        %v2056 = vmul.f32 %v2055, %v271
        %v2057 = vmul.f32 %v2055, %v272
        %v2058 = vmul.f32 %v2055, %v273
        %v2062 = vrot.slane %v2056, 4
        %v2063 = vrot.slane %v2057, 4
        %v2064 = vsel %vm403, %v2062, %v2063
        %v2065 = vrot.slane %v2058, 4
        %v2066 = vsel %vm403, %v2063, %v2065
        %2067 = vrot.lane.b32.xlu0 %v2064, 122
        %v2068 = vpop.permute.xlu0 %2067
        %2069 = vrot.lane.b32.xlu0 %v2066, 122
        %v2070 = vpop.permute.xlu0 %2069
        %v2073 = vadd.f32 %v2051, %v2068
        %v2074 = vadd.f32 %v2052, %v2070
        %v2075 = vstv %s2054
        %v2076 = vmul.f32 %v2075, %v274
        %v2077 = vmul.f32 %v2075, %v275
        %v2078 = vmul.f32 %v2075, %v276
        %v2082 = vrot.slane %v2076, 4
        %v2083 = vrot.slane %v2077, 4
        %v2084 = vsel %vm403, %v2082, %v2083
        %v2085 = vrot.slane %v2078, 4
        %v2086 = vsel %vm403, %v2083, %v2085
        %2087 = vrot.lane.b32.xlu0 %v2084, 122
        %v2088 = vpop.permute.xlu0 %2087
        %2089 = vrot.lane.b32.xlu0 %v2086, 122
        %v2090 = vpop.permute.xlu0 %2089
        %v2093 = vadd.f32 %v2073, %v2088
        %v2094 = vadd.f32 %v2074, %v2090
        %s2095 = sld [smem:[#allocation7 + $0x29]]
        %s2096 = sld [smem:[#allocation7 + $0x5a]]
        %v2097 = vstv %s2095
        %v2098 = vmul.f32 %v2097, %v271
        %v2099 = vmul.f32 %v2097, %v272
        %v2100 = vmul.f32 %v2097, %v273
        %v2104 = vrot.slane %v2098, 5
        %v2105 = vrot.slane %v2099, 5
        %v2106 = vsel %vm438, %v2104, %v2105
        %v2107 = vrot.slane %v2100, 5
        %v2108 = vsel %vm438, %v2105, %v2107
        %2109 = vrot.lane.b32.xlu0 %v2106, 122
        %v2110 = vpop.permute.xlu0 %2109
        %2111 = vrot.lane.b32.xlu0 %v2108, 122
        %v2112 = vpop.permute.xlu0 %2111
        %v2115 = vadd.f32 %v2093, %v2110
        %v2116 = vadd.f32 %v2094, %v2112
        %v2117 = vstv %s2096
        %v2118 = vmul.f32 %v2117, %v274
        %v2119 = vmul.f32 %v2117, %v275
        %v2120 = vmul.f32 %v2117, %v276
        %v2124 = vrot.slane %v2118, 5
        %v2125 = vrot.slane %v2119, 5
        %v2126 = vsel %vm438, %v2124, %v2125
        %v2127 = vrot.slane %v2120, 5
        %v2128 = vsel %vm438, %v2125, %v2127
        %2129 = vrot.lane.b32.xlu0 %v2126, 122
        %v2130 = vpop.permute.xlu0 %2129
        %2131 = vrot.lane.b32.xlu0 %v2128, 122
        %v2132 = vpop.permute.xlu0 %2131
        %v2135 = vadd.f32 %v2115, %v2130
        %v2136 = vadd.f32 %v2116, %v2132
        %s2137 = sld [smem:[#allocation7 + $0x30]]
        %s2138 = sld [smem:[#allocation7 + $0x61]]
        %v2139 = vstv %s2137
        %v2140 = vmul.f32 %v2139, %v271
        %v2141 = vmul.f32 %v2139, %v272
        %v2142 = vmul.f32 %v2139, %v273
        %v2146 = vrot.slane %v2140, 6
        %v2147 = vrot.slane %v2141, 6
        %v2148 = vsel %vm473, %v2146, %v2147
        %v2149 = vrot.slane %v2142, 6
        %v2150 = vsel %vm473, %v2147, %v2149
        %2151 = vrot.lane.b32.xlu0 %v2148, 122
        %v2152 = vpop.permute.xlu0 %2151
        %2153 = vrot.lane.b32.xlu0 %v2150, 122
        %v2154 = vpop.permute.xlu0 %2153
        %v2157 = vadd.f32 %v2135, %v2152
        %v2158 = vadd.f32 %v2136, %v2154
        %v2159 = vstv %s2138
        %v2160 = vmul.f32 %v2159, %v274
        %v2161 = vmul.f32 %v2159, %v275
        %v2162 = vmul.f32 %v2159, %v276
        %v2166 = vrot.slane %v2160, 6
        %v2167 = vrot.slane %v2161, 6
        %v2168 = vsel %vm473, %v2166, %v2167
        %v2169 = vrot.slane %v2162, 6
        %v2170 = vsel %vm473, %v2167, %v2169
        %2171 = vrot.lane.b32.xlu0 %v2168, 122
        %v2172 = vpop.permute.xlu0 %2171
        %2173 = vrot.lane.b32.xlu0 %v2170, 122
        %v2174 = vpop.permute.xlu0 %2173
        %v2177 = vadd.f32 %v2157, %v2172
        %v2178 = vadd.f32 %v2158, %v2174
        %v2179 = vxor.u32 %v2177, 2147483648
        %v2180 = vxor.u32 %v2178, 2147483648
        %v2181 = vmul.f32 %v2179, 1.442695
        %v2182 = vpow.pop %v2181
        %v2183 = vmul.f32 %v2180, 1.442695
        %v2184 = vpow.pop %v2183
        %v2185 = vadd.f32 %v2182, 1.0
        %v2186 = vadd.f32 %v2184, 1.0
        %v2187 = vrcp.pop %v2185
        %v2188 = vmul.f32 1.0, %v2187
        %v2189 = vrcp.pop %v2186
        %v2190 = vmul.f32 1.0, %v2189
        %vm2191 = vcmask 122880
        %2192 = vst.msk [vmem:[%s149] sm:$0x1] %vm2191, %v2188
        %2194 = vrot.lane.b32.xlu0 %v2188, 16
        %v2195 = vpop.permute.xlu0 %2194
        %vm2197 = vcmask 255105
        %2198 = vst.msk [vmem:[%s149 - $0x1] sm:$0x2] %vm2197, %v2195
        %2199 = vrot.lane.b32.xlu0 %v2188, 32
        %v2200 = vpop.permute.xlu0 %2199
        %vm2202 = vcmask 387330
        %2203 = vst.msk [vmem:[%s149 - $0x2] sm:$0x4] %vm2202, %v2200
        %2204 = vrot.lane.b32.xlu0 %v2188, 48
        %v2205 = vpop.permute.xlu0 %2204
        %vm2207 = vcmask 519555
        %2208 = vst.msk [vmem:[%s149 - $0x3] sm:$0x8] %vm2207, %v2205
        %2209 = vrot.lane.b32.xlu0 %v2188, 64
        %v2210 = vpop.permute.xlu0 %2209
        %vm2212 = vcmask 651780
        %2213 = vst.msk [vmem:[%s149 - $0x4] sm:$0x10] %vm2212, %v2210
        %2214 = vrot.lane.b32.xlu0 %v2188, 80
        %v2215 = vpop.permute.xlu0 %2214
        %vm2217 = vcmask 784005
        %2218 = vst.msk [vmem:[%s149 - $0x5] sm:$0x20] %vm2217, %v2215
        %2219 = vrot.lane.b32.xlu0 %v2188, 96
        %v2220 = vpop.permute.xlu0 %2219
        %vm2222 = vcmask 916230
        %2223 = vst.msk [vmem:[%s149 - $0x6] sm:$0x40] %vm2222, %v2220
        %2224 = vrot.lane.b32.xlu0 %v2188, 112
        %v2225 = vpop.permute.xlu0 %2224
        %vm2227 = vcmask 1048455
        %2228 = vst.msk [vmem:[%s149 - $0x7] sm:$0x80] %vm2227, %v2225
        %2229 = vst.msk [vmem:[%s149 + $0x1] sm:$0x1] %vm2191, %v2190
        %2231 = vrot.lane.b32.xlu0 %v2190, 16
        %v2232 = vpop.permute.xlu0 %2231
        %2234 = vst.msk [vmem:[%s149] sm:$0x2] %vm2197, %v2232
        %2235 = vrot.lane.b32.xlu0 %v2190, 32
        %v2236 = vpop.permute.xlu0 %2235
        %2238 = vst.msk [vmem:[%s149 - $0x1] sm:$0x4] %vm2202, %v2236
        %2239 = vrot.lane.b32.xlu0 %v2190, 48
        %v2240 = vpop.permute.xlu0 %2239
        %2242 = vst.msk [vmem:[%s149 - $0x2] sm:$0x8] %vm2207, %v2240
        %2243 = vrot.lane.b32.xlu0 %v2190, 64
        %v2244 = vpop.permute.xlu0 %2243
        %2246 = vst.msk [vmem:[%s149 - $0x3] sm:$0x10] %vm2212, %v2244
        %2247 = vrot.lane.b32.xlu0 %v2190, 80
        %v2248 = vpop.permute.xlu0 %2247
        %2250 = vst.msk [vmem:[%s149 - $0x4] sm:$0x20] %vm2217, %v2248
        %2251 = vrot.lane.b32.xlu0 %v2190, 96
        %v2252 = vpop.permute.xlu0 %2251
        %2254 = vst.msk [vmem:[%s149 - $0x5] sm:$0x40] %vm2222, %v2252
        %2255 = vrot.lane.b32.xlu0 %v2190, 112
        %v2256 = vpop.permute.xlu0 %2255
        %2258 = vst.msk [vmem:[%s149 - $0x6] sm:$0x80] %vm2227, %v2256
      $region32: #{spatial_attention.1} parent=23 // pred_fallthru
        _
      %p2259 = scmp.lt.s32.totalorder %s23, 1
      %s2260 = scalar_select %p2259, %s23, 1
      %s2261 = smul.addr %s2260, 2
      %s2262 = scalar_lea.vmem %s2, %s2261
      // Predicated region
      $region33: #{spatial_attention.1} parent=23 // pred_check
        %p2263 = pneg %p77
      $region34: #{spatial_attention.1} parent=23 // pred_check_branch
        %2265 = sbr.rel (%p2263) target = $region36
      $region35: #{spatial_attention.1} parent=23 // pred_region
        _
      $region36: #{spatial_attention.1} parent=23 // pred_fallthru
        _
    $region24: #{spatial_attention.1} parent=5 // pred_fallthru
      _
    %p2266 = scmp.le.s32.totalorder 2, %s14
    // Predicated region
    $region37: #{spatial_attention.1} parent=5 // pred_check
      %p2267 = pneg %p2266
    $region38: #{spatial_attention.1} parent=5 // pred_check_branch
      %2269 = sbr.rel (%p2267) target = $region40
    $region39: #{spatial_attention.1} parent=5 // pred_region
      %s2270 = ssub.s32 %s14, 2
      // Predicated region
      $region41: #{spatial_attention.1} parent=39 // pred_check
        %p2271 = pneg %p83
      $region42: #{spatial_attention.1} parent=39 // pred_check_branch
        %2273 = sbr.rel (%p2271) target = $region44
      $region43: #{spatial_attention.1} parent=39 // pred_region
        %p2274 = scmp.lt.s32.totalorder %s25, 1
        %s2275 = scalar_select %p2274, %s25, 1
        %s2276 = smul.addr %s2275, 2
        %s2277 = scalar_lea.vmem %s2, %s2276
      $region44: #{spatial_attention.1} parent=39 // pred_fallthru
        _
    $region40: #{spatial_attention.1} parent=5 // pred_fallthru
      _
  $region6: #{spatial_attention.1} parent=0 // loop_footer
    %s18 = sadd.s32 1, %s14
  $region7: #{spatial_attention.1} parent=0 // loop_footer_branch
    %13 = sbr.rel target = $region3
  $region8: #{spatial_attention.1} parent=0 // loop_exit
    _

</llo_original>
